<compile_context>
chip_gen: v7x
topology: tpu7x:2x2x1
jax: 0.10.0
libtpu: 0.0.40
codegen_flags: <defaults>
</compile_context>

<pallas_src>
import functools

import jax
import jax.numpy as jnp
from jax import lax
from jax.experimental import pallas as pl
from jax.experimental.pallas import tpu as pltpu


def _conv_bn_relu_kernel(x_ref, w_ref, scale_ref, shift_ref, o_ref, xpad_ref,
                         *, padding):
    """Fused conv(k x k, stride 1) + folded-BN + ReLU for one batch element.

    x_ref:     (1, H, W, Cin)        unpadded NHWC input tile
    w_ref:     (KH, KW, Cin, Cout)   HWIO conv weights
    scale_ref: (1, Cout)             folded BN scale  (gamma / sqrt(var+eps))
    shift_ref: (1, Cout)             folded BN shift  (beta - mean*scale)
    o_ref:     (1, Ho, Wo, Cout)     output tile
    xpad_ref:  VMEM (H+2p, W+2p, Cin) scratch for in-kernel zero padding
    """
    _, H, W, Cin = x_ref.shape
    KH, KW, _, Cout = w_ref.shape
    _, Ho, Wo, _ = o_ref.shape

    # ---- in-kernel 'same' padding: zero halo + interior copy (no HBM pad pass)
    xpad_ref[...] = jnp.zeros_like(xpad_ref)
    xpad_ref[padding:padding + H, padding:padding + W, :] = x_ref[0]

    # ---- k*k taps accumulated into one f32 accumulator.
    # Each tap is an (Ho*Wo, Cin) x (Cin, Cout) MXU dot with Cout on the lane
    # axis; f32 accumulation via preferred_element_type.
    acc = jnp.zeros((Ho * Wo, Cout), jnp.float32)
    for kh in range(KH):
        for kw in range(KW):
            patch = xpad_ref[kh:kh + Ho, kw:kw + Wo, :].reshape(Ho * Wo, Cin)
            acc = acc + jnp.dot(patch, w_ref[kh, kw],
                                preferred_element_type=jnp.float32)

    # ---- fused BatchNorm (folded scale/shift) + ReLU, single store.
    y = jnp.maximum(acc * scale_ref[0] + shift_ref[0], 0.0)
    o_ref[0] = y.reshape(Ho, Wo, Cout).astype(o_ref.dtype)


def conv_bn_relu_forward(x_nchw, w_oihw, gamma, beta, running_mean, running_var,
                         *, stride=1, padding=1, eps=1e-5):
    """Forward of Conv2d module: ReLU(BN(conv2d(x, w, bias=False))).

    x_nchw: (N, Cin, H, W); w_oihw: (Cout, Cin, KH, KW); BN params: (Cout,).
    BatchNorm is applied in inference mode (running stats folded into a
    per-channel scale/shift).
    """
    N, Cin, H, W = x_nchw.shape
    Cout, _, KH, KW = w_oihw.shape
    assert stride == 1  # TODO(synk): stride > 1 needs strided patch slicing.
    Ho = H + 2 * padding - KH + 1
    Wo = W + 2 * padding - KW + 1

    # Fold BN (inference) into per-channel scale/shift.
    scale = (gamma * lax.rsqrt(running_var + eps)).astype(jnp.float32)
    shift = (beta - running_mean * scale).astype(jnp.float32)

    # Channels-last compute layout (C on the 128-lane axis).
    # TODO(synk): keep NHWC end-to-end if the surrounding graph allows; the
    #             NCHW interface of the PyTorch module forces these transposes.
    x_nhwc = jnp.transpose(x_nchw, (0, 2, 3, 1))
    w_hwio = jnp.transpose(w_oihw, (2, 3, 1, 0))

    out_nhwc = pl.pallas_call(
        functools.partial(_conv_bn_relu_kernel, padding=padding),
        out_shape=jax.ShapeDtypeStruct((N, Ho, Wo, Cout), x_nchw.dtype),
        grid_spec=pltpu.PrefetchScalarGridSpec(
            num_scalar_prefetch=0,
            grid=(N,),
            in_specs=[
                pl.BlockSpec((1, H, W, Cin), lambda n: (n, 0, 0, 0)),
                # Weights / BN params: constant block index -> stay resident.
                pl.BlockSpec((KH, KW, Cin, Cout), lambda n: (0, 0, 0, 0)),
                pl.BlockSpec((1, Cout), lambda n: (0, 0)),
                pl.BlockSpec((1, Cout), lambda n: (0, 0)),
            ],
            out_specs=pl.BlockSpec((1, Ho, Wo, Cout), lambda n: (n, 0, 0, 0)),
            scratch_shapes=[
                pltpu.VMEM((H + 2 * padding, W + 2 * padding, Cin),
                           x_nchw.dtype),
            ],
        ),
        compiler_params=pltpu.CompilerParams(
            dimension_semantics=("parallel",),  # batch across megacore TCs
        ),
    )(x_nhwc, w_hwio, scale.reshape(1, Cout), shift.reshape(1, Cout))

    return jnp.transpose(out_nhwc, (0, 3, 1, 2))  # back to NCHW


def _reference_forward(x_nchw, w_oihw, gamma, beta, running_mean, running_var,
                       *, padding=1, eps=1e-5):
    """Pure-JAX reference (lax.conv + eval-mode BN + ReLU)."""
    Cout = w_oihw.shape[0]
    y = lax.conv_general_dilated(
        x_nchw, w_oihw, window_strides=(1, 1),
        padding=((padding, padding), (padding, padding)),
        dimension_numbers=("NCHW", "OIHW", "NCHW"),
    )
    inv = (gamma * lax.rsqrt(running_var + eps)).reshape(1, Cout, 1, 1)
    y = (y - running_mean.reshape(1, Cout, 1, 1)) * inv \
        + beta.reshape(1, Cout, 1, 1)
    return jnp.maximum(y, 0.0)


if __name__ == "__main__":
    # Small deterministic example: Conv2d(C_in=4, C_out=32, k=3, s=1, p=1).
    N, Cin, H, W = 2, 4, 16, 16
    Cout, K = 32, 3

    key = jax.random.PRNGKey(0)
    kx, kw, kg, kb, km, kv = jax.random.split(key, 6)
    x = jax.random.normal(kx, (N, Cin, H, W), dtype=jnp.float32)
    w = jax.random.normal(kw, (Cout, Cin, K, K), dtype=jnp.float32) * 0.1
    gamma = 1.0 + 0.1 * jax.random.normal(kg, (Cout,), dtype=jnp.float32)
    beta = 0.1 * jax.random.normal(kb, (Cout,), dtype=jnp.float32)
    running_mean = 0.1 * jax.random.normal(km, (Cout,), dtype=jnp.float32)
    running_var = 0.5 + jnp.abs(jax.random.normal(kv, (Cout,),
                                                  dtype=jnp.float32)) * 0.5

    fwd = jax.jit(functools.partial(conv_bn_relu_forward, stride=1, padding=1))
    out = fwd(x, w, gamma, beta, running_mean, running_var)
    out = jax.block_until_ready(out)

    ref = _reference_forward(x, w, gamma, beta, running_mean, running_var,
                             padding=1)
    assert out.shape == (N, Cout, H, W)
    assert jnp.allclose(out, ref, atol=1e-4, rtol=1e-4)

    print("KERNEL_OK")
</pallas_src>

<mosaic_0001>
module attributes {stable_mosaic.version = 11 : i64} {
  func.func @_conv_bn_relu_kernel(%arg0: i32, %arg1: memref<1x16x16x4xf32, #tpu.memory_space<vmem>>, %arg2: memref<3x3x4x32xf32, #tpu.memory_space<vmem>>, %arg3: memref<1x32xf32, #tpu.memory_space<vmem>>, %arg4: memref<1x32xf32, #tpu.memory_space<vmem>>, %arg5: memref<1x16x16x32xf32, #tpu.memory_space<vmem>>, %arg6: memref<18x18x4xf32, #tpu.memory_space<vmem>>) attributes {dimension_semantics = [#tpu.dimension_semantics<parallel>], iteration_bounds = array<i64: 2>, scalar_prefetch = 0 : i64, scratch_operands = 1 : i64, tpu.core_type = #tpu.core_type<tc>, window_params = [{transform_indices = @transform_0, window_bounds = array<i64: 1, 16, 16, 4>}, {pipeline_mode = #tpu.pipeline_mode<synchronous>, transform_indices = @transform_1, window_bounds = array<i64: 3, 3, 4, 32>}, {pipeline_mode = #tpu.pipeline_mode<synchronous>, transform_indices = @transform_2, window_bounds = array<i64: 1, 32>}, {pipeline_mode = #tpu.pipeline_mode<synchronous>, transform_indices = @transform_3, window_bounds = array<i64: 1, 32>}, {transform_indices = @transform_4, window_bounds = array<i64: 1, 16, 16, 32>}]} {
    %cst = arith.constant 0.000000e+00 : f32
    %0 = vector.broadcast %cst : f32 to vector<18x18x4xf32>
    %c0 = arith.constant 0 : index
    %c0_0 = arith.constant 0 : index
    %c0_1 = arith.constant 0 : index
    %1 = vector.load %arg6[%c0, %c0_0, %c0_1] : memref<18x18x4xf32, #tpu.memory_space<vmem>>, vector<18x18x4xf32>
    tpu.vector_store %arg6[%c0, %c0_0, %c0_1], %0 {strides = array<i32>} : memref<18x18x4xf32, #tpu.memory_space<vmem>>, vector<18x18x4xf32>,
    %c0_2 = arith.constant 0 : index
    %c0_3 = arith.constant 0 : index
    %c0_4 = arith.constant 0 : index
    %c0_5 = arith.constant 0 : index
    %2 = vector.load %arg1[%c0_2, %c0_3, %c0_4, %c0_5] : memref<1x16x16x4xf32, #tpu.memory_space<vmem>>, vector<1x16x16x4xf32>
    %3 = vector.shape_cast %2 : vector<1x16x16x4xf32> to vector<16x16x4xf32>
    %c1 = arith.constant 1 : index
    %c1_6 = arith.constant 1 : index
    %c0_7 = arith.constant 0 : index
    %4 = vector.load %arg6[%c1, %c1_6, %c0_7] : memref<18x18x4xf32, #tpu.memory_space<vmem>>, vector<16x16x4xf32>
    tpu.vector_store %arg6[%c1, %c1_6, %c0_7], %3 {strides = array<i32>} : memref<18x18x4xf32, #tpu.memory_space<vmem>>, vector<16x16x4xf32>,
    %cst_8 = arith.constant 0.000000e+00 : f32
    %5 = vector.broadcast %cst_8 : f32 to vector<256x32xf32>
    %c0_9 = arith.constant 0 : index
    %c0_10 = arith.constant 0 : index
    %c0_11 = arith.constant 0 : index
    %6 = vector.load %arg6[%c0_9, %c0_10, %c0_11] : memref<18x18x4xf32, #tpu.memory_space<vmem>>, vector<16x16x4xf32>
    %7 = vector.shape_cast %6 : vector<16x16x4xf32> to vector<256x4xf32>
    %c0_12 = arith.constant 0 : index
    %c0_13 = arith.constant 0 : index
    %c0_14 = arith.constant 0 : index
    %c0_15 = arith.constant 0 : index
    %8 = vector.load %arg2[%c0_12, %c0_13, %c0_14, %c0_15] : memref<3x3x4x32xf32, #tpu.memory_space<vmem>>, vector<1x1x4x32xf32>
    %9 = vector.shape_cast %8 : vector<1x1x4x32xf32> to vector<4x32xf32>
    %cst_16 = arith.constant dense<0.000000e+00> : vector<256x32xf32>
    %10 = tpu.matmul %7, %9, %cst_16 {dimension_numbers = #tpu.dot_dimension_numbers<[1], [0], [0], [1], [0, 0, 1, 1], [], []>} : vector<256x4xf32>, vector<4x32xf32>, vector<256x32xf32> -> vector<256x32xf32>
    %11 = arith.addf %5, %10 : vector<256x32xf32>
    %c0_17 = arith.constant 0 : index
    %c1_18 = arith.constant 1 : index
    %c0_19 = arith.constant 0 : index
    %12 = vector.load %arg6[%c0_17, %c1_18, %c0_19] : memref<18x18x4xf32, #tpu.memory_space<vmem>>, vector<16x16x4xf32>
    %13 = vector.shape_cast %12 : vector<16x16x4xf32> to vector<256x4xf32>
    %c0_20 = arith.constant 0 : index
    %c1_21 = arith.constant 1 : index
    %c0_22 = arith.constant 0 : index
    %c0_23 = arith.constant 0 : index
    %14 = vector.load %arg2[%c0_20, %c1_21, %c0_22, %c0_23] : memref<3x3x4x32xf32, #tpu.memory_space<vmem>>, vector<1x1x4x32xf32>
    %15 = vector.shape_cast %14 : vector<1x1x4x32xf32> to vector<4x32xf32>
    %cst_24 = arith.constant dense<0.000000e+00> : vector<256x32xf32>
    %16 = tpu.matmul %13, %15, %cst_24 {dimension_numbers = #tpu.dot_dimension_numbers<[1], [0], [0], [1], [0, 0, 1, 1], [], []>} : vector<256x4xf32>, vector<4x32xf32>, vector<256x32xf32> -> vector<256x32xf32>
    %17 = arith.addf %11, %16 : vector<256x32xf32>
    %c0_25 = arith.constant 0 : index
    %c2 = arith.constant 2 : index
    %c0_26 = arith.constant 0 : index
    %18 = vector.load %arg6[%c0_25, %c2, %c0_26] : memref<18x18x4xf32, #tpu.memory_space<vmem>>, vector<16x16x4xf32>
    %19 = vector.shape_cast %18 : vector<16x16x4xf32> to vector<256x4xf32>
    %c0_27 = arith.constant 0 : index
    %c2_28 = arith.constant 2 : index
    %c0_29 = arith.constant 0 : index
    %c0_30 = arith.constant 0 : index
    %20 = vector.load %arg2[%c0_27, %c2_28, %c0_29, %c0_30] : memref<3x3x4x32xf32, #tpu.memory_space<vmem>>, vector<1x1x4x32xf32>
    %21 = vector.shape_cast %20 : vector<1x1x4x32xf32> to vector<4x32xf32>
    %cst_31 = arith.constant dense<0.000000e+00> : vector<256x32xf32>
    %22 = tpu.matmul %19, %21, %cst_31 {dimension_numbers = #tpu.dot_dimension_numbers<[1], [0], [0], [1], [0, 0, 1, 1], [], []>} : vector<256x4xf32>, vector<4x32xf32>, vector<256x32xf32> -> vector<256x32xf32>
    %23 = arith.addf %17, %22 : vector<256x32xf32>
    %c1_32 = arith.constant 1 : index
    %c0_33 = arith.constant 0 : index
    %c0_34 = arith.constant 0 : index
    %24 = vector.load %arg6[%c1_32, %c0_33, %c0_34] : memref<18x18x4xf32, #tpu.memory_space<vmem>>, vector<16x16x4xf32>
    %25 = vector.shape_cast %24 : vector<16x16x4xf32> to vector<256x4xf32>
    %c1_35 = arith.constant 1 : index
    %c0_36 = arith.constant 0 : index
    %c0_37 = arith.constant 0 : index
    %c0_38 = arith.constant 0 : index
    %26 = vector.load %arg2[%c1_35, %c0_36, %c0_37, %c0_38] : memref<3x3x4x32xf32, #tpu.memory_space<vmem>>, vector<1x1x4x32xf32>
    %27 = vector.shape_cast %26 : vector<1x1x4x32xf32> to vector<4x32xf32>
    %cst_39 = arith.constant dense<0.000000e+00> : vector<256x32xf32>
    %28 = tpu.matmul %25, %27, %cst_39 {dimension_numbers = #tpu.dot_dimension_numbers<[1], [0], [0], [1], [0, 0, 1, 1], [], []>} : vector<256x4xf32>, vector<4x32xf32>, vector<256x32xf32> -> vector<256x32xf32>
    %29 = arith.addf %23, %28 : vector<256x32xf32>
    %c1_40 = arith.constant 1 : index
    %c1_41 = arith.constant 1 : index
    %c0_42 = arith.constant 0 : index
    %30 = vector.load %arg6[%c1_40, %c1_41, %c0_42] : memref<18x18x4xf32, #tpu.memory_space<vmem>>, vector<16x16x4xf32>
    %31 = vector.shape_cast %30 : vector<16x16x4xf32> to vector<256x4xf32>
    %c1_43 = arith.constant 1 : index
    %c1_44 = arith.constant 1 : index
    %c0_45 = arith.constant 0 : index
    %c0_46 = arith.constant 0 : index
    %32 = vector.load %arg2[%c1_43, %c1_44, %c0_45, %c0_46] : memref<3x3x4x32xf32, #tpu.memory_space<vmem>>, vector<1x1x4x32xf32>
    %33 = vector.shape_cast %32 : vector<1x1x4x32xf32> to vector<4x32xf32>
    %cst_47 = arith.constant dense<0.000000e+00> : vector<256x32xf32>
    %34 = tpu.matmul %31, %33, %cst_47 {dimension_numbers = #tpu.dot_dimension_numbers<[1], [0], [0], [1], [0, 0, 1, 1], [], []>} : vector<256x4xf32>, vector<4x32xf32>, vector<256x32xf32> -> vector<256x32xf32>
    %35 = arith.addf %29, %34 : vector<256x32xf32>
    %c1_48 = arith.constant 1 : index
    %c2_49 = arith.constant 2 : index
    %c0_50 = arith.constant 0 : index
    %36 = vector.load %arg6[%c1_48, %c2_49, %c0_50] : memref<18x18x4xf32, #tpu.memory_space<vmem>>, vector<16x16x4xf32>
    %37 = vector.shape_cast %36 : vector<16x16x4xf32> to vector<256x4xf32>
    %c1_51 = arith.constant 1 : index
    %c2_52 = arith.constant 2 : index
    %c0_53 = arith.constant 0 : index
    %c0_54 = arith.constant 0 : index
    %38 = vector.load %arg2[%c1_51, %c2_52, %c0_53, %c0_54] : memref<3x3x4x32xf32, #tpu.memory_space<vmem>>, vector<1x1x4x32xf32>
    %39 = vector.shape_cast %38 : vector<1x1x4x32xf32> to vector<4x32xf32>
    %cst_55 = arith.constant dense<0.000000e+00> : vector<256x32xf32>
    %40 = tpu.matmul %37, %39, %cst_55 {dimension_numbers = #tpu.dot_dimension_numbers<[1], [0], [0], [1], [0, 0, 1, 1], [], []>} : vector<256x4xf32>, vector<4x32xf32>, vector<256x32xf32> -> vector<256x32xf32>
    %41 = arith.addf %35, %40 : vector<256x32xf32>
    %c2_56 = arith.constant 2 : index
    %c0_57 = arith.constant 0 : index
    %c0_58 = arith.constant 0 : index
    %42 = vector.load %arg6[%c2_56, %c0_57, %c0_58] : memref<18x18x4xf32, #tpu.memory_space<vmem>>, vector<16x16x4xf32>
    %43 = vector.shape_cast %42 : vector<16x16x4xf32> to vector<256x4xf32>
    %c2_59 = arith.constant 2 : index
    %c0_60 = arith.constant 0 : index
    %c0_61 = arith.constant 0 : index
    %c0_62 = arith.constant 0 : index
    %44 = vector.load %arg2[%c2_59, %c0_60, %c0_61, %c0_62] : memref<3x3x4x32xf32, #tpu.memory_space<vmem>>, vector<1x1x4x32xf32>
    %45 = vector.shape_cast %44 : vector<1x1x4x32xf32> to vector<4x32xf32>
    %cst_63 = arith.constant dense<0.000000e+00> : vector<256x32xf32>
    %46 = tpu.matmul %43, %45, %cst_63 {dimension_numbers = #tpu.dot_dimension_numbers<[1], [0], [0], [1], [0, 0, 1, 1], [], []>} : vector<256x4xf32>, vector<4x32xf32>, vector<256x32xf32> -> vector<256x32xf32>
    %47 = arith.addf %41, %46 : vector<256x32xf32>
    %c2_64 = arith.constant 2 : index
    %c1_65 = arith.constant 1 : index
    %c0_66 = arith.constant 0 : index
    %48 = vector.load %arg6[%c2_64, %c1_65, %c0_66] : memref<18x18x4xf32, #tpu.memory_space<vmem>>, vector<16x16x4xf32>
    %49 = vector.shape_cast %48 : vector<16x16x4xf32> to vector<256x4xf32>
    %c2_67 = arith.constant 2 : index
    %c1_68 = arith.constant 1 : index
    %c0_69 = arith.constant 0 : index
    %c0_70 = arith.constant 0 : index
    %50 = vector.load %arg2[%c2_67, %c1_68, %c0_69, %c0_70] : memref<3x3x4x32xf32, #tpu.memory_space<vmem>>, vector<1x1x4x32xf32>
    %51 = vector.shape_cast %50 : vector<1x1x4x32xf32> to vector<4x32xf32>
    %cst_71 = arith.constant dense<0.000000e+00> : vector<256x32xf32>
    %52 = tpu.matmul %49, %51, %cst_71 {dimension_numbers = #tpu.dot_dimension_numbers<[1], [0], [0], [1], [0, 0, 1, 1], [], []>} : vector<256x4xf32>, vector<4x32xf32>, vector<256x32xf32> -> vector<256x32xf32>
    %53 = arith.addf %47, %52 : vector<256x32xf32>
    %c2_72 = arith.constant 2 : index
    %c2_73 = arith.constant 2 : index
    %c0_74 = arith.constant 0 : index
    %54 = vector.load %arg6[%c2_72, %c2_73, %c0_74] : memref<18x18x4xf32, #tpu.memory_space<vmem>>, vector<16x16x4xf32>
    %55 = vector.shape_cast %54 : vector<16x16x4xf32> to vector<256x4xf32>
    %c2_75 = arith.constant 2 : index
    %c2_76 = arith.constant 2 : index
    %c0_77 = arith.constant 0 : index
    %c0_78 = arith.constant 0 : index
    %56 = vector.load %arg2[%c2_75, %c2_76, %c0_77, %c0_78] : memref<3x3x4x32xf32, #tpu.memory_space<vmem>>, vector<1x1x4x32xf32>
    %57 = vector.shape_cast %56 : vector<1x1x4x32xf32> to vector<4x32xf32>
    %cst_79 = arith.constant dense<0.000000e+00> : vector<256x32xf32>
    %58 = tpu.matmul %55, %57, %cst_79 {dimension_numbers = #tpu.dot_dimension_numbers<[1], [0], [0], [1], [0, 0, 1, 1], [], []>} : vector<256x4xf32>, vector<4x32xf32>, vector<256x32xf32> -> vector<256x32xf32>
    %59 = arith.addf %53, %58 : vector<256x32xf32>
    %c0_80 = arith.constant 0 : index
    %c0_81 = arith.constant 0 : index
    %60 = vector.load %arg3[%c0_80, %c0_81] : memref<1x32xf32, #tpu.memory_space<vmem>>, vector<1x32xf32>
    %61 = vector.shape_cast %60 : vector<1x32xf32> to vector<32xf32>
    %62 = vector.shape_cast %61 : vector<32xf32> to vector<1x32xf32>
    %63 = vector.broadcast %62 : vector<1x32xf32> to vector<256x32xf32>
    %64 = arith.mulf %59, %63 : vector<256x32xf32>
    %c0_82 = arith.constant 0 : index
    %c0_83 = arith.constant 0 : index
    %65 = vector.load %arg4[%c0_82, %c0_83] : memref<1x32xf32, #tpu.memory_space<vmem>>, vector<1x32xf32>
    %66 = vector.shape_cast %65 : vector<1x32xf32> to vector<32xf32>
    %67 = vector.shape_cast %66 : vector<32xf32> to vector<1x32xf32>
    %68 = vector.broadcast %67 : vector<1x32xf32> to vector<256x32xf32>
    %69 = arith.addf %64, %68 : vector<256x32xf32>
    %cst_84 = arith.constant 0.000000e+00 : f32
    %70 = vector.broadcast %cst_84 : f32 to vector<256x32xf32>
    %71 = arith.maximumf %69, %70 : vector<256x32xf32>
    %72 = vector.shape_cast %71 : vector<256x32xf32> to vector<16x16x32xf32>
    %c0_85 = arith.constant 0 : index
    %c0_86 = arith.constant 0 : index
    %c0_87 = arith.constant 0 : index
    %c0_88 = arith.constant 0 : index
    %73 = vector.load %arg5[%c0_85, %c0_86, %c0_87, %c0_88] : memref<1x16x16x32xf32, #tpu.memory_space<vmem>>, vector<1x16x16x32xf32>
    %74 = vector.shape_cast %73 : vector<1x16x16x32xf32> to vector<16x16x32xf32>
    %75 = vector.shape_cast %72 : vector<16x16x32xf32> to vector<1x16x16x32xf32>
    tpu.vector_store %arg5[%c0_85, %c0_86, %c0_87, %c0_88], %75 {strides = array<i32>} : memref<1x16x16x32xf32, #tpu.memory_space<vmem>>, vector<1x16x16x32xf32>,
    return
  }
  func.func @transform_0(%arg0: i32) -> (i32, i32, i32, i32) {
    %c0_i32 = arith.constant 0 : i32
    %c0_i32_0 = arith.constant 0 : i32
    %c0_i32_1 = arith.constant 0 : i32
    %c0_i32_2 = arith.constant 0 : i32
    return %arg0, %c0_i32, %c0_i32_0, %c0_i32_1 : i32, i32, i32, i32
  }
  func.func @transform_1(%arg0: i32) -> (i32, i32, i32, i32) {
    %c0_i32 = arith.constant 0 : i32
    %c0_i32_0 = arith.constant 0 : i32
    %c0_i32_1 = arith.constant 0 : i32
    %c0_i32_2 = arith.constant 0 : i32
    %c0_i32_3 = arith.constant 0 : i32
    return %c0_i32, %c0_i32_0, %c0_i32_1, %c0_i32_2 : i32, i32, i32, i32
  }
  func.func @transform_2(%arg0: i32) -> (i32, i32) {
    %c0_i32 = arith.constant 0 : i32
    %c0_i32_0 = arith.constant 0 : i32
    %c0_i32_1 = arith.constant 0 : i32
    return %c0_i32, %c0_i32_0 : i32, i32
  }
  func.func @transform_3(%arg0: i32) -> (i32, i32) {
    %c0_i32 = arith.constant 0 : i32
    %c0_i32_0 = arith.constant 0 : i32
    %c0_i32_1 = arith.constant 0 : i32
    return %c0_i32, %c0_i32_0 : i32, i32
  }
  func.func @transform_4(%arg0: i32) -> (i32, i32, i32, i32) {
    %c0_i32 = arith.constant 0 : i32
    %c0_i32_0 = arith.constant 0 : i32
    %c0_i32_1 = arith.constant 0 : i32
    %c0_i32_2 = arith.constant 0 : i32
    return %arg0, %c0_i32, %c0_i32_0, %c0_i32_1 : i32, i32, i32, i32
  }
}

</mosaic_0001>

<llo_original>
// kernel: conv_bn_relu_forward.1
$region0: #{conv_bn_relu_forward.1}
  #allocation0 [shape = 'u32[]', space=smem, size = 0x4, offset = 0x4, fixed_abs, tag = 'smem constant byte address 0x4 - core index']
  #allocation1 [shape = 'u32[144,128]{1,0:T(1,128)}', space=vmem, size = 0x12000, scoped, tag = 'internal scratch']
  #allocation2 [shape = 'f32[18,18,4]{2,1,0:T(8,128)}', space=vmem, size = 0x36000, scoped, tag = 'scratch operand']
  %s0 = inlined_call_operand.vmem [shape: f32[2,16,16,4], index: 0, kind: input, shape index: {}]
  %s1 = inlined_call_operand.vmem [shape: f32[3,3,4,32], index: 1, kind: input, shape index: {}]
  %s2 = inlined_call_operand.vmem [shape: f32[1,32], index: 2, kind: input, shape index: {}]
  %s3 = inlined_call_operand.vmem [shape: f32[1,32], index: 3, kind: input, shape index: {}]
  %s4 = inlined_call_operand.hbm [shape: f32[2,16,16,32], index: 4, kind: output, shape index: {}]
  %s5 = sld [smem:[#allocation0]]
  $region49: #{conv_bn_relu_forward.1} parent=0
    _
  %s7 = ssub.s32 1, %s5
  %s8 = scalar_select 0, %s7, %s5
  $region1: #{conv_bn_relu_forward.1} parent=0
    #allocation3 [shape = 'u8[262144]{0}', space=vmem, size = 0x40000, scoped, tag = 'output window, operand 0']
    #allocation4 [shape = 's32[2]{0}', space=sflag, size = 0x8, scoped, tag = 'scoped memory for conv_bn_relu_forward.1']
    %9 = vsyncpa [#allocation4], 0
    %s10 = scalar_lea.sflag [#allocation4], 1
    %11 = vsyncpa %s10, 0
    loop: start=0, step=1, limit=4
    $region2: #{conv_bn_relu_forward.1} parent=1 // loop_pre_header
      _
    $region3: #{conv_bn_relu_forward.1} parent=1 // loop_header
      %s13 = sphi 0, %s17
      %p14 = scmp.ge.s32.totalorder %s13, 4
      %s23 = sphi 0, %s25
      %s26 = sphi 0, %s23
      %s27 = sphi 0, %s26
      %s43 = sphi 0, %s27
      %s47 = sphi 0, %s47
      %s49 = sphi 0, %s47
      %s50 = sphi 0, %s49
      %s64 = sphi 0, %s50
      %s68 = sphi 0, %s68
      %s70 = sphi 0, %s68
      %s71 = sphi 0, %s70
      %s85 = sphi 0, %s71
      %s89 = sphi 0, %s89
      %s91 = sphi 0, %s89
      %s92 = sphi 0, %s91
      %s106 = sphi 0, %s92
      %s112 = sphi 0, %s114
      %s115 = sphi 0, %s112
      %s116 = sphi 0, %s115
      %s132 = sphi 0, %s116
    $region4: #{conv_bn_relu_forward.1} parent=1 // loop_header_branch
      %16 = sbr.rel (%p14) target = $region8
    $region5: #{conv_bn_relu_forward.1} parent=1 // loop_body
      %s18 = ssub.s32 %s13, 1
      %s19 = ssub.s32 %s13, 2
      %s20 = sadd.s32 %s13, 1
      %s21 = ssub.s32 %s13, %s20
      %p22 = scmp.eq.s32.totalorder %s21, 0
      %s24 = sadd.s32 %s23, 1
      %s25 = scalar_select %p22, %s23, %s24
      %p28 = pneg %p22
      %p29 = scmp.eq.s32.totalorder %s13, 1
      %p30 = por %p28, %p29
      %p31 = scmp.ne.s32.totalorder %s23, %s26
      %p32 = scmp.eq.s32.totalorder %s13, 0
      %p33 = por %p31, %p32
      %p34 = scmp.ne.s32.totalorder %s23, %s26
      %p35 = scmp.eq.s32.totalorder %s18, 1
      %p36 = por %p34, %p35
      %p37 = scmp.ne.s32.totalorder %s26, %s27
      %p38 = scmp.eq.s32.totalorder %s18, 0
      %p39 = por %p37, %p38
      %p40 = scmp.ne.s32.totalorder %s26, %s27
      %p41 = scmp.eq.s32.totalorder %s19, 1
      %p42 = por %p40, %p41
      %p44 = scmp.ne.s32.totalorder %s27, %s43
      %p45 = scmp.eq.s32.totalorder %s19, 0
      %p46 = por %p44, %p45
      %s48 = sadd.s32 %s47, 1
      %p51 = scmp.eq.s32.totalorder %s13, 1
      %p52 = scmp.ne.s32.totalorder %s47, %s49
      %p53 = scmp.eq.s32.totalorder %s13, 0
      %p54 = por %p52, %p53
      %p55 = scmp.ne.s32.totalorder %s47, %s49
      %p56 = scmp.eq.s32.totalorder %s18, 1
      %p57 = por %p55, %p56
      %p58 = scmp.ne.s32.totalorder %s49, %s50
      %p59 = scmp.eq.s32.totalorder %s18, 0
      %p60 = por %p58, %p59
      %p61 = scmp.ne.s32.totalorder %s49, %s50
      %p62 = scmp.eq.s32.totalorder %s19, 1
      %p63 = por %p61, %p62
      %p65 = scmp.ne.s32.totalorder %s50, %s64
      %p66 = scmp.eq.s32.totalorder %s19, 0
      %p67 = por %p65, %p66
      %s69 = sadd.s32 %s68, 1
      %p72 = scmp.eq.s32.totalorder %s13, 1
      %p73 = scmp.ne.s32.totalorder %s68, %s70
      %p74 = scmp.eq.s32.totalorder %s13, 0
      %p75 = por %p73, %p74
      %p76 = scmp.ne.s32.totalorder %s68, %s70
      %p77 = scmp.eq.s32.totalorder %s18, 1
      %p78 = por %p76, %p77
      %p79 = scmp.ne.s32.totalorder %s70, %s71
      %p80 = scmp.eq.s32.totalorder %s18, 0
      %p81 = por %p79, %p80
      %p82 = scmp.ne.s32.totalorder %s70, %s71
      %p83 = scmp.eq.s32.totalorder %s19, 1
      %p84 = por %p82, %p83
      %p86 = scmp.ne.s32.totalorder %s71, %s85
      %p87 = scmp.eq.s32.totalorder %s19, 0
      %p88 = por %p86, %p87
      %s90 = sadd.s32 %s89, 1
      %p93 = scmp.eq.s32.totalorder %s13, 1
      %p94 = scmp.ne.s32.totalorder %s89, %s91
      %p95 = scmp.eq.s32.totalorder %s13, 0
      %p96 = por %p94, %p95
      %p97 = scmp.ne.s32.totalorder %s89, %s91
      %p98 = scmp.eq.s32.totalorder %s18, 1
      %p99 = por %p97, %p98
      %p100 = scmp.ne.s32.totalorder %s91, %s92
      %p101 = scmp.eq.s32.totalorder %s18, 0
      %p102 = por %p100, %p101
      %p103 = scmp.ne.s32.totalorder %s91, %s92
      %p104 = scmp.eq.s32.totalorder %s19, 1
      %p105 = por %p103, %p104
      %p107 = scmp.ne.s32.totalorder %s92, %s106
      %p108 = scmp.eq.s32.totalorder %s19, 0
      %p109 = por %p107, %p108
      %s110 = ssub.s32 %s13, %s20
      %p111 = scmp.eq.s32.totalorder %s110, 0
      %s113 = sadd.s32 %s112, 1
      %s114 = scalar_select %p111, %s112, %s113
      %p117 = pneg %p111
      %p118 = scmp.eq.s32.totalorder %s13, 1
      %p119 = por %p117, %p118
      %p120 = scmp.ne.s32.totalorder %s112, %s115
      %p121 = scmp.eq.s32.totalorder %s13, 0
      %p122 = por %p120, %p121
      %p123 = scmp.ne.s32.totalorder %s112, %s115
      %p124 = scmp.eq.s32.totalorder %s18, 1
      %p125 = por %p123, %p124
      %p126 = scmp.ne.s32.totalorder %s115, %s116
      %p127 = scmp.eq.s32.totalorder %s18, 0
      %p128 = por %p126, %p127
      %p129 = scmp.ne.s32.totalorder %s115, %s116
      %p130 = scmp.eq.s32.totalorder %s19, 1
      %p131 = por %p129, %p130
      %p133 = scmp.ne.s32.totalorder %s116, %s132
      %p134 = scmp.eq.s32.totalorder %s19, 0
      %p135 = por %p133, %p134
      %p136 = scmp.le.s32.totalorder 1, %s13
      %p137 = scmp.lt.s32.totalorder %s13, 3
      %p138 = pnand %p136, %p137
      %p139 = pneg %p138
      // Predicated region
      $region9: #{conv_bn_relu_forward.1} parent=5 // pred_check
        _
      $region10: #{conv_bn_relu_forward.1} parent=5 // pred_check_branch
        %141 = sbr.rel (%p138) target = $region12
      $region11: #{conv_bn_relu_forward.1} parent=5 // pred_region
        %s142 = ssub.s32 %s13, 1
        // Predicated region
        $region13: #{conv_bn_relu_forward.1} parent=11 // pred_check
          %p143 = pneg %p60
        $region14: #{conv_bn_relu_forward.1} parent=11 // pred_check_branch
          %145 = sbr.rel (%p143) target = $region16
        $region15: #{conv_bn_relu_forward.1} parent=11 // pred_region
          _
        $region16: #{conv_bn_relu_forward.1} parent=11 // pred_fallthru
          _
        // Predicated region
        $region17: #{conv_bn_relu_forward.1} parent=11 // pred_check
          %p146 = pneg %p81
        $region18: #{conv_bn_relu_forward.1} parent=11 // pred_check_branch
          %148 = sbr.rel (%p146) target = $region20
        $region19: #{conv_bn_relu_forward.1} parent=11 // pred_region
          _
        $region20: #{conv_bn_relu_forward.1} parent=11 // pred_fallthru
          _
        // Predicated region
        $region21: #{conv_bn_relu_forward.1} parent=11 // pred_check
          %p149 = pneg %p102
        $region22: #{conv_bn_relu_forward.1} parent=11 // pred_check_branch
          %151 = sbr.rel (%p149) target = $region24
        $region23: #{conv_bn_relu_forward.1} parent=11 // pred_region
          _
        $region24: #{conv_bn_relu_forward.1} parent=11 // pred_fallthru
          _
      $region12: #{conv_bn_relu_forward.1} parent=5 // pred_fallthru
        _
      %p152 = scmp.lt.s32.totalorder %s13, 2
      // Predicated region
      $region25: #{conv_bn_relu_forward.1} parent=5 // pred_check
        %p153 = pneg %p152
      $region26: #{conv_bn_relu_forward.1} parent=5 // pred_check_branch
        %155 = sbr.rel (%p153) target = $region28
      $region27: #{conv_bn_relu_forward.1} parent=5 // pred_region
        // Predicated region
        $region29: #{conv_bn_relu_forward.1} parent=27 // pred_check
          %p156 = pneg %p33
        $region30: #{conv_bn_relu_forward.1} parent=27 // pred_check_branch
          %158 = sbr.rel (%p156) target = $region32
        $region31: #{conv_bn_relu_forward.1} parent=27 // pred_region
          %p159 = scmp.lt.s32.totalorder %s13, 1
          %s160 = scalar_select %p159, %s13, 1
          %s161 = smul.addr %s160, 32
          %s162 = smul.addr %s161, 8
          %s163 = scalar_lea.vmem %s0, %s162
        $region32: #{conv_bn_relu_forward.1} parent=27 // pred_fallthru
          _
      $region28: #{conv_bn_relu_forward.1} parent=5 // pred_fallthru
        _
      %p164 = scmp.le.s32.totalorder 1, %s13
      %p165 = scmp.lt.s32.totalorder %s13, 3
      %p166 = pnand %p164, %p165
      %p167 = pneg %p166
      // Predicated region
      $region33: #{conv_bn_relu_forward.1} parent=5 // pred_check
        _
      $region34: #{conv_bn_relu_forward.1} parent=5 // pred_check_branch
        %169 = sbr.rel (%p166) target = $region36
      $region35: #{conv_bn_relu_forward.1} parent=5 // pred_region
        %s170 = ssub.s32 %s13, 1
        %p171 = scmp.lt.s32.totalorder %s18, 1
        %s172 = scalar_select %p171, %s18, 1
        %s173 = smul.addr %s172, 32
        %s174 = smul.addr %s173, 8
        %s175 = scalar_lea.vmem %s0, %s174
        %p176 = pneg %p39
        %p177 = pneg %p36
        %p178 = pneg %p60
        %p179 = pneg %p57
        %p180 = pneg %p81
        %p181 = pneg %p78
        %p182 = pneg %p102
        %p183 = pneg %p99
        %p184 = pneg %p128
        %p185 = pneg %p125
        %s186 = sand.u32 %s115, 1
        %s187 = scalar_lea.sflag [#allocation4], %s186
        %s188 = sand.u32 %s115, 1
        %s189 = smul.addr %s188, 256
        %s190 = scalar_lea.vmem [#allocation3], %s189
        %p191 = scmp.lt.s32.totalorder %s18, 1
        %s192 = scalar_select %p191, %s18, 1
        %s193 = smul.addr %s192, 32
        %s194 = smul.addr %s193, 8
        %s195 = scalar_lea.vmem %s0, %s194
        %vm196 = vcmask 31744
        %197 = vst.msk [vmem:[#allocation2] sm:$0xff] %vm196, 0.0
        %198 = vst.msk [vmem:[#allocation2 + $0x8] sm:$0xff] %vm196, 0.0
        %vm199 = vcmask 25600
        %200 = vst.msk [vmem:[#allocation2 + $0x10] sm:$0x3] %vm199, 0.0
        %201 = vst.msk [vmem:[#allocation2 + $0x18] sm:$0xff] %vm196, 0.0
        %202 = vst.msk [vmem:[#allocation2 + $0x20] sm:$0xff] %vm196, 0.0
        %203 = vst.msk [vmem:[#allocation2 + $0x28] sm:$0x3] %vm199, 0.0
        %204 = vst.msk [vmem:[#allocation2 + $0x30] sm:$0xff] %vm196, 0.0
        %205 = vst.msk [vmem:[#allocation2 + $0x38] sm:$0xff] %vm196, 0.0
        %206 = vst.msk [vmem:[#allocation2 + $0x40] sm:$0x3] %vm199, 0.0
        %207 = vst.msk [vmem:[#allocation2 + $0x48] sm:$0xff] %vm196, 0.0
        %208 = vst.msk [vmem:[#allocation2 + $0x50] sm:$0xff] %vm196, 0.0
        %209 = vst.msk [vmem:[#allocation2 + $0x58] sm:$0x3] %vm199, 0.0
        %210 = vst.msk [vmem:[#allocation2 + $0x60] sm:$0xff] %vm196, 0.0
        %211 = vst.msk [vmem:[#allocation2 + $0x68] sm:$0xff] %vm196, 0.0
        %212 = vst.msk [vmem:[#allocation2 + $0x70] sm:$0x3] %vm199, 0.0
        %213 = vst.msk [vmem:[#allocation2 + $0x78] sm:$0xff] %vm196, 0.0
        %214 = vst.msk [vmem:[#allocation2 + $0x80] sm:$0xff] %vm196, 0.0
        %215 = vst.msk [vmem:[#allocation2 + $0x88] sm:$0x3] %vm199, 0.0
        %216 = vst.msk [vmem:[#allocation2 + $0x90] sm:$0xff] %vm196, 0.0
        %217 = vst.msk [vmem:[#allocation2 + $0x98] sm:$0xff] %vm196, 0.0
        %218 = vst.msk [vmem:[#allocation2 + $0xa0] sm:$0x3] %vm199, 0.0
        %219 = vst.msk [vmem:[#allocation2 + $0xa8] sm:$0xff] %vm196, 0.0
        %220 = vst.msk [vmem:[#allocation2 + $0xb0] sm:$0xff] %vm196, 0.0
        %221 = vst.msk [vmem:[#allocation2 + $0xb8] sm:$0x3] %vm199, 0.0
        %222 = vst.msk [vmem:[#allocation2 + $0xc0] sm:$0xff] %vm196, 0.0
        %223 = vst.msk [vmem:[#allocation2 + $0xc8] sm:$0xff] %vm196, 0.0
        %224 = vst.msk [vmem:[#allocation2 + $0xd0] sm:$0x3] %vm199, 0.0
        %225 = vst.msk [vmem:[#allocation2 + $0xd8] sm:$0xff] %vm196, 0.0
        %226 = vst.msk [vmem:[#allocation2 + $0xe0] sm:$0xff] %vm196, 0.0
        %227 = vst.msk [vmem:[#allocation2 + $0xe8] sm:$0x3] %vm199, 0.0
        %228 = vst.msk [vmem:[#allocation2 + $0xf0] sm:$0xff] %vm196, 0.0
        %229 = vst.msk [vmem:[#allocation2 + $0xf8] sm:$0xff] %vm196, 0.0
        %230 = vst.msk [vmem:[#allocation2 + $0x100] sm:$0x3] %vm199, 0.0
        %231 = vst.msk [vmem:[#allocation2 + $0x108] sm:$0xff] %vm196, 0.0
        %232 = vst.msk [vmem:[#allocation2 + $0x110] sm:$0xff] %vm196, 0.0
        %233 = vst.msk [vmem:[#allocation2 + $0x118] sm:$0x3] %vm199, 0.0
        %234 = vst.msk [vmem:[#allocation2 + $0x120] sm:$0xff] %vm196, 0.0
        %235 = vst.msk [vmem:[#allocation2 + $0x128] sm:$0xff] %vm196, 0.0
        %236 = vst.msk [vmem:[#allocation2 + $0x130] sm:$0x3] %vm199, 0.0
        %237 = vst.msk [vmem:[#allocation2 + $0x138] sm:$0xff] %vm196, 0.0
        %238 = vst.msk [vmem:[#allocation2 + $0x140] sm:$0xff] %vm196, 0.0
        %239 = vst.msk [vmem:[#allocation2 + $0x148] sm:$0x3] %vm199, 0.0
        %240 = vst.msk [vmem:[#allocation2 + $0x150] sm:$0xff] %vm196, 0.0
        %241 = vst.msk [vmem:[#allocation2 + $0x158] sm:$0xff] %vm196, 0.0
        %242 = vst.msk [vmem:[#allocation2 + $0x160] sm:$0x3] %vm199, 0.0
        %243 = vst.msk [vmem:[#allocation2 + $0x168] sm:$0xff] %vm196, 0.0
        %244 = vst.msk [vmem:[#allocation2 + $0x170] sm:$0xff] %vm196, 0.0
        %245 = vst.msk [vmem:[#allocation2 + $0x178] sm:$0x3] %vm199, 0.0
        %246 = vst.msk [vmem:[#allocation2 + $0x180] sm:$0xff] %vm196, 0.0
        %247 = vst.msk [vmem:[#allocation2 + $0x188] sm:$0xff] %vm196, 0.0
        %248 = vst.msk [vmem:[#allocation2 + $0x190] sm:$0x3] %vm199, 0.0
        %249 = vst.msk [vmem:[#allocation2 + $0x198] sm:$0xff] %vm196, 0.0
        %250 = vst.msk [vmem:[#allocation2 + $0x1a0] sm:$0xff] %vm196, 0.0
        %251 = vst.msk [vmem:[#allocation2 + $0x1a8] sm:$0x3] %vm199, 0.0
        %v252 = vld [vmem:[%s195] sm:$0xff]
        %v253 = vld [vmem:[%s195 + $0x8] sm:$0xff]
        %v254 = vld [vmem:[%s195 + $0x10] sm:$0xff]
        %v255 = vld [vmem:[%s195 + $0x18] sm:$0xff]
        %v256 = vld [vmem:[%s195 + $0x20] sm:$0xff]
        %v257 = vld [vmem:[%s195 + $0x28] sm:$0xff]
        %v258 = vld [vmem:[%s195 + $0x30] sm:$0xff]
        %v259 = vld [vmem:[%s195 + $0x38] sm:$0xff]
        %v260 = vld [vmem:[%s195 + $0x40] sm:$0xff]
        %v261 = vld [vmem:[%s195 + $0x48] sm:$0xff]
        %v262 = vld [vmem:[%s195 + $0x50] sm:$0xff]
        %v263 = vld [vmem:[%s195 + $0x58] sm:$0xff]
        %v264 = vld [vmem:[%s195 + $0x60] sm:$0xff]
        %v265 = vld [vmem:[%s195 + $0x68] sm:$0xff]
        %v266 = vld [vmem:[%s195 + $0x70] sm:$0xff]
        %v267 = vld [vmem:[%s195 + $0x78] sm:$0xff]
        %v268 = vld [vmem:[%s195 + $0x80] sm:$0xff]
        %v269 = vld [vmem:[%s195 + $0x88] sm:$0xff]
        %v270 = vld [vmem:[%s195 + $0x90] sm:$0xff]
        %v271 = vld [vmem:[%s195 + $0x98] sm:$0xff]
        %v272 = vld [vmem:[%s195 + $0xa0] sm:$0xff]
        %v273 = vld [vmem:[%s195 + $0xa8] sm:$0xff]
        %v274 = vld [vmem:[%s195 + $0xb0] sm:$0xff]
        %v275 = vld [vmem:[%s195 + $0xb8] sm:$0xff]
        %v276 = vld [vmem:[%s195 + $0xc0] sm:$0xff]
        %v277 = vld [vmem:[%s195 + $0xc8] sm:$0xff]
        %v278 = vld [vmem:[%s195 + $0xd0] sm:$0xff]
        %v279 = vld [vmem:[%s195 + $0xd8] sm:$0xff]
        %v280 = vld [vmem:[%s195 + $0xe0] sm:$0xff]
        %v281 = vld [vmem:[%s195 + $0xe8] sm:$0xff]
        %v282 = vld [vmem:[%s195 + $0xf0] sm:$0xff]
        %v283 = vld [vmem:[%s195 + $0xf8] sm:$0xff]
        %s284 = scalar_lea.vmem [#allocation2], 24
        %285 = vst.msk [vmem:[%s284 + $0x1] sm:$0xff] %vm196, %v252
        %286 = vst.msk [vmem:[%s284 + $0x9] sm:$0xff] %vm196, %v253
        %287 = vst.msk [vmem:[%s284 + $0x19] sm:$0xff] %vm196, %v254
        %288 = vst.msk [vmem:[%s284 + $0x21] sm:$0xff] %vm196, %v255
        %289 = vst.msk [vmem:[%s284 + $0x31] sm:$0xff] %vm196, %v256
        %290 = vst.msk [vmem:[%s284 + $0x39] sm:$0xff] %vm196, %v257
        %291 = vst.msk [vmem:[%s284 + $0x49] sm:$0xff] %vm196, %v258
        %292 = vst.msk [vmem:[%s284 + $0x51] sm:$0xff] %vm196, %v259
        %293 = vst.msk [vmem:[%s284 + $0x61] sm:$0xff] %vm196, %v260
        %294 = vst.msk [vmem:[%s284 + $0x69] sm:$0xff] %vm196, %v261
        %295 = vst.msk [vmem:[%s284 + $0x79] sm:$0xff] %vm196, %v262
        %296 = vst.msk [vmem:[%s284 + $0x81] sm:$0xff] %vm196, %v263
        %297 = vst.msk [vmem:[%s284 + $0x91] sm:$0xff] %vm196, %v264
        %298 = vst.msk [vmem:[%s284 + $0x99] sm:$0xff] %vm196, %v265
        %299 = vst.msk [vmem:[%s284 + $0xa9] sm:$0xff] %vm196, %v266
        %300 = vst.msk [vmem:[%s284 + $0xb1] sm:$0xff] %vm196, %v267
        %301 = vst.msk [vmem:[%s284 + $0xc1] sm:$0xff] %vm196, %v268
        %302 = vst.msk [vmem:[%s284 + $0xc9] sm:$0xff] %vm196, %v269
        %303 = vst.msk [vmem:[%s284 + $0xd9] sm:$0xff] %vm196, %v270
        %304 = vst.msk [vmem:[%s284 + $0xe1] sm:$0xff] %vm196, %v271
        %305 = vst.msk [vmem:[%s284 + $0xf1] sm:$0xff] %vm196, %v272
        %306 = vst.msk [vmem:[%s284 + $0xf9] sm:$0xff] %vm196, %v273
        %307 = vst.msk [vmem:[%s284 + $0x109] sm:$0xff] %vm196, %v274
        %308 = vst.msk [vmem:[%s284 + $0x111] sm:$0xff] %vm196, %v275
        %309 = vst.msk [vmem:[%s284 + $0x121] sm:$0xff] %vm196, %v276
        %310 = vst.msk [vmem:[%s284 + $0x129] sm:$0xff] %vm196, %v277
        %311 = vst.msk [vmem:[%s284 + $0x139] sm:$0xff] %vm196, %v278
        %312 = vst.msk [vmem:[%s284 + $0x141] sm:$0xff] %vm196, %v279
        %313 = vst.msk [vmem:[%s284 + $0x151] sm:$0xff] %vm196, %v280
        %314 = vst.msk [vmem:[%s284 + $0x159] sm:$0xff] %vm196, %v281
        %315 = vst.msk [vmem:[%s284 + $0x169] sm:$0xff] %vm196, %v282
        %316 = vst.msk [vmem:[%s284 + $0x171] sm:$0xff] %vm196, %v283
        %v317 = vld [vmem:[#allocation2] sm:$0xff]
        %v318 = vld [vmem:[#allocation2 + $0x8] sm:$0xff]
        %v319 = vld [vmem:[#allocation2 + $0x18] sm:$0xff]
        %v320 = vld [vmem:[#allocation2 + $0x20] sm:$0xff]
        %v321 = vld [vmem:[#allocation2 + $0x30] sm:$0xff]
        %v322 = vld [vmem:[#allocation2 + $0x38] sm:$0xff]
        %v323 = vld [vmem:[#allocation2 + $0x48] sm:$0xff]
        %v324 = vld [vmem:[#allocation2 + $0x50] sm:$0xff]
        %v325 = vld [vmem:[#allocation2 + $0x60] sm:$0xff]
        %v326 = vld [vmem:[#allocation2 + $0x68] sm:$0xff]
        %v327 = vld [vmem:[#allocation2 + $0x78] sm:$0xff]
        %v328 = vld [vmem:[#allocation2 + $0x80] sm:$0xff]
        %v329 = vld [vmem:[#allocation2 + $0x90] sm:$0xff]
        %v330 = vld [vmem:[#allocation2 + $0x98] sm:$0xff]
        %v331 = vld [vmem:[#allocation2 + $0xa8] sm:$0xff]
        %v332 = vld [vmem:[#allocation2 + $0xb0] sm:$0xff]
        %v333 = vld [vmem:[#allocation2 + $0xc0] sm:$0xff]
        %v334 = vld [vmem:[#allocation2 + $0xc8] sm:$0xff]
        %v335 = vld [vmem:[#allocation2 + $0xd8] sm:$0xff]
        %v336 = vld [vmem:[#allocation2 + $0xe0] sm:$0xff]
        %v337 = vld [vmem:[#allocation2 + $0xf0] sm:$0xff]
        %v338 = vld [vmem:[#allocation2 + $0xf8] sm:$0xff]
        %v339 = vld [vmem:[#allocation2 + $0x108] sm:$0xff]
        %v340 = vld [vmem:[#allocation2 + $0x110] sm:$0xff]
        %v341 = vld [vmem:[#allocation2 + $0x120] sm:$0xff]
        %v342 = vld [vmem:[#allocation2 + $0x128] sm:$0xff]
        %v343 = vld [vmem:[#allocation2 + $0x138] sm:$0xff]
        %v344 = vld [vmem:[#allocation2 + $0x140] sm:$0xff]
        %v345 = vld [vmem:[#allocation2 + $0x150] sm:$0xff]
        %v346 = vld [vmem:[#allocation2 + $0x158] sm:$0xff]
        %v347 = vld [vmem:[#allocation2 + $0x168] sm:$0xff]
        %v348 = vld [vmem:[#allocation2 + $0x170] sm:$0xff]
        %v349 = vld [vmem:[%s1] sm:$0xf]
        %v350 = vld [vmem:[#allocation2 + $0x1] sm:$0xff]
        %v351 = vld [vmem:[#allocation2 + $0x9] sm:$0xff]
        %v352 = vld [vmem:[#allocation2 + $0x19] sm:$0xff]
        %v353 = vld [vmem:[#allocation2 + $0x21] sm:$0xff]
        %v354 = vld [vmem:[#allocation2 + $0x31] sm:$0xff]
        %v355 = vld [vmem:[#allocation2 + $0x39] sm:$0xff]
        %v356 = vld [vmem:[#allocation2 + $0x49] sm:$0xff]
        %v357 = vld [vmem:[#allocation2 + $0x51] sm:$0xff]
        %v358 = vld [vmem:[#allocation2 + $0x61] sm:$0xff]
        %v359 = vld [vmem:[#allocation2 + $0x69] sm:$0xff]
        %v360 = vld [vmem:[#allocation2 + $0x79] sm:$0xff]
        %v361 = vld [vmem:[#allocation2 + $0x81] sm:$0xff]
        %v362 = vld [vmem:[#allocation2 + $0x91] sm:$0xff]
        %v363 = vld [vmem:[#allocation2 + $0x99] sm:$0xff]
        %v364 = vld [vmem:[#allocation2 + $0xa9] sm:$0xff]
        %v365 = vld [vmem:[#allocation2 + $0xb1] sm:$0xff]
        %v366 = vld [vmem:[#allocation2 + $0xc1] sm:$0xff]
        %v367 = vld [vmem:[#allocation2 + $0xc9] sm:$0xff]
        %v368 = vld [vmem:[#allocation2 + $0xd9] sm:$0xff]
        %v369 = vld [vmem:[#allocation2 + $0xe1] sm:$0xff]
        %v370 = vld [vmem:[#allocation2 + $0xf1] sm:$0xff]
        %v371 = vld [vmem:[#allocation2 + $0xf9] sm:$0xff]
        %v372 = vld [vmem:[#allocation2 + $0x109] sm:$0xff]
        %v373 = vld [vmem:[#allocation2 + $0x111] sm:$0xff]
        %v374 = vld [vmem:[#allocation2 + $0x121] sm:$0xff]
        %v375 = vld [vmem:[#allocation2 + $0x129] sm:$0xff]
        %v376 = vld [vmem:[#allocation2 + $0x139] sm:$0xff]
        %v377 = vld [vmem:[#allocation2 + $0x141] sm:$0xff]
        %v378 = vld [vmem:[#allocation2 + $0x151] sm:$0xff]
        %v379 = vld [vmem:[#allocation2 + $0x159] sm:$0xff]
        %v380 = vld [vmem:[#allocation2 + $0x169] sm:$0xff]
        %v381 = vld [vmem:[#allocation2 + $0x171] sm:$0xff]
        %s382 = scalar_lea.vmem %s1, 4
        %v383 = vld [vmem:[%s382] sm:$0xf]
        %v385 = vsel %vm196, %v350, 0
        %v388 = vsel %vm196, %v351, 0
        %v391 = vsel %vm196, %v352, 0
        %v394 = vsel %vm196, %v353, 0
        %v397 = vsel %vm196, %v354, 0
        %v400 = vsel %vm196, %v355, 0
        %v403 = vsel %vm196, %v356, 0
        %v406 = vsel %vm196, %v357, 0
        %v409 = vsel %vm196, %v358, 0
        %v412 = vsel %vm196, %v359, 0
        %v415 = vsel %vm196, %v360, 0
        %v418 = vsel %vm196, %v361, 0
        %v421 = vsel %vm196, %v362, 0
        %v424 = vsel %vm196, %v363, 0
        %v427 = vsel %vm196, %v364, 0
        %v430 = vsel %vm196, %v365, 0
        %v433 = vsel %vm196, %v366, 0
        %v436 = vsel %vm196, %v367, 0
        %v439 = vsel %vm196, %v368, 0
        %v442 = vsel %vm196, %v369, 0
        %v445 = vsel %vm196, %v370, 0
        %v448 = vsel %vm196, %v371, 0
        %v451 = vsel %vm196, %v372, 0
        %v454 = vsel %vm196, %v373, 0
        %v457 = vsel %vm196, %v374, 0
        %v460 = vsel %vm196, %v375, 0
        %v463 = vsel %vm196, %v376, 0
        %v466 = vsel %vm196, %v377, 0
        %v469 = vsel %vm196, %v378, 0
        %v472 = vsel %vm196, %v379, 0
        %v475 = vsel %vm196, %v380, 0
        %v478 = vsel %vm196, %v381, 0
        %vm480 = vcmask 1043456
        %v482 = vsel %vm480, %v383, 0
        %484 = vmatprep.subr.mxu0 0.0
        %485 = vmatpush1.msra.mxu0 %v482
        %486 = vmatprep.subr.mxu0 0.0
        %487 = vmatpush1.msra.mxu0 0.0
        %488 = vmatprep.subr.mxu0 0.0
        %489 = vmatpush1.msra.mxu0 0.0
        %490 = vmatprep.subr.mxu0 0.0
        %491 = vmatpush1.msra.mxu0 0.0
        %492 = vmatprep.subr.mxu0 0.0
        %493 = vmatpush1.msra.mxu0 0.0
        %494 = vmatprep.subr.mxu0 0.0
        %495 = vmatpush1.msra.mxu0 0.0
        %496 = vmatprep.subr.mxu0 0.0
        %497 = vmatpush1.msra.mxu0 0.0
        %498 = vmatprep.subr.mxu0 0.0
        %499 = vmatpush1.msra.mxu0 0.0
        %500 = vmatprep.subr.mxu0 0.0
        %501 = vmatpush1.msra.mxu0 0.0
        %502 = vmatprep.subr.mxu0 0.0
        %503 = vmatpush1.msra.mxu0 0.0
        %504 = vmatprep.subr.mxu0 0.0
        %505 = vmatpush1.msra.mxu0 0.0
        %506 = vmatprep.subr.mxu0 0.0
        %507 = vmatpush1.msra.mxu0 0.0
        %508 = vmatprep.subr.mxu0 0.0
        %509 = vmatpush1.msra.mxu0 0.0
        %510 = vmatprep.subr.mxu0 0.0
        %511 = vmatpush1.msra.mxu0 0.0
        %512 = vmatprep.subr.mxu0 0.0
        %513 = vmatpush1.msra.mxu0 0.0
        %514 = vmatprep.subr.mxu0 0.0
        %515 = vmatpush1.msra.mxu0 0.0
        %516 = vmatprep.subr.mxu0 0.0
        %517 = vmatpush1.msra.mxu0 0.0
        %518 = vmatprep.subr.mxu0 0.0
        %519 = vmatpush1.msra.mxu0 0.0
        %520 = vmatprep.subr.mxu0 0.0
        %521 = vmatpush1.msra.mxu0 0.0
        %522 = vmatprep.subr.mxu0 0.0
        %523 = vmatpush1.msra.mxu0 0.0
        %524 = vmatprep.subr.mxu0 0.0
        %525 = vmatpush1.msra.mxu0 0.0
        %526 = vmatprep.subr.mxu0 0.0
        %527 = vmatpush1.msra.mxu0 0.0
        %528 = vmatprep.subr.mxu0 0.0
        %529 = vmatpush1.msra.mxu0 0.0
        %530 = vmatprep.subr.mxu0 0.0
        %531 = vmatpush1.msra.mxu0 0.0
        %532 = vmatprep.subr.mxu0 0.0
        %533 = vmatpush1.msra.mxu0 0.0
        %534 = vmatprep.subr.mxu0 0.0
        %535 = vmatpush1.msra.mxu0 0.0
        %536 = vmatprep.subr.mxu0 0.0
        %537 = vmatpush1.msra.mxu0 0.0
        %538 = vmatprep.subr.mxu0 0.0
        %539 = vmatpush1.msra.mxu0 0.0
        %540 = vmatprep.subr.mxu0 0.0
        %541 = vmatpush1.msra.mxu0 0.0
        %542 = vmatprep.subr.mxu0 0.0
        %543 = vmatpush1.msra.mxu0 0.0
        %544 = vmatprep.subr.mxu0 0.0
        %545 = vmatpush1.msra.mxu0 0.0
        %546 = vmatprep.subr.mxu0 0.0
        %547 = vmatpush1.msra.mxu0 0.0
        %548 = vmatprep.mubr.f32.mxu0 0.0
        %549 = vmatmul.mubr.f32.gmra.mrb[0].mxu0 %v385
        %v550 = vpop.f32.mrb[0].mxu0
        %v551 = vadd.f32 0.0, %v550
        %v552 = vpop.f32.mrb[0].mxu0
        %553 = vmatprep.mubr.f32.mxu0 0.0
        %554 = vmatmul.mubr.f32.gmra.mrb[0].mxu0 %v388
        %v555 = vpop.f32.mrb[0].mxu0
        %v556 = vadd.f32 0.0, %v555
        %v557 = vpop.f32.mrb[0].mxu0
        %558 = vmatprep.mubr.f32.mxu0 0.0
        %559 = vmatmul.mubr.f32.gmra.mrb[0].mxu0 %v391
        %v560 = vpop.f32.mrb[0].mxu0
        %v561 = vadd.f32 0.0, %v560
        %v562 = vpop.f32.mrb[0].mxu0
        %563 = vmatprep.mubr.f32.mxu0 0.0
        %564 = vmatmul.mubr.f32.gmra.mrb[0].mxu0 %v394
        %v565 = vpop.f32.mrb[0].mxu0
        %v566 = vadd.f32 0.0, %v565
        %v567 = vpop.f32.mrb[0].mxu0
        %568 = vmatprep.mubr.f32.mxu0 0.0
        %569 = vmatmul.mubr.f32.gmra.mrb[0].mxu0 %v397
        %v570 = vpop.f32.mrb[0].mxu0
        %v571 = vadd.f32 0.0, %v570
        %v572 = vpop.f32.mrb[0].mxu0
        %573 = vmatprep.mubr.f32.mxu0 0.0
        %574 = vmatmul.mubr.f32.gmra.mrb[0].mxu0 %v400
        %v575 = vpop.f32.mrb[0].mxu0
        %v576 = vadd.f32 0.0, %v575
        %v577 = vpop.f32.mrb[0].mxu0
        %578 = vmatprep.mubr.f32.mxu0 0.0
        %579 = vmatmul.mubr.f32.gmra.mrb[0].mxu0 %v403
        %v580 = vpop.f32.mrb[0].mxu0
        %v581 = vadd.f32 0.0, %v580
        %v582 = vpop.f32.mrb[0].mxu0
        %583 = vmatprep.mubr.f32.mxu0 0.0
        %584 = vmatmul.mubr.f32.gmra.mrb[0].mxu0 %v406
        %v585 = vpop.f32.mrb[0].mxu0
        %v586 = vadd.f32 0.0, %v585
        %v587 = vpop.f32.mrb[0].mxu0
        %588 = vmatprep.mubr.f32.mxu0 0.0
        %589 = vmatmul.mubr.f32.gmra.mrb[0].mxu0 %v409
        %v590 = vpop.f32.mrb[0].mxu0
        %v591 = vadd.f32 0.0, %v590
        %v592 = vpop.f32.mrb[0].mxu0
        %593 = vmatprep.mubr.f32.mxu0 0.0
        %594 = vmatmul.mubr.f32.gmra.mrb[0].mxu0 %v412
        %v595 = vpop.f32.mrb[0].mxu0
        %v596 = vadd.f32 0.0, %v595
        %v597 = vpop.f32.mrb[0].mxu0
        %598 = vmatprep.mubr.f32.mxu0 0.0
        %599 = vmatmul.mubr.f32.gmra.mrb[0].mxu0 %v415
        %v600 = vpop.f32.mrb[0].mxu0
        %v601 = vadd.f32 0.0, %v600
        %v602 = vpop.f32.mrb[0].mxu0
        %603 = vmatprep.mubr.f32.mxu0 0.0
        %604 = vmatmul.mubr.f32.gmra.mrb[0].mxu0 %v418
        %v605 = vpop.f32.mrb[0].mxu0
        %v606 = vadd.f32 0.0, %v605
        %v607 = vpop.f32.mrb[0].mxu0
        %608 = vmatprep.mubr.f32.mxu0 0.0
        %609 = vmatmul.mubr.f32.gmra.mrb[0].mxu0 %v421
        %v610 = vpop.f32.mrb[0].mxu0
        %v611 = vadd.f32 0.0, %v610
        %v612 = vpop.f32.mrb[0].mxu0
        %613 = vmatprep.mubr.f32.mxu0 0.0
        %614 = vmatmul.mubr.f32.gmra.mrb[0].mxu0 %v424
        %v615 = vpop.f32.mrb[0].mxu0
        %v616 = vadd.f32 0.0, %v615
        %v617 = vpop.f32.mrb[0].mxu0
        %618 = vmatprep.mubr.f32.mxu0 0.0
        %619 = vmatmul.mubr.f32.gmra.mrb[0].mxu0 %v427
        %v620 = vpop.f32.mrb[0].mxu0
        %v621 = vadd.f32 0.0, %v620
        %v622 = vpop.f32.mrb[0].mxu0
        %623 = vmatprep.mubr.f32.mxu0 0.0
        %624 = vmatmul.mubr.f32.gmra.mrb[0].mxu0 %v430
        %v625 = vpop.f32.mrb[0].mxu0
        %v626 = vadd.f32 0.0, %v625
        %v627 = vpop.f32.mrb[0].mxu0
        %628 = vmatprep.mubr.f32.mxu0 0.0
        %629 = vmatmul.mubr.f32.gmra.mrb[0].mxu0 %v433
        %v630 = vpop.f32.mrb[0].mxu0
        %v631 = vadd.f32 0.0, %v630
        %v632 = vpop.f32.mrb[0].mxu0
        %633 = vmatprep.mubr.f32.mxu0 0.0
        %634 = vmatmul.mubr.f32.gmra.mrb[0].mxu0 %v436
        %v635 = vpop.f32.mrb[0].mxu0
        %v636 = vadd.f32 0.0, %v635
        %v637 = vpop.f32.mrb[0].mxu0
        %638 = vmatprep.mubr.f32.mxu0 0.0
        %639 = vmatmul.mubr.f32.gmra.mrb[0].mxu0 %v439
        %v640 = vpop.f32.mrb[0].mxu0
        %v641 = vadd.f32 0.0, %v640
        %v642 = vpop.f32.mrb[0].mxu0
        %643 = vmatprep.mubr.f32.mxu0 0.0
        %644 = vmatmul.mubr.f32.gmra.mrb[0].mxu0 %v442
        %v645 = vpop.f32.mrb[0].mxu0
        %v646 = vadd.f32 0.0, %v645
        %v647 = vpop.f32.mrb[0].mxu0
        %648 = vmatprep.mubr.f32.mxu0 0.0
        %649 = vmatmul.mubr.f32.gmra.mrb[0].mxu0 %v445
        %v650 = vpop.f32.mrb[0].mxu0
        %v651 = vadd.f32 0.0, %v650
        %v652 = vpop.f32.mrb[0].mxu0
        %653 = vmatprep.mubr.f32.mxu0 0.0
        %654 = vmatmul.mubr.f32.gmra.mrb[0].mxu0 %v448
        %v655 = vpop.f32.mrb[0].mxu0
        %v656 = vadd.f32 0.0, %v655
        %v657 = vpop.f32.mrb[0].mxu0
        %658 = vmatprep.mubr.f32.mxu0 0.0
        %659 = vmatmul.mubr.f32.gmra.mrb[0].mxu0 %v451
        %v660 = vpop.f32.mrb[0].mxu0
        %v661 = vadd.f32 0.0, %v660
        %v662 = vpop.f32.mrb[0].mxu0
        %663 = vmatprep.mubr.f32.mxu0 0.0
        %664 = vmatmul.mubr.f32.gmra.mrb[0].mxu0 %v454
        %v665 = vpop.f32.mrb[0].mxu0
        %v666 = vadd.f32 0.0, %v665
        %v667 = vpop.f32.mrb[0].mxu0
        %668 = vmatprep.mubr.f32.mxu0 0.0
        %669 = vmatmul.mubr.f32.gmra.mrb[0].mxu0 %v457
        %v670 = vpop.f32.mrb[0].mxu0
        %v671 = vadd.f32 0.0, %v670
        %v672 = vpop.f32.mrb[0].mxu0
        %673 = vmatprep.mubr.f32.mxu0 0.0
        %674 = vmatmul.mubr.f32.gmra.mrb[0].mxu0 %v460
        %v675 = vpop.f32.mrb[0].mxu0
        %v676 = vadd.f32 0.0, %v675
        %v677 = vpop.f32.mrb[0].mxu0
        %678 = vmatprep.mubr.f32.mxu0 0.0
        %679 = vmatmul.mubr.f32.gmra.mrb[0].mxu0 %v463
        %v680 = vpop.f32.mrb[0].mxu0
        %v681 = vadd.f32 0.0, %v680
        %v682 = vpop.f32.mrb[0].mxu0
        %683 = vmatprep.mubr.f32.mxu0 0.0
        %684 = vmatmul.mubr.f32.gmra.mrb[0].mxu0 %v466
        %v685 = vpop.f32.mrb[0].mxu0
        %v686 = vadd.f32 0.0, %v685
        %v687 = vpop.f32.mrb[0].mxu0
        %688 = vmatprep.mubr.f32.mxu0 0.0
        %689 = vmatmul.mubr.f32.gmra.mrb[0].mxu0 %v469
        %v690 = vpop.f32.mrb[0].mxu0
        %v691 = vadd.f32 0.0, %v690
        %v692 = vpop.f32.mrb[0].mxu0
        %693 = vmatprep.mubr.f32.mxu0 0.0
        %694 = vmatmul.mubr.f32.gmra.mrb[0].mxu0 %v472
        %v695 = vpop.f32.mrb[0].mxu0
        %v696 = vadd.f32 0.0, %v695
        %v697 = vpop.f32.mrb[0].mxu0
        %698 = vmatprep.mubr.f32.mxu0 0.0
        %699 = vmatmul.mubr.f32.gmra.mrb[0].mxu0 %v475
        %v700 = vpop.f32.mrb[0].mxu0
        %v701 = vadd.f32 0.0, %v700
        %v702 = vpop.f32.mrb[0].mxu0
        %703 = vmatprep.mubr.f32.mxu0 0.0
        %704 = vmatmul.mubr.f32.gmra.mrb[0].mxu0 %v478
        %v705 = vpop.f32.mrb[0].mxu0
        %v706 = vadd.f32 0.0, %v705
        %v707 = vpop.f32.mrb[0].mxu0
        %708 = vdwg.mxu0
        %v710 = vsel %vm196, %v317, 0
        %v713 = vsel %vm196, %v318, 0
        %v716 = vsel %vm196, %v319, 0
        %v719 = vsel %vm196, %v320, 0
        %v722 = vsel %vm196, %v321, 0
        %v725 = vsel %vm196, %v322, 0
        %v728 = vsel %vm196, %v323, 0
        %v731 = vsel %vm196, %v324, 0
        %v734 = vsel %vm196, %v325, 0
        %v737 = vsel %vm196, %v326, 0
        %v740 = vsel %vm196, %v327, 0
        %v743 = vsel %vm196, %v328, 0
        %v746 = vsel %vm196, %v329, 0
        %v749 = vsel %vm196, %v330, 0
        %v752 = vsel %vm196, %v331, 0
        %v755 = vsel %vm196, %v332, 0
        %v758 = vsel %vm196, %v333, 0
        %v761 = vsel %vm196, %v334, 0
        %v764 = vsel %vm196, %v335, 0
        %v767 = vsel %vm196, %v336, 0
        %v770 = vsel %vm196, %v337, 0
        %v773 = vsel %vm196, %v338, 0
        %v776 = vsel %vm196, %v339, 0
        %v779 = vsel %vm196, %v340, 0
        %v782 = vsel %vm196, %v341, 0
        %v785 = vsel %vm196, %v342, 0
        %v788 = vsel %vm196, %v343, 0
        %v791 = vsel %vm196, %v344, 0
        %v794 = vsel %vm196, %v345, 0
        %v797 = vsel %vm196, %v346, 0
        %v800 = vsel %vm196, %v347, 0
        %v803 = vsel %vm196, %v348, 0
        %v806 = vsel %vm480, %v349, 0
        %808 = vmatprep.subr.mxu0 0.0
        %809 = vmatpush1.msra.mxu0 %v806
        %810 = vmatprep.subr.mxu0 0.0
        %811 = vmatpush1.msra.mxu0 0.0
        %812 = vmatprep.subr.mxu0 0.0
        %813 = vmatpush1.msra.mxu0 0.0
        %814 = vmatprep.subr.mxu0 0.0
        %815 = vmatpush1.msra.mxu0 0.0
        %816 = vmatprep.subr.mxu0 0.0
        %817 = vmatpush1.msra.mxu0 0.0
        %818 = vmatprep.subr.mxu0 0.0
        %819 = vmatpush1.msra.mxu0 0.0
        %820 = vmatprep.subr.mxu0 0.0
        %821 = vmatpush1.msra.mxu0 0.0
        %822 = vmatprep.subr.mxu0 0.0
        %823 = vmatpush1.msra.mxu0 0.0
        %824 = vmatprep.subr.mxu0 0.0
        %825 = vmatpush1.msra.mxu0 0.0
        %826 = vmatprep.subr.mxu0 0.0
        %827 = vmatpush1.msra.mxu0 0.0
        %828 = vmatprep.subr.mxu0 0.0
        %829 = vmatpush1.msra.mxu0 0.0
        %830 = vmatprep.subr.mxu0 0.0
        %831 = vmatpush1.msra.mxu0 0.0
        %832 = vmatprep.subr.mxu0 0.0
        %833 = vmatpush1.msra.mxu0 0.0
        %834 = vmatprep.subr.mxu0 0.0
        %835 = vmatpush1.msra.mxu0 0.0
        %836 = vmatprep.subr.mxu0 0.0
        %837 = vmatpush1.msra.mxu0 0.0
        %838 = vmatprep.subr.mxu0 0.0
        %839 = vmatpush1.msra.mxu0 0.0
        %840 = vmatprep.subr.mxu0 0.0
        %841 = vmatpush1.msra.mxu0 0.0
        %842 = vmatprep.subr.mxu0 0.0
        %843 = vmatpush1.msra.mxu0 0.0
        %844 = vmatprep.subr.mxu0 0.0
        %845 = vmatpush1.msra.mxu0 0.0
        %846 = vmatprep.subr.mxu0 0.0
        %847 = vmatpush1.msra.mxu0 0.0
        %848 = vmatprep.subr.mxu0 0.0
        %849 = vmatpush1.msra.mxu0 0.0
        %850 = vmatprep.subr.mxu0 0.0
        %851 = vmatpush1.msra.mxu0 0.0
        %852 = vmatprep.subr.mxu0 0.0
        %853 = vmatpush1.msra.mxu0 0.0
        %854 = vmatprep.subr.mxu0 0.0
        %855 = vmatpush1.msra.mxu0 0.0
        %856 = vmatprep.subr.mxu0 0.0
        %857 = vmatpush1.msra.mxu0 0.0
        %858 = vmatprep.subr.mxu0 0.0
        %859 = vmatpush1.msra.mxu0 0.0
        %860 = vmatprep.subr.mxu0 0.0
        %861 = vmatpush1.msra.mxu0 0.0
        %862 = vmatprep.subr.mxu0 0.0
        %863 = vmatpush1.msra.mxu0 0.0
        %864 = vmatprep.subr.mxu0 0.0
        %865 = vmatpush1.msra.mxu0 0.0
        %866 = vmatprep.subr.mxu0 0.0
        %867 = vmatpush1.msra.mxu0 0.0
        %868 = vmatprep.subr.mxu0 0.0
        %869 = vmatpush1.msra.mxu0 0.0
        %870 = vmatprep.subr.mxu0 0.0
        %871 = vmatpush1.msra.mxu0 0.0
        %872 = vmatprep.mubr.f32.mxu0 0.0
        %873 = vmatmul.mubr.f32.gmra.mrb[0].mxu0 %v710
        %v874 = vpop.f32.mrb[0].mxu0
        %v875 = vadd.f32 %v551, %v874
        %v876 = vpop.f32.mrb[0].mxu0
        %877 = vmatprep.mubr.f32.mxu0 0.0
        %878 = vmatmul.mubr.f32.gmra.mrb[0].mxu0 %v713
        %v879 = vpop.f32.mrb[0].mxu0
        %v880 = vadd.f32 %v556, %v879
        %v881 = vpop.f32.mrb[0].mxu0
        %882 = vmatprep.mubr.f32.mxu0 0.0
        %883 = vmatmul.mubr.f32.gmra.mrb[0].mxu0 %v716
        %v884 = vpop.f32.mrb[0].mxu0
        %v885 = vadd.f32 %v561, %v884
        %v886 = vpop.f32.mrb[0].mxu0
        %887 = vmatprep.mubr.f32.mxu0 0.0
        %888 = vmatmul.mubr.f32.gmra.mrb[0].mxu0 %v719
        %v889 = vpop.f32.mrb[0].mxu0
        %v890 = vadd.f32 %v566, %v889
        %v891 = vpop.f32.mrb[0].mxu0
        %892 = vmatprep.mubr.f32.mxu0 0.0
        %893 = vmatmul.mubr.f32.gmra.mrb[0].mxu0 %v722
        %v894 = vpop.f32.mrb[0].mxu0
        %v895 = vadd.f32 %v571, %v894
        %v896 = vpop.f32.mrb[0].mxu0
        %897 = vmatprep.mubr.f32.mxu0 0.0
        %898 = vmatmul.mubr.f32.gmra.mrb[0].mxu0 %v725
        %v899 = vpop.f32.mrb[0].mxu0
        %v900 = vadd.f32 %v576, %v899
        %v901 = vpop.f32.mrb[0].mxu0
        %902 = vmatprep.mubr.f32.mxu0 0.0
        %903 = vmatmul.mubr.f32.gmra.mrb[0].mxu0 %v728
        %v904 = vpop.f32.mrb[0].mxu0
        %v905 = vadd.f32 %v581, %v904
        %v906 = vpop.f32.mrb[0].mxu0
        %907 = vmatprep.mubr.f32.mxu0 0.0
        %908 = vmatmul.mubr.f32.gmra.mrb[0].mxu0 %v731
        %v909 = vpop.f32.mrb[0].mxu0
        %v910 = vadd.f32 %v586, %v909
        %v911 = vpop.f32.mrb[0].mxu0
        %912 = vmatprep.mubr.f32.mxu0 0.0
        %913 = vmatmul.mubr.f32.gmra.mrb[0].mxu0 %v734
        %v914 = vpop.f32.mrb[0].mxu0
        %v915 = vadd.f32 %v591, %v914
        %v916 = vpop.f32.mrb[0].mxu0
        %917 = vmatprep.mubr.f32.mxu0 0.0
        %918 = vmatmul.mubr.f32.gmra.mrb[0].mxu0 %v737
        %v919 = vpop.f32.mrb[0].mxu0
        %v920 = vadd.f32 %v596, %v919
        %v921 = vpop.f32.mrb[0].mxu0
        %922 = vmatprep.mubr.f32.mxu0 0.0
        %923 = vmatmul.mubr.f32.gmra.mrb[0].mxu0 %v740
        %v924 = vpop.f32.mrb[0].mxu0
        %v925 = vadd.f32 %v601, %v924
        %v926 = vpop.f32.mrb[0].mxu0
        %927 = vmatprep.mubr.f32.mxu0 0.0
        %928 = vmatmul.mubr.f32.gmra.mrb[0].mxu0 %v743
        %v929 = vpop.f32.mrb[0].mxu0
        %v930 = vadd.f32 %v606, %v929
        %v931 = vpop.f32.mrb[0].mxu0
        %932 = vmatprep.mubr.f32.mxu0 0.0
        %933 = vmatmul.mubr.f32.gmra.mrb[0].mxu0 %v746
        %v934 = vpop.f32.mrb[0].mxu0
        %v935 = vadd.f32 %v611, %v934
        %v936 = vpop.f32.mrb[0].mxu0
        %937 = vmatprep.mubr.f32.mxu0 0.0
        %938 = vmatmul.mubr.f32.gmra.mrb[0].mxu0 %v749
        %v939 = vpop.f32.mrb[0].mxu0
        %v940 = vadd.f32 %v616, %v939
        %v941 = vpop.f32.mrb[0].mxu0
        %942 = vmatprep.mubr.f32.mxu0 0.0
        %943 = vmatmul.mubr.f32.gmra.mrb[0].mxu0 %v752
        %v944 = vpop.f32.mrb[0].mxu0
        %v945 = vadd.f32 %v621, %v944
        %v946 = vpop.f32.mrb[0].mxu0
        %947 = vmatprep.mubr.f32.mxu0 0.0
        %948 = vmatmul.mubr.f32.gmra.mrb[0].mxu0 %v755
        %v949 = vpop.f32.mrb[0].mxu0
        %v950 = vadd.f32 %v626, %v949
        %v951 = vpop.f32.mrb[0].mxu0
        %952 = vmatprep.mubr.f32.mxu0 0.0
        %953 = vmatmul.mubr.f32.gmra.mrb[0].mxu0 %v758
        %v954 = vpop.f32.mrb[0].mxu0
        %v955 = vadd.f32 %v631, %v954
        %v956 = vpop.f32.mrb[0].mxu0
        %957 = vmatprep.mubr.f32.mxu0 0.0
        %958 = vmatmul.mubr.f32.gmra.mrb[0].mxu0 %v761
        %v959 = vpop.f32.mrb[0].mxu0
        %v960 = vadd.f32 %v636, %v959
        %v961 = vpop.f32.mrb[0].mxu0
        %962 = vmatprep.mubr.f32.mxu0 0.0
        %963 = vmatmul.mubr.f32.gmra.mrb[0].mxu0 %v764
        %v964 = vpop.f32.mrb[0].mxu0
        %v965 = vadd.f32 %v641, %v964
        %v966 = vpop.f32.mrb[0].mxu0
        %967 = vmatprep.mubr.f32.mxu0 0.0
        %968 = vmatmul.mubr.f32.gmra.mrb[0].mxu0 %v767
        %v969 = vpop.f32.mrb[0].mxu0
        %v970 = vadd.f32 %v646, %v969
        %v971 = vpop.f32.mrb[0].mxu0
        %972 = vmatprep.mubr.f32.mxu0 0.0
        %973 = vmatmul.mubr.f32.gmra.mrb[0].mxu0 %v770
        %v974 = vpop.f32.mrb[0].mxu0
        %v975 = vadd.f32 %v651, %v974
        %v976 = vpop.f32.mrb[0].mxu0
        %977 = vmatprep.mubr.f32.mxu0 0.0
        %978 = vmatmul.mubr.f32.gmra.mrb[0].mxu0 %v773
        %v979 = vpop.f32.mrb[0].mxu0
        %v980 = vadd.f32 %v656, %v979
        %v981 = vpop.f32.mrb[0].mxu0
        %982 = vmatprep.mubr.f32.mxu0 0.0
        %983 = vmatmul.mubr.f32.gmra.mrb[0].mxu0 %v776
        %v984 = vpop.f32.mrb[0].mxu0
        %v985 = vadd.f32 %v661, %v984
        %v986 = vpop.f32.mrb[0].mxu0
        %987 = vmatprep.mubr.f32.mxu0 0.0
        %988 = vmatmul.mubr.f32.gmra.mrb[0].mxu0 %v779
        %v989 = vpop.f32.mrb[0].mxu0
        %v990 = vadd.f32 %v666, %v989
        %v991 = vpop.f32.mrb[0].mxu0
        %992 = vmatprep.mubr.f32.mxu0 0.0
        %993 = vmatmul.mubr.f32.gmra.mrb[0].mxu0 %v782
        %v994 = vpop.f32.mrb[0].mxu0
        %v995 = vadd.f32 %v671, %v994
        %v996 = vpop.f32.mrb[0].mxu0
        %997 = vmatprep.mubr.f32.mxu0 0.0
        %998 = vmatmul.mubr.f32.gmra.mrb[0].mxu0 %v785
        %v999 = vpop.f32.mrb[0].mxu0
        %v1000 = vadd.f32 %v676, %v999
        %v1001 = vpop.f32.mrb[0].mxu0
        %1002 = vmatprep.mubr.f32.mxu0 0.0
        %1003 = vmatmul.mubr.f32.gmra.mrb[0].mxu0 %v788
        %v1004 = vpop.f32.mrb[0].mxu0
        %v1005 = vadd.f32 %v681, %v1004
        %v1006 = vpop.f32.mrb[0].mxu0
        %1007 = vmatprep.mubr.f32.mxu0 0.0
        %1008 = vmatmul.mubr.f32.gmra.mrb[0].mxu0 %v791
        %v1009 = vpop.f32.mrb[0].mxu0
        %v1010 = vadd.f32 %v686, %v1009
        %v1011 = vpop.f32.mrb[0].mxu0
        %1012 = vmatprep.mubr.f32.mxu0 0.0
        %1013 = vmatmul.mubr.f32.gmra.mrb[0].mxu0 %v794
        %v1014 = vpop.f32.mrb[0].mxu0
        %v1015 = vadd.f32 %v691, %v1014
        %v1016 = vpop.f32.mrb[0].mxu0
        %1017 = vmatprep.mubr.f32.mxu0 0.0
        %1018 = vmatmul.mubr.f32.gmra.mrb[0].mxu0 %v797
        %v1019 = vpop.f32.mrb[0].mxu0
        %v1020 = vadd.f32 %v696, %v1019
        %v1021 = vpop.f32.mrb[0].mxu0
        %1022 = vmatprep.mubr.f32.mxu0 0.0
        %1023 = vmatmul.mubr.f32.gmra.mrb[0].mxu0 %v800
        %v1024 = vpop.f32.mrb[0].mxu0
        %v1025 = vadd.f32 %v701, %v1024
        %v1026 = vpop.f32.mrb[0].mxu0
        %1027 = vmatprep.mubr.f32.mxu0 0.0
        %1028 = vmatmul.mubr.f32.gmra.mrb[0].mxu0 %v803
        %v1029 = vpop.f32.mrb[0].mxu0
        %v1030 = vadd.f32 %v706, %v1029
        %v1031 = vpop.f32.mrb[0].mxu0
        %1032 = vdwg.mxu0
        %v1033 = vld [vmem:[#allocation2 + $0x2] sm:$0xff]
        %v1034 = vld [vmem:[#allocation2 + $0xa] sm:$0xff]
        %v1035 = vld [vmem:[#allocation2 + $0x1a] sm:$0xff]
        %v1036 = vld [vmem:[#allocation2 + $0x22] sm:$0xff]
        %v1037 = vld [vmem:[#allocation2 + $0x32] sm:$0xff]
        %v1038 = vld [vmem:[#allocation2 + $0x3a] sm:$0xff]
        %v1039 = vld [vmem:[#allocation2 + $0x4a] sm:$0xff]
        %v1040 = vld [vmem:[#allocation2 + $0x52] sm:$0xff]
        %v1041 = vld [vmem:[#allocation2 + $0x62] sm:$0xff]
        %v1042 = vld [vmem:[#allocation2 + $0x6a] sm:$0xff]
        %v1043 = vld [vmem:[#allocation2 + $0x7a] sm:$0xff]
        %v1044 = vld [vmem:[#allocation2 + $0x82] sm:$0xff]
        %v1045 = vld [vmem:[#allocation2 + $0x92] sm:$0xff]
        %v1046 = vld [vmem:[#allocation2 + $0x9a] sm:$0xff]
        %v1047 = vld [vmem:[#allocation2 + $0xaa] sm:$0xff]
        %v1048 = vld [vmem:[#allocation2 + $0xb2] sm:$0xff]
        %v1049 = vld [vmem:[#allocation2 + $0xc2] sm:$0xff]
        %v1050 = vld [vmem:[#allocation2 + $0xca] sm:$0xff]
        %v1051 = vld [vmem:[#allocation2 + $0xda] sm:$0xff]
        %v1052 = vld [vmem:[#allocation2 + $0xe2] sm:$0xff]
        %v1053 = vld [vmem:[#allocation2 + $0xf2] sm:$0xff]
        %v1054 = vld [vmem:[#allocation2 + $0xfa] sm:$0xff]
        %v1055 = vld [vmem:[#allocation2 + $0x10a] sm:$0xff]
        %v1056 = vld [vmem:[#allocation2 + $0x112] sm:$0xff]
        %v1057 = vld [vmem:[#allocation2 + $0x122] sm:$0xff]
        %v1058 = vld [vmem:[#allocation2 + $0x12a] sm:$0xff]
        %v1059 = vld [vmem:[#allocation2 + $0x13a] sm:$0xff]
        %v1060 = vld [vmem:[#allocation2 + $0x142] sm:$0xff]
        %v1061 = vld [vmem:[#allocation2 + $0x152] sm:$0xff]
        %v1062 = vld [vmem:[#allocation2 + $0x15a] sm:$0xff]
        %v1063 = vld [vmem:[#allocation2 + $0x16a] sm:$0xff]
        %v1064 = vld [vmem:[#allocation2 + $0x172] sm:$0xff]
        %s1065 = scalar_lea.vmem %s1, 8
        %v1066 = vld [vmem:[%s1065] sm:$0xf]
        %v1068 = vsel %vm196, %v1033, 0
        %v1071 = vsel %vm196, %v1034, 0
        %v1074 = vsel %vm196, %v1035, 0
        %v1077 = vsel %vm196, %v1036, 0
        %v1080 = vsel %vm196, %v1037, 0
        %v1083 = vsel %vm196, %v1038, 0
        %v1086 = vsel %vm196, %v1039, 0
        %v1089 = vsel %vm196, %v1040, 0
        %v1092 = vsel %vm196, %v1041, 0
        %v1095 = vsel %vm196, %v1042, 0
        %v1098 = vsel %vm196, %v1043, 0
        %v1101 = vsel %vm196, %v1044, 0
        %v1104 = vsel %vm196, %v1045, 0
        %v1107 = vsel %vm196, %v1046, 0
        %v1110 = vsel %vm196, %v1047, 0
        %v1113 = vsel %vm196, %v1048, 0
        %v1116 = vsel %vm196, %v1049, 0
        %v1119 = vsel %vm196, %v1050, 0
        %v1122 = vsel %vm196, %v1051, 0
        %v1125 = vsel %vm196, %v1052, 0
        %v1128 = vsel %vm196, %v1053, 0
        %v1131 = vsel %vm196, %v1054, 0
        %v1134 = vsel %vm196, %v1055, 0
        %v1137 = vsel %vm196, %v1056, 0
        %v1140 = vsel %vm196, %v1057, 0
        %v1143 = vsel %vm196, %v1058, 0
        %v1146 = vsel %vm196, %v1059, 0
        %v1149 = vsel %vm196, %v1060, 0
        %v1152 = vsel %vm196, %v1061, 0
        %v1155 = vsel %vm196, %v1062, 0
        %v1158 = vsel %vm196, %v1063, 0
        %v1161 = vsel %vm196, %v1064, 0
        %v1164 = vsel %vm480, %v1066, 0
        %1166 = vmatprep.subr.mxu0 0.0
        %1167 = vmatpush1.msra.mxu0 %v1164
        %1168 = vmatprep.subr.mxu0 0.0
        %1169 = vmatpush1.msra.mxu0 0.0
        %1170 = vmatprep.subr.mxu0 0.0
        %1171 = vmatpush1.msra.mxu0 0.0
        %1172 = vmatprep.subr.mxu0 0.0
        %1173 = vmatpush1.msra.mxu0 0.0
        %1174 = vmatprep.subr.mxu0 0.0
        %1175 = vmatpush1.msra.mxu0 0.0
        %1176 = vmatprep.subr.mxu0 0.0
        %1177 = vmatpush1.msra.mxu0 0.0
        %1178 = vmatprep.subr.mxu0 0.0
        %1179 = vmatpush1.msra.mxu0 0.0
        %1180 = vmatprep.subr.mxu0 0.0
        %1181 = vmatpush1.msra.mxu0 0.0
        %1182 = vmatprep.subr.mxu0 0.0
        %1183 = vmatpush1.msra.mxu0 0.0
        %1184 = vmatprep.subr.mxu0 0.0
        %1185 = vmatpush1.msra.mxu0 0.0
        %1186 = vmatprep.subr.mxu0 0.0
        %1187 = vmatpush1.msra.mxu0 0.0
        %1188 = vmatprep.subr.mxu0 0.0
        %1189 = vmatpush1.msra.mxu0 0.0
        %1190 = vmatprep.subr.mxu0 0.0
        %1191 = vmatpush1.msra.mxu0 0.0
        %1192 = vmatprep.subr.mxu0 0.0
        %1193 = vmatpush1.msra.mxu0 0.0
        %1194 = vmatprep.subr.mxu0 0.0
        %1195 = vmatpush1.msra.mxu0 0.0
        %1196 = vmatprep.subr.mxu0 0.0
        %1197 = vmatpush1.msra.mxu0 0.0
        %1198 = vmatprep.subr.mxu0 0.0
        %1199 = vmatpush1.msra.mxu0 0.0
        %1200 = vmatprep.subr.mxu0 0.0
        %1201 = vmatpush1.msra.mxu0 0.0
        %1202 = vmatprep.subr.mxu0 0.0
        %1203 = vmatpush1.msra.mxu0 0.0
        %1204 = vmatprep.subr.mxu0 0.0
        %1205 = vmatpush1.msra.mxu0 0.0
        %1206 = vmatprep.subr.mxu0 0.0
        %1207 = vmatpush1.msra.mxu0 0.0
        %1208 = vmatprep.subr.mxu0 0.0
        %1209 = vmatpush1.msra.mxu0 0.0
        %1210 = vmatprep.subr.mxu0 0.0
        %1211 = vmatpush1.msra.mxu0 0.0
        %1212 = vmatprep.subr.mxu0 0.0
        %1213 = vmatpush1.msra.mxu0 0.0
        %1214 = vmatprep.subr.mxu0 0.0
        %1215 = vmatpush1.msra.mxu0 0.0
        %1216 = vmatprep.subr.mxu0 0.0
        %1217 = vmatpush1.msra.mxu0 0.0
        %1218 = vmatprep.subr.mxu0 0.0
        %1219 = vmatpush1.msra.mxu0 0.0
        %1220 = vmatprep.subr.mxu0 0.0
        %1221 = vmatpush1.msra.mxu0 0.0
        %1222 = vmatprep.subr.mxu0 0.0
        %1223 = vmatpush1.msra.mxu0 0.0
        %1224 = vmatprep.subr.mxu0 0.0
        %1225 = vmatpush1.msra.mxu0 0.0
        %1226 = vmatprep.subr.mxu0 0.0
        %1227 = vmatpush1.msra.mxu0 0.0
        %1228 = vmatprep.subr.mxu0 0.0
        %1229 = vmatpush1.msra.mxu0 0.0
        %1230 = vmatprep.mubr.f32.mxu0 0.0
        %1231 = vmatmul.mubr.f32.gmra.mrb[0].mxu0 %v1068
        %v1232 = vpop.f32.mrb[0].mxu0
        %v1233 = vadd.f32 0.0, %v1232
        %v1234 = vpop.f32.mrb[0].mxu0
        %1235 = vmatprep.mubr.f32.mxu0 0.0
        %1236 = vmatmul.mubr.f32.gmra.mrb[0].mxu0 %v1071
        %v1237 = vpop.f32.mrb[0].mxu0
        %v1238 = vadd.f32 0.0, %v1237
        %v1239 = vpop.f32.mrb[0].mxu0
        %1240 = vmatprep.mubr.f32.mxu0 0.0
        %1241 = vmatmul.mubr.f32.gmra.mrb[0].mxu0 %v1074
        %v1242 = vpop.f32.mrb[0].mxu0
        %v1243 = vadd.f32 0.0, %v1242
        %v1244 = vpop.f32.mrb[0].mxu0
        %1245 = vmatprep.mubr.f32.mxu0 0.0
        %1246 = vmatmul.mubr.f32.gmra.mrb[0].mxu0 %v1077
        %v1247 = vpop.f32.mrb[0].mxu0
        %v1248 = vadd.f32 0.0, %v1247
        %v1249 = vpop.f32.mrb[0].mxu0
        %1250 = vmatprep.mubr.f32.mxu0 0.0
        %1251 = vmatmul.mubr.f32.gmra.mrb[0].mxu0 %v1080
        %v1252 = vpop.f32.mrb[0].mxu0
        %v1253 = vadd.f32 0.0, %v1252
        %v1254 = vpop.f32.mrb[0].mxu0
        %1255 = vmatprep.mubr.f32.mxu0 0.0
        %1256 = vmatmul.mubr.f32.gmra.mrb[0].mxu0 %v1083
        %v1257 = vpop.f32.mrb[0].mxu0
        %v1258 = vadd.f32 0.0, %v1257
        %v1259 = vpop.f32.mrb[0].mxu0
        %1260 = vmatprep.mubr.f32.mxu0 0.0
        %1261 = vmatmul.mubr.f32.gmra.mrb[0].mxu0 %v1086
        %v1262 = vpop.f32.mrb[0].mxu0
        %v1263 = vadd.f32 0.0, %v1262
        %v1264 = vpop.f32.mrb[0].mxu0
        %1265 = vmatprep.mubr.f32.mxu0 0.0
        %1266 = vmatmul.mubr.f32.gmra.mrb[0].mxu0 %v1089
        %v1267 = vpop.f32.mrb[0].mxu0
        %v1268 = vadd.f32 0.0, %v1267
        %v1269 = vpop.f32.mrb[0].mxu0
        %1270 = vmatprep.mubr.f32.mxu0 0.0
        %1271 = vmatmul.mubr.f32.gmra.mrb[0].mxu0 %v1092
        %v1272 = vpop.f32.mrb[0].mxu0
        %v1273 = vadd.f32 0.0, %v1272
        %v1274 = vpop.f32.mrb[0].mxu0
        %1275 = vmatprep.mubr.f32.mxu0 0.0
        %1276 = vmatmul.mubr.f32.gmra.mrb[0].mxu0 %v1095
        %v1277 = vpop.f32.mrb[0].mxu0
        %v1278 = vadd.f32 0.0, %v1277
        %v1279 = vpop.f32.mrb[0].mxu0
        %1280 = vmatprep.mubr.f32.mxu0 0.0
        %1281 = vmatmul.mubr.f32.gmra.mrb[0].mxu0 %v1098
        %v1282 = vpop.f32.mrb[0].mxu0
        %v1283 = vadd.f32 0.0, %v1282
        %v1284 = vpop.f32.mrb[0].mxu0
        %1285 = vmatprep.mubr.f32.mxu0 0.0
        %1286 = vmatmul.mubr.f32.gmra.mrb[0].mxu0 %v1101
        %v1287 = vpop.f32.mrb[0].mxu0
        %v1288 = vadd.f32 0.0, %v1287
        %v1289 = vpop.f32.mrb[0].mxu0
        %1290 = vmatprep.mubr.f32.mxu0 0.0
        %1291 = vmatmul.mubr.f32.gmra.mrb[0].mxu0 %v1104
        %v1292 = vpop.f32.mrb[0].mxu0
        %v1293 = vadd.f32 0.0, %v1292
        %v1294 = vpop.f32.mrb[0].mxu0
        %1295 = vmatprep.mubr.f32.mxu0 0.0
        %1296 = vmatmul.mubr.f32.gmra.mrb[0].mxu0 %v1107
        %v1297 = vpop.f32.mrb[0].mxu0
        %v1298 = vadd.f32 0.0, %v1297
        %v1299 = vpop.f32.mrb[0].mxu0
        %1300 = vmatprep.mubr.f32.mxu0 0.0
        %1301 = vmatmul.mubr.f32.gmra.mrb[0].mxu0 %v1110
        %v1302 = vpop.f32.mrb[0].mxu0
        %v1303 = vadd.f32 0.0, %v1302
        %v1304 = vpop.f32.mrb[0].mxu0
        %1305 = vmatprep.mubr.f32.mxu0 0.0
        %1306 = vmatmul.mubr.f32.gmra.mrb[0].mxu0 %v1113
        %v1307 = vpop.f32.mrb[0].mxu0
        %v1308 = vadd.f32 0.0, %v1307
        %v1309 = vpop.f32.mrb[0].mxu0
        %1310 = vmatprep.mubr.f32.mxu0 0.0
        %1311 = vmatmul.mubr.f32.gmra.mrb[0].mxu0 %v1116
        %v1312 = vpop.f32.mrb[0].mxu0
        %v1313 = vadd.f32 0.0, %v1312
        %v1314 = vpop.f32.mrb[0].mxu0
        %1315 = vmatprep.mubr.f32.mxu0 0.0
        %1316 = vmatmul.mubr.f32.gmra.mrb[0].mxu0 %v1119
        %v1317 = vpop.f32.mrb[0].mxu0
        %v1318 = vadd.f32 0.0, %v1317
        %v1319 = vpop.f32.mrb[0].mxu0
        %1320 = vmatprep.mubr.f32.mxu0 0.0
        %1321 = vmatmul.mubr.f32.gmra.mrb[0].mxu0 %v1122
        %v1322 = vpop.f32.mrb[0].mxu0
        %v1323 = vadd.f32 0.0, %v1322
        %v1324 = vpop.f32.mrb[0].mxu0
        %1325 = vmatprep.mubr.f32.mxu0 0.0
        %1326 = vmatmul.mubr.f32.gmra.mrb[0].mxu0 %v1125
        %v1327 = vpop.f32.mrb[0].mxu0
        %v1328 = vadd.f32 0.0, %v1327
        %v1329 = vpop.f32.mrb[0].mxu0
        %1330 = vmatprep.mubr.f32.mxu0 0.0
        %1331 = vmatmul.mubr.f32.gmra.mrb[0].mxu0 %v1128
        %v1332 = vpop.f32.mrb[0].mxu0
        %v1333 = vadd.f32 0.0, %v1332
        %v1334 = vpop.f32.mrb[0].mxu0
        %1335 = vmatprep.mubr.f32.mxu0 0.0
        %1336 = vmatmul.mubr.f32.gmra.mrb[0].mxu0 %v1131
        %v1337 = vpop.f32.mrb[0].mxu0
        %v1338 = vadd.f32 0.0, %v1337
        %v1339 = vpop.f32.mrb[0].mxu0
        %1340 = vmatprep.mubr.f32.mxu0 0.0
        %1341 = vmatmul.mubr.f32.gmra.mrb[0].mxu0 %v1134
        %v1342 = vpop.f32.mrb[0].mxu0
        %v1343 = vadd.f32 0.0, %v1342
        %v1344 = vpop.f32.mrb[0].mxu0
        %1345 = vmatprep.mubr.f32.mxu0 0.0
        %1346 = vmatmul.mubr.f32.gmra.mrb[0].mxu0 %v1137
        %v1347 = vpop.f32.mrb[0].mxu0
        %v1348 = vadd.f32 0.0, %v1347
        %v1349 = vpop.f32.mrb[0].mxu0
        %1350 = vmatprep.mubr.f32.mxu0 0.0
        %1351 = vmatmul.mubr.f32.gmra.mrb[0].mxu0 %v1140
        %v1352 = vpop.f32.mrb[0].mxu0
        %v1353 = vadd.f32 0.0, %v1352
        %v1354 = vpop.f32.mrb[0].mxu0
        %1355 = vmatprep.mubr.f32.mxu0 0.0
        %1356 = vmatmul.mubr.f32.gmra.mrb[0].mxu0 %v1143
        %v1357 = vpop.f32.mrb[0].mxu0
        %v1358 = vadd.f32 0.0, %v1357
        %v1359 = vpop.f32.mrb[0].mxu0
        %1360 = vmatprep.mubr.f32.mxu0 0.0
        %1361 = vmatmul.mubr.f32.gmra.mrb[0].mxu0 %v1146
        %v1362 = vpop.f32.mrb[0].mxu0
        %v1363 = vadd.f32 0.0, %v1362
        %v1364 = vpop.f32.mrb[0].mxu0
        %1365 = vmatprep.mubr.f32.mxu0 0.0
        %1366 = vmatmul.mubr.f32.gmra.mrb[0].mxu0 %v1149
        %v1367 = vpop.f32.mrb[0].mxu0
        %v1368 = vadd.f32 0.0, %v1367
        %v1369 = vpop.f32.mrb[0].mxu0
        %1370 = vmatprep.mubr.f32.mxu0 0.0
        %1371 = vmatmul.mubr.f32.gmra.mrb[0].mxu0 %v1152
        %v1372 = vpop.f32.mrb[0].mxu0
        %v1373 = vadd.f32 0.0, %v1372
        %v1374 = vpop.f32.mrb[0].mxu0
        %1375 = vmatprep.mubr.f32.mxu0 0.0
        %1376 = vmatmul.mubr.f32.gmra.mrb[0].mxu0 %v1155
        %v1377 = vpop.f32.mrb[0].mxu0
        %v1378 = vadd.f32 0.0, %v1377
        %v1379 = vpop.f32.mrb[0].mxu0
        %1380 = vmatprep.mubr.f32.mxu0 0.0
        %1381 = vmatmul.mubr.f32.gmra.mrb[0].mxu0 %v1158
        %v1382 = vpop.f32.mrb[0].mxu0
        %v1383 = vadd.f32 0.0, %v1382
        %v1384 = vpop.f32.mrb[0].mxu0
        %1385 = vmatprep.mubr.f32.mxu0 0.0
        %1386 = vmatmul.mubr.f32.gmra.mrb[0].mxu0 %v1161
        %v1387 = vpop.f32.mrb[0].mxu0
        %v1388 = vadd.f32 0.0, %v1387
        %v1389 = vpop.f32.mrb[0].mxu0
        %1390 = vdwg.mxu0
        %v1391 = vadd.f32 %v875, %v1233
        %v1392 = vadd.f32 %v880, %v1238
        %v1393 = vadd.f32 %v885, %v1243
        %v1394 = vadd.f32 %v890, %v1248
        %v1395 = vadd.f32 %v895, %v1253
        %v1396 = vadd.f32 %v900, %v1258
        %v1397 = vadd.f32 %v905, %v1263
        %v1398 = vadd.f32 %v910, %v1268
        %v1399 = vadd.f32 %v915, %v1273
        %v1400 = vadd.f32 %v920, %v1278
        %v1401 = vadd.f32 %v925, %v1283
        %v1402 = vadd.f32 %v930, %v1288
        %v1403 = vadd.f32 %v935, %v1293
        %v1404 = vadd.f32 %v940, %v1298
        %v1405 = vadd.f32 %v945, %v1303
        %v1406 = vadd.f32 %v950, %v1308
        %v1407 = vadd.f32 %v955, %v1313
        %v1408 = vadd.f32 %v960, %v1318
        %v1409 = vadd.f32 %v965, %v1323
        %v1410 = vadd.f32 %v970, %v1328
        %v1411 = vadd.f32 %v975, %v1333
        %v1412 = vadd.f32 %v980, %v1338
        %v1413 = vadd.f32 %v985, %v1343
        %v1414 = vadd.f32 %v990, %v1348
        %v1415 = vadd.f32 %v995, %v1353
        %v1416 = vadd.f32 %v1000, %v1358
        %v1417 = vadd.f32 %v1005, %v1363
        %v1418 = vadd.f32 %v1010, %v1368
        %v1419 = vadd.f32 %v1015, %v1373
        %v1420 = vadd.f32 %v1020, %v1378
        %v1421 = vadd.f32 %v1025, %v1383
        %v1422 = vadd.f32 %v1030, %v1388
        %v1423 = vld [vmem:[%s284] sm:$0xff]
        %v1424 = vld [vmem:[%s284 + $0x8] sm:$0xff]
        %v1425 = vld [vmem:[%s284 + $0x18] sm:$0xff]
        %v1426 = vld [vmem:[%s284 + $0x20] sm:$0xff]
        %v1427 = vld [vmem:[%s284 + $0x30] sm:$0xff]
        %v1428 = vld [vmem:[%s284 + $0x38] sm:$0xff]
        %v1429 = vld [vmem:[%s284 + $0x48] sm:$0xff]
        %v1430 = vld [vmem:[%s284 + $0x50] sm:$0xff]
        %v1431 = vld [vmem:[%s284 + $0x60] sm:$0xff]
        %v1432 = vld [vmem:[%s284 + $0x68] sm:$0xff]
        %v1433 = vld [vmem:[%s284 + $0x78] sm:$0xff]
        %v1434 = vld [vmem:[%s284 + $0x80] sm:$0xff]
        %v1435 = vld [vmem:[%s284 + $0x90] sm:$0xff]
        %v1436 = vld [vmem:[%s284 + $0x98] sm:$0xff]
        %v1437 = vld [vmem:[%s284 + $0xa8] sm:$0xff]
        %v1438 = vld [vmem:[%s284 + $0xb0] sm:$0xff]
        %v1439 = vld [vmem:[%s284 + $0xc0] sm:$0xff]
        %v1440 = vld [vmem:[%s284 + $0xc8] sm:$0xff]
        %v1441 = vld [vmem:[%s284 + $0xd8] sm:$0xff]
        %v1442 = vld [vmem:[%s284 + $0xe0] sm:$0xff]
        %v1443 = vld [vmem:[%s284 + $0xf0] sm:$0xff]
        %v1444 = vld [vmem:[%s284 + $0xf8] sm:$0xff]
        %v1445 = vld [vmem:[%s284 + $0x108] sm:$0xff]
        %v1446 = vld [vmem:[%s284 + $0x110] sm:$0xff]
        %v1447 = vld [vmem:[%s284 + $0x120] sm:$0xff]
        %v1448 = vld [vmem:[%s284 + $0x128] sm:$0xff]
        %v1449 = vld [vmem:[%s284 + $0x138] sm:$0xff]
        %v1450 = vld [vmem:[%s284 + $0x140] sm:$0xff]
        %v1451 = vld [vmem:[%s284 + $0x150] sm:$0xff]
        %v1452 = vld [vmem:[%s284 + $0x158] sm:$0xff]
        %v1453 = vld [vmem:[%s284 + $0x168] sm:$0xff]
        %v1454 = vld [vmem:[%s284 + $0x170] sm:$0xff]
        %s1455 = scalar_lea.vmem %s1, 12
        %v1456 = vld [vmem:[%s1455] sm:$0xf]
        %v1458 = vsel %vm196, %v1423, 0
        %v1461 = vsel %vm196, %v1424, 0
        %v1464 = vsel %vm196, %v1425, 0
        %v1467 = vsel %vm196, %v1426, 0
        %v1470 = vsel %vm196, %v1427, 0
        %v1473 = vsel %vm196, %v1428, 0
        %v1476 = vsel %vm196, %v1429, 0
        %v1479 = vsel %vm196, %v1430, 0
        %v1482 = vsel %vm196, %v1431, 0
        %v1485 = vsel %vm196, %v1432, 0
        %v1488 = vsel %vm196, %v1433, 0
        %v1491 = vsel %vm196, %v1434, 0
        %v1494 = vsel %vm196, %v1435, 0
        %v1497 = vsel %vm196, %v1436, 0
        %v1500 = vsel %vm196, %v1437, 0
        %v1503 = vsel %vm196, %v1438, 0
        %v1506 = vsel %vm196, %v1439, 0
        %v1509 = vsel %vm196, %v1440, 0
        %v1512 = vsel %vm196, %v1441, 0
        %v1515 = vsel %vm196, %v1442, 0
        %v1518 = vsel %vm196, %v1443, 0
        %v1521 = vsel %vm196, %v1444, 0
        %v1524 = vsel %vm196, %v1445, 0
        %v1527 = vsel %vm196, %v1446, 0
        %v1530 = vsel %vm196, %v1447, 0
        %v1533 = vsel %vm196, %v1448, 0
        %v1536 = vsel %vm196, %v1449, 0
        %v1539 = vsel %vm196, %v1450, 0
        %v1542 = vsel %vm196, %v1451, 0
        %v1545 = vsel %vm196, %v1452, 0
        %v1548 = vsel %vm196, %v1453, 0
        %v1551 = vsel %vm196, %v1454, 0
        %v1554 = vsel %vm480, %v1456, 0
        %1556 = vmatprep.subr.mxu0 0.0
        %1557 = vmatpush1.msra.mxu0 %v1554
        %1558 = vmatprep.subr.mxu0 0.0
        %1559 = vmatpush1.msra.mxu0 0.0
        %1560 = vmatprep.subr.mxu0 0.0
        %1561 = vmatpush1.msra.mxu0 0.0
        %1562 = vmatprep.subr.mxu0 0.0
        %1563 = vmatpush1.msra.mxu0 0.0
        %1564 = vmatprep.subr.mxu0 0.0
        %1565 = vmatpush1.msra.mxu0 0.0
        %1566 = vmatprep.subr.mxu0 0.0
        %1567 = vmatpush1.msra.mxu0 0.0
        %1568 = vmatprep.subr.mxu0 0.0
        %1569 = vmatpush1.msra.mxu0 0.0
        %1570 = vmatprep.subr.mxu0 0.0
        %1571 = vmatpush1.msra.mxu0 0.0
        %1572 = vmatprep.subr.mxu0 0.0
        %1573 = vmatpush1.msra.mxu0 0.0
        %1574 = vmatprep.subr.mxu0 0.0
        %1575 = vmatpush1.msra.mxu0 0.0
        %1576 = vmatprep.subr.mxu0 0.0
        %1577 = vmatpush1.msra.mxu0 0.0
        %1578 = vmatprep.subr.mxu0 0.0
        %1579 = vmatpush1.msra.mxu0 0.0
        %1580 = vmatprep.subr.mxu0 0.0
        %1581 = vmatpush1.msra.mxu0 0.0
        %1582 = vmatprep.subr.mxu0 0.0
        %1583 = vmatpush1.msra.mxu0 0.0
        %1584 = vmatprep.subr.mxu0 0.0
        %1585 = vmatpush1.msra.mxu0 0.0
        %1586 = vmatprep.subr.mxu0 0.0
        %1587 = vmatpush1.msra.mxu0 0.0
        %1588 = vmatprep.subr.mxu0 0.0
        %1589 = vmatpush1.msra.mxu0 0.0
        %1590 = vmatprep.subr.mxu0 0.0
        %1591 = vmatpush1.msra.mxu0 0.0
        %1592 = vmatprep.subr.mxu0 0.0
        %1593 = vmatpush1.msra.mxu0 0.0
        %1594 = vmatprep.subr.mxu0 0.0
        %1595 = vmatpush1.msra.mxu0 0.0
        %1596 = vmatprep.subr.mxu0 0.0
        %1597 = vmatpush1.msra.mxu0 0.0
        %1598 = vmatprep.subr.mxu0 0.0
        %1599 = vmatpush1.msra.mxu0 0.0
        %1600 = vmatprep.subr.mxu0 0.0
        %1601 = vmatpush1.msra.mxu0 0.0
        %1602 = vmatprep.subr.mxu0 0.0
        %1603 = vmatpush1.msra.mxu0 0.0
        %1604 = vmatprep.subr.mxu0 0.0
        %1605 = vmatpush1.msra.mxu0 0.0
        %1606 = vmatprep.subr.mxu0 0.0
        %1607 = vmatpush1.msra.mxu0 0.0
        %1608 = vmatprep.subr.mxu0 0.0
        %1609 = vmatpush1.msra.mxu0 0.0
        %1610 = vmatprep.subr.mxu0 0.0
        %1611 = vmatpush1.msra.mxu0 0.0
        %1612 = vmatprep.subr.mxu0 0.0
        %1613 = vmatpush1.msra.mxu0 0.0
        %1614 = vmatprep.subr.mxu0 0.0
        %1615 = vmatpush1.msra.mxu0 0.0
        %1616 = vmatprep.subr.mxu0 0.0
        %1617 = vmatpush1.msra.mxu0 0.0
        %1618 = vmatprep.subr.mxu0 0.0
        %1619 = vmatpush1.msra.mxu0 0.0
        %1620 = vmatprep.mubr.f32.mxu0 0.0
        %1621 = vmatmul.mubr.f32.gmra.mrb[0].mxu0 %v1458
        %v1622 = vpop.f32.mrb[0].mxu0
        %v1623 = vadd.f32 0.0, %v1622
        %v1624 = vpop.f32.mrb[0].mxu0
        %1625 = vmatprep.mubr.f32.mxu0 0.0
        %1626 = vmatmul.mubr.f32.gmra.mrb[0].mxu0 %v1461
        %v1627 = vpop.f32.mrb[0].mxu0
        %v1628 = vadd.f32 0.0, %v1627
        %v1629 = vpop.f32.mrb[0].mxu0
        %1630 = vmatprep.mubr.f32.mxu0 0.0
        %1631 = vmatmul.mubr.f32.gmra.mrb[0].mxu0 %v1464
        %v1632 = vpop.f32.mrb[0].mxu0
        %v1633 = vadd.f32 0.0, %v1632
        %v1634 = vpop.f32.mrb[0].mxu0
        %1635 = vmatprep.mubr.f32.mxu0 0.0
        %1636 = vmatmul.mubr.f32.gmra.mrb[0].mxu0 %v1467
        %v1637 = vpop.f32.mrb[0].mxu0
        %v1638 = vadd.f32 0.0, %v1637
        %v1639 = vpop.f32.mrb[0].mxu0
        %1640 = vmatprep.mubr.f32.mxu0 0.0
        %1641 = vmatmul.mubr.f32.gmra.mrb[0].mxu0 %v1470
        %v1642 = vpop.f32.mrb[0].mxu0
        %v1643 = vadd.f32 0.0, %v1642
        %v1644 = vpop.f32.mrb[0].mxu0
        %1645 = vmatprep.mubr.f32.mxu0 0.0
        %1646 = vmatmul.mubr.f32.gmra.mrb[0].mxu0 %v1473
        %v1647 = vpop.f32.mrb[0].mxu0
        %v1648 = vadd.f32 0.0, %v1647
        %v1649 = vpop.f32.mrb[0].mxu0
        %1650 = vmatprep.mubr.f32.mxu0 0.0
        %1651 = vmatmul.mubr.f32.gmra.mrb[0].mxu0 %v1476
        %v1652 = vpop.f32.mrb[0].mxu0
        %v1653 = vadd.f32 0.0, %v1652
        %v1654 = vpop.f32.mrb[0].mxu0
        %1655 = vmatprep.mubr.f32.mxu0 0.0
        %1656 = vmatmul.mubr.f32.gmra.mrb[0].mxu0 %v1479
        %v1657 = vpop.f32.mrb[0].mxu0
        %v1658 = vadd.f32 0.0, %v1657
        %v1659 = vpop.f32.mrb[0].mxu0
        %1660 = vmatprep.mubr.f32.mxu0 0.0
        %1661 = vmatmul.mubr.f32.gmra.mrb[0].mxu0 %v1482
        %v1662 = vpop.f32.mrb[0].mxu0
        %v1663 = vadd.f32 0.0, %v1662
        %v1664 = vpop.f32.mrb[0].mxu0
        %1665 = vmatprep.mubr.f32.mxu0 0.0
        %1666 = vmatmul.mubr.f32.gmra.mrb[0].mxu0 %v1485
        %v1667 = vpop.f32.mrb[0].mxu0
        %v1668 = vadd.f32 0.0, %v1667
        %v1669 = vpop.f32.mrb[0].mxu0
        %1670 = vmatprep.mubr.f32.mxu0 0.0
        %1671 = vmatmul.mubr.f32.gmra.mrb[0].mxu0 %v1488
        %v1672 = vpop.f32.mrb[0].mxu0
        %v1673 = vadd.f32 0.0, %v1672
        %v1674 = vpop.f32.mrb[0].mxu0
        %1675 = vmatprep.mubr.f32.mxu0 0.0
        %1676 = vmatmul.mubr.f32.gmra.mrb[0].mxu0 %v1491
        %v1677 = vpop.f32.mrb[0].mxu0
        %v1678 = vadd.f32 0.0, %v1677
        %v1679 = vpop.f32.mrb[0].mxu0
        %1680 = vmatprep.mubr.f32.mxu0 0.0
        %1681 = vmatmul.mubr.f32.gmra.mrb[0].mxu0 %v1494
        %v1682 = vpop.f32.mrb[0].mxu0
        %v1683 = vadd.f32 0.0, %v1682
        %v1684 = vpop.f32.mrb[0].mxu0
        %1685 = vmatprep.mubr.f32.mxu0 0.0
        %1686 = vmatmul.mubr.f32.gmra.mrb[0].mxu0 %v1497
        %v1687 = vpop.f32.mrb[0].mxu0
        %v1688 = vadd.f32 0.0, %v1687
        %v1689 = vpop.f32.mrb[0].mxu0
        %1690 = vmatprep.mubr.f32.mxu0 0.0
        %1691 = vmatmul.mubr.f32.gmra.mrb[0].mxu0 %v1500
        %v1692 = vpop.f32.mrb[0].mxu0
        %v1693 = vadd.f32 0.0, %v1692
        %v1694 = vpop.f32.mrb[0].mxu0
        %1695 = vmatprep.mubr.f32.mxu0 0.0
        %1696 = vmatmul.mubr.f32.gmra.mrb[0].mxu0 %v1503
        %v1697 = vpop.f32.mrb[0].mxu0
        %v1698 = vadd.f32 0.0, %v1697
        %v1699 = vpop.f32.mrb[0].mxu0
        %1700 = vmatprep.mubr.f32.mxu0 0.0
        %1701 = vmatmul.mubr.f32.gmra.mrb[0].mxu0 %v1506
        %v1702 = vpop.f32.mrb[0].mxu0
        %v1703 = vadd.f32 0.0, %v1702
        %v1704 = vpop.f32.mrb[0].mxu0
        %1705 = vmatprep.mubr.f32.mxu0 0.0
        %1706 = vmatmul.mubr.f32.gmra.mrb[0].mxu0 %v1509
        %v1707 = vpop.f32.mrb[0].mxu0
        %v1708 = vadd.f32 0.0, %v1707
        %v1709 = vpop.f32.mrb[0].mxu0
        %1710 = vmatprep.mubr.f32.mxu0 0.0
        %1711 = vmatmul.mubr.f32.gmra.mrb[0].mxu0 %v1512
        %v1712 = vpop.f32.mrb[0].mxu0
        %v1713 = vadd.f32 0.0, %v1712
        %v1714 = vpop.f32.mrb[0].mxu0
        %1715 = vmatprep.mubr.f32.mxu0 0.0
        %1716 = vmatmul.mubr.f32.gmra.mrb[0].mxu0 %v1515
        %v1717 = vpop.f32.mrb[0].mxu0
        %v1718 = vadd.f32 0.0, %v1717
        %v1719 = vpop.f32.mrb[0].mxu0
        %1720 = vmatprep.mubr.f32.mxu0 0.0
        %1721 = vmatmul.mubr.f32.gmra.mrb[0].mxu0 %v1518
        %v1722 = vpop.f32.mrb[0].mxu0
        %v1723 = vadd.f32 0.0, %v1722
        %v1724 = vpop.f32.mrb[0].mxu0
        %1725 = vmatprep.mubr.f32.mxu0 0.0
        %1726 = vmatmul.mubr.f32.gmra.mrb[0].mxu0 %v1521
        %v1727 = vpop.f32.mrb[0].mxu0
        %v1728 = vadd.f32 0.0, %v1727
        %v1729 = vpop.f32.mrb[0].mxu0
        %1730 = vmatprep.mubr.f32.mxu0 0.0
        %1731 = vmatmul.mubr.f32.gmra.mrb[0].mxu0 %v1524
        %v1732 = vpop.f32.mrb[0].mxu0
        %v1733 = vadd.f32 0.0, %v1732
        %v1734 = vpop.f32.mrb[0].mxu0
        %1735 = vmatprep.mubr.f32.mxu0 0.0
        %1736 = vmatmul.mubr.f32.gmra.mrb[0].mxu0 %v1527
        %v1737 = vpop.f32.mrb[0].mxu0
        %v1738 = vadd.f32 0.0, %v1737
        %v1739 = vpop.f32.mrb[0].mxu0
        %1740 = vmatprep.mubr.f32.mxu0 0.0
        %1741 = vmatmul.mubr.f32.gmra.mrb[0].mxu0 %v1530
        %v1742 = vpop.f32.mrb[0].mxu0
        %v1743 = vadd.f32 0.0, %v1742
        %v1744 = vpop.f32.mrb[0].mxu0
        %1745 = vmatprep.mubr.f32.mxu0 0.0
        %1746 = vmatmul.mubr.f32.gmra.mrb[0].mxu0 %v1533
        %v1747 = vpop.f32.mrb[0].mxu0
        %v1748 = vadd.f32 0.0, %v1747
        %v1749 = vpop.f32.mrb[0].mxu0
        %1750 = vmatprep.mubr.f32.mxu0 0.0
        %1751 = vmatmul.mubr.f32.gmra.mrb[0].mxu0 %v1536
        %v1752 = vpop.f32.mrb[0].mxu0
        %v1753 = vadd.f32 0.0, %v1752
        %v1754 = vpop.f32.mrb[0].mxu0
        %1755 = vmatprep.mubr.f32.mxu0 0.0
        %1756 = vmatmul.mubr.f32.gmra.mrb[0].mxu0 %v1539
        %v1757 = vpop.f32.mrb[0].mxu0
        %v1758 = vadd.f32 0.0, %v1757
        %v1759 = vpop.f32.mrb[0].mxu0
        %1760 = vmatprep.mubr.f32.mxu0 0.0
        %1761 = vmatmul.mubr.f32.gmra.mrb[0].mxu0 %v1542
        %v1762 = vpop.f32.mrb[0].mxu0
        %v1763 = vadd.f32 0.0, %v1762
        %v1764 = vpop.f32.mrb[0].mxu0
        %1765 = vmatprep.mubr.f32.mxu0 0.0
        %1766 = vmatmul.mubr.f32.gmra.mrb[0].mxu0 %v1545
        %v1767 = vpop.f32.mrb[0].mxu0
        %v1768 = vadd.f32 0.0, %v1767
        %v1769 = vpop.f32.mrb[0].mxu0
        %1770 = vmatprep.mubr.f32.mxu0 0.0
        %1771 = vmatmul.mubr.f32.gmra.mrb[0].mxu0 %v1548
        %v1772 = vpop.f32.mrb[0].mxu0
        %v1773 = vadd.f32 0.0, %v1772
        %v1774 = vpop.f32.mrb[0].mxu0
        %1775 = vmatprep.mubr.f32.mxu0 0.0
        %1776 = vmatmul.mubr.f32.gmra.mrb[0].mxu0 %v1551
        %v1777 = vpop.f32.mrb[0].mxu0
        %v1778 = vadd.f32 0.0, %v1777
        %v1779 = vpop.f32.mrb[0].mxu0
        %1780 = vdwg.mxu0
        %v1781 = vadd.f32 %v1391, %v1623
        %v1782 = vadd.f32 %v1392, %v1628
        %v1783 = vadd.f32 %v1393, %v1633
        %v1784 = vadd.f32 %v1394, %v1638
        %v1785 = vadd.f32 %v1395, %v1643
        %v1786 = vadd.f32 %v1396, %v1648
        %v1787 = vadd.f32 %v1397, %v1653
        %v1788 = vadd.f32 %v1398, %v1658
        %v1789 = vadd.f32 %v1399, %v1663
        %v1790 = vadd.f32 %v1400, %v1668
        %v1791 = vadd.f32 %v1401, %v1673
        %v1792 = vadd.f32 %v1402, %v1678
        %v1793 = vadd.f32 %v1403, %v1683
        %v1794 = vadd.f32 %v1404, %v1688
        %v1795 = vadd.f32 %v1405, %v1693
        %v1796 = vadd.f32 %v1406, %v1698
        %v1797 = vadd.f32 %v1407, %v1703
        %v1798 = vadd.f32 %v1408, %v1708
        %v1799 = vadd.f32 %v1409, %v1713
        %v1800 = vadd.f32 %v1410, %v1718
        %v1801 = vadd.f32 %v1411, %v1723
        %v1802 = vadd.f32 %v1412, %v1728
        %v1803 = vadd.f32 %v1413, %v1733
        %v1804 = vadd.f32 %v1414, %v1738
        %v1805 = vadd.f32 %v1415, %v1743
        %v1806 = vadd.f32 %v1416, %v1748
        %v1807 = vadd.f32 %v1417, %v1753
        %v1808 = vadd.f32 %v1418, %v1758
        %v1809 = vadd.f32 %v1419, %v1763
        %v1810 = vadd.f32 %v1420, %v1768
        %v1811 = vadd.f32 %v1421, %v1773
        %v1812 = vadd.f32 %v1422, %v1778
        %v1813 = vld [vmem:[%s284 + $0x1] sm:$0xff]
        %v1814 = vld [vmem:[%s284 + $0x9] sm:$0xff]
        %v1815 = vld [vmem:[%s284 + $0x19] sm:$0xff]
        %v1816 = vld [vmem:[%s284 + $0x21] sm:$0xff]
        %v1817 = vld [vmem:[%s284 + $0x31] sm:$0xff]
        %v1818 = vld [vmem:[%s284 + $0x39] sm:$0xff]
        %v1819 = vld [vmem:[%s284 + $0x49] sm:$0xff]
        %v1820 = vld [vmem:[%s284 + $0x51] sm:$0xff]
        %v1821 = vld [vmem:[%s284 + $0x61] sm:$0xff]
        %v1822 = vld [vmem:[%s284 + $0x69] sm:$0xff]
        %v1823 = vld [vmem:[%s284 + $0x79] sm:$0xff]
        %v1824 = vld [vmem:[%s284 + $0x81] sm:$0xff]
        %v1825 = vld [vmem:[%s284 + $0x91] sm:$0xff]
        %v1826 = vld [vmem:[%s284 + $0x99] sm:$0xff]
        %v1827 = vld [vmem:[%s284 + $0xa9] sm:$0xff]
        %v1828 = vld [vmem:[%s284 + $0xb1] sm:$0xff]
        %v1829 = vld [vmem:[%s284 + $0xc1] sm:$0xff]
        %v1830 = vld [vmem:[%s284 + $0xc9] sm:$0xff]
        %v1831 = vld [vmem:[%s284 + $0xd9] sm:$0xff]
        %v1832 = vld [vmem:[%s284 + $0xe1] sm:$0xff]
        %v1833 = vld [vmem:[%s284 + $0xf1] sm:$0xff]
        %v1834 = vld [vmem:[%s284 + $0xf9] sm:$0xff]
        %v1835 = vld [vmem:[%s284 + $0x109] sm:$0xff]
        %v1836 = vld [vmem:[%s284 + $0x111] sm:$0xff]
        %v1837 = vld [vmem:[%s284 + $0x121] sm:$0xff]
        %v1838 = vld [vmem:[%s284 + $0x129] sm:$0xff]
        %v1839 = vld [vmem:[%s284 + $0x139] sm:$0xff]
        %v1840 = vld [vmem:[%s284 + $0x141] sm:$0xff]
        %v1841 = vld [vmem:[%s284 + $0x151] sm:$0xff]
        %v1842 = vld [vmem:[%s284 + $0x159] sm:$0xff]
        %v1843 = vld [vmem:[%s284 + $0x169] sm:$0xff]
        %v1844 = vld [vmem:[%s284 + $0x171] sm:$0xff]
        %s1845 = scalar_lea.vmem %s1, 16
        %v1846 = vld [vmem:[%s1845] sm:$0xf]
        %v1848 = vsel %vm196, %v1813, 0
        %v1851 = vsel %vm196, %v1814, 0
        %v1854 = vsel %vm196, %v1815, 0
        %v1857 = vsel %vm196, %v1816, 0
        %v1860 = vsel %vm196, %v1817, 0
        %v1863 = vsel %vm196, %v1818, 0
        %v1866 = vsel %vm196, %v1819, 0
        %v1869 = vsel %vm196, %v1820, 0
        %v1872 = vsel %vm196, %v1821, 0
        %v1875 = vsel %vm196, %v1822, 0
        %v1878 = vsel %vm196, %v1823, 0
        %v1881 = vsel %vm196, %v1824, 0
        %v1884 = vsel %vm196, %v1825, 0
        %v1887 = vsel %vm196, %v1826, 0
        %v1890 = vsel %vm196, %v1827, 0
        %v1893 = vsel %vm196, %v1828, 0
        %v1896 = vsel %vm196, %v1829, 0
        %v1899 = vsel %vm196, %v1830, 0
        %v1902 = vsel %vm196, %v1831, 0
        %v1905 = vsel %vm196, %v1832, 0
        %v1908 = vsel %vm196, %v1833, 0
        %v1911 = vsel %vm196, %v1834, 0
        %v1914 = vsel %vm196, %v1835, 0
        %v1917 = vsel %vm196, %v1836, 0
        %v1920 = vsel %vm196, %v1837, 0
        %v1923 = vsel %vm196, %v1838, 0
        %v1926 = vsel %vm196, %v1839, 0
        %v1929 = vsel %vm196, %v1840, 0
        %v1932 = vsel %vm196, %v1841, 0
        %v1935 = vsel %vm196, %v1842, 0
        %v1938 = vsel %vm196, %v1843, 0
        %v1941 = vsel %vm196, %v1844, 0
        %v1944 = vsel %vm480, %v1846, 0
        %1946 = vmatprep.subr.mxu0 0.0
        %1947 = vmatpush1.msra.mxu0 %v1944
        %1948 = vmatprep.subr.mxu0 0.0
        %1949 = vmatpush1.msra.mxu0 0.0
        %1950 = vmatprep.subr.mxu0 0.0
        %1951 = vmatpush1.msra.mxu0 0.0
        %1952 = vmatprep.subr.mxu0 0.0
        %1953 = vmatpush1.msra.mxu0 0.0
        %1954 = vmatprep.subr.mxu0 0.0
        %1955 = vmatpush1.msra.mxu0 0.0
        %1956 = vmatprep.subr.mxu0 0.0
        %1957 = vmatpush1.msra.mxu0 0.0
        %1958 = vmatprep.subr.mxu0 0.0
        %1959 = vmatpush1.msra.mxu0 0.0
        %1960 = vmatprep.subr.mxu0 0.0
        %1961 = vmatpush1.msra.mxu0 0.0
        %1962 = vmatprep.subr.mxu0 0.0
        %1963 = vmatpush1.msra.mxu0 0.0
        %1964 = vmatprep.subr.mxu0 0.0
        %1965 = vmatpush1.msra.mxu0 0.0
        %1966 = vmatprep.subr.mxu0 0.0
        %1967 = vmatpush1.msra.mxu0 0.0
        %1968 = vmatprep.subr.mxu0 0.0
        %1969 = vmatpush1.msra.mxu0 0.0
        %1970 = vmatprep.subr.mxu0 0.0
        %1971 = vmatpush1.msra.mxu0 0.0
        %1972 = vmatprep.subr.mxu0 0.0
        %1973 = vmatpush1.msra.mxu0 0.0
        %1974 = vmatprep.subr.mxu0 0.0
        %1975 = vmatpush1.msra.mxu0 0.0
        %1976 = vmatprep.subr.mxu0 0.0
        %1977 = vmatpush1.msra.mxu0 0.0
        %1978 = vmatprep.subr.mxu0 0.0
        %1979 = vmatpush1.msra.mxu0 0.0
        %1980 = vmatprep.subr.mxu0 0.0
        %1981 = vmatpush1.msra.mxu0 0.0
        %1982 = vmatprep.subr.mxu0 0.0
        %1983 = vmatpush1.msra.mxu0 0.0
        %1984 = vmatprep.subr.mxu0 0.0
        %1985 = vmatpush1.msra.mxu0 0.0
        %1986 = vmatprep.subr.mxu0 0.0
        %1987 = vmatpush1.msra.mxu0 0.0
        %1988 = vmatprep.subr.mxu0 0.0
        %1989 = vmatpush1.msra.mxu0 0.0
        %1990 = vmatprep.subr.mxu0 0.0
        %1991 = vmatpush1.msra.mxu0 0.0
        %1992 = vmatprep.subr.mxu0 0.0
        %1993 = vmatpush1.msra.mxu0 0.0
        %1994 = vmatprep.subr.mxu0 0.0
        %1995 = vmatpush1.msra.mxu0 0.0
        %1996 = vmatprep.subr.mxu0 0.0
        %1997 = vmatpush1.msra.mxu0 0.0
        %1998 = vmatprep.subr.mxu0 0.0
        %1999 = vmatpush1.msra.mxu0 0.0
        %2000 = vmatprep.subr.mxu0 0.0
        %2001 = vmatpush1.msra.mxu0 0.0
        %2002 = vmatprep.subr.mxu0 0.0
        %2003 = vmatpush1.msra.mxu0 0.0
        %2004 = vmatprep.subr.mxu0 0.0
        %2005 = vmatpush1.msra.mxu0 0.0
        %2006 = vmatprep.subr.mxu0 0.0
        %2007 = vmatpush1.msra.mxu0 0.0
        %2008 = vmatprep.subr.mxu0 0.0
        %2009 = vmatpush1.msra.mxu0 0.0
        %2010 = vmatprep.mubr.f32.mxu0 0.0
        %2011 = vmatmul.mubr.f32.gmra.mrb[0].mxu0 %v1848
        %v2012 = vpop.f32.mrb[0].mxu0
        %v2013 = vadd.f32 0.0, %v2012
        %v2014 = vpop.f32.mrb[0].mxu0
        %2015 = vmatprep.mubr.f32.mxu0 0.0
        %2016 = vmatmul.mubr.f32.gmra.mrb[0].mxu0 %v1851
        %v2017 = vpop.f32.mrb[0].mxu0
        %v2018 = vadd.f32 0.0, %v2017
        %v2019 = vpop.f32.mrb[0].mxu0
        %2020 = vmatprep.mubr.f32.mxu0 0.0
        %2021 = vmatmul.mubr.f32.gmra.mrb[0].mxu0 %v1854
        %v2022 = vpop.f32.mrb[0].mxu0
        %v2023 = vadd.f32 0.0, %v2022
        %v2024 = vpop.f32.mrb[0].mxu0
        %2025 = vmatprep.mubr.f32.mxu0 0.0
        %2026 = vmatmul.mubr.f32.gmra.mrb[0].mxu0 %v1857
        %v2027 = vpop.f32.mrb[0].mxu0
        %v2028 = vadd.f32 0.0, %v2027
        %v2029 = vpop.f32.mrb[0].mxu0
        %2030 = vmatprep.mubr.f32.mxu0 0.0
        %2031 = vmatmul.mubr.f32.gmra.mrb[0].mxu0 %v1860
        %v2032 = vpop.f32.mrb[0].mxu0
        %v2033 = vadd.f32 0.0, %v2032
        %v2034 = vpop.f32.mrb[0].mxu0
        %2035 = vmatprep.mubr.f32.mxu0 0.0
        %2036 = vmatmul.mubr.f32.gmra.mrb[0].mxu0 %v1863
        %v2037 = vpop.f32.mrb[0].mxu0
        %v2038 = vadd.f32 0.0, %v2037
        %v2039 = vpop.f32.mrb[0].mxu0
        %2040 = vmatprep.mubr.f32.mxu0 0.0
        %2041 = vmatmul.mubr.f32.gmra.mrb[0].mxu0 %v1866
        %v2042 = vpop.f32.mrb[0].mxu0
        %v2043 = vadd.f32 0.0, %v2042
        %v2044 = vpop.f32.mrb[0].mxu0
        %2045 = vmatprep.mubr.f32.mxu0 0.0
        %2046 = vmatmul.mubr.f32.gmra.mrb[0].mxu0 %v1869
        %v2047 = vpop.f32.mrb[0].mxu0
        %v2048 = vadd.f32 0.0, %v2047
        %v2049 = vpop.f32.mrb[0].mxu0
        %2050 = vmatprep.mubr.f32.mxu0 0.0
        %2051 = vmatmul.mubr.f32.gmra.mrb[0].mxu0 %v1872
        %v2052 = vpop.f32.mrb[0].mxu0
        %v2053 = vadd.f32 0.0, %v2052
        %v2054 = vpop.f32.mrb[0].mxu0
        %2055 = vmatprep.mubr.f32.mxu0 0.0
        %2056 = vmatmul.mubr.f32.gmra.mrb[0].mxu0 %v1875
        %v2057 = vpop.f32.mrb[0].mxu0
        %v2058 = vadd.f32 0.0, %v2057
        %v2059 = vpop.f32.mrb[0].mxu0
        %2060 = vmatprep.mubr.f32.mxu0 0.0
        %2061 = vmatmul.mubr.f32.gmra.mrb[0].mxu0 %v1878
        %v2062 = vpop.f32.mrb[0].mxu0
        %v2063 = vadd.f32 0.0, %v2062
        %v2064 = vpop.f32.mrb[0].mxu0
        %2065 = vmatprep.mubr.f32.mxu0 0.0
        %2066 = vmatmul.mubr.f32.gmra.mrb[0].mxu0 %v1881
        %v2067 = vpop.f32.mrb[0].mxu0
        %v2068 = vadd.f32 0.0, %v2067
        %v2069 = vpop.f32.mrb[0].mxu0
        %2070 = vmatprep.mubr.f32.mxu0 0.0
        %2071 = vmatmul.mubr.f32.gmra.mrb[0].mxu0 %v1884
        %v2072 = vpop.f32.mrb[0].mxu0
        %v2073 = vadd.f32 0.0, %v2072
        %v2074 = vpop.f32.mrb[0].mxu0
        %2075 = vmatprep.mubr.f32.mxu0 0.0
        %2076 = vmatmul.mubr.f32.gmra.mrb[0].mxu0 %v1887
        %v2077 = vpop.f32.mrb[0].mxu0
        %v2078 = vadd.f32 0.0, %v2077
        %v2079 = vpop.f32.mrb[0].mxu0
        %2080 = vmatprep.mubr.f32.mxu0 0.0
        %2081 = vmatmul.mubr.f32.gmra.mrb[0].mxu0 %v1890
        %v2082 = vpop.f32.mrb[0].mxu0
        %v2083 = vadd.f32 0.0, %v2082
        %v2084 = vpop.f32.mrb[0].mxu0
        %2085 = vmatprep.mubr.f32.mxu0 0.0
        %2086 = vmatmul.mubr.f32.gmra.mrb[0].mxu0 %v1893
        %v2087 = vpop.f32.mrb[0].mxu0
        %v2088 = vadd.f32 0.0, %v2087
        %v2089 = vpop.f32.mrb[0].mxu0
        %2090 = vmatprep.mubr.f32.mxu0 0.0
        %2091 = vmatmul.mubr.f32.gmra.mrb[0].mxu0 %v1896
        %v2092 = vpop.f32.mrb[0].mxu0
        %v2093 = vadd.f32 0.0, %v2092
        %v2094 = vpop.f32.mrb[0].mxu0
        %2095 = vmatprep.mubr.f32.mxu0 0.0
        %2096 = vmatmul.mubr.f32.gmra.mrb[0].mxu0 %v1899
        %v2097 = vpop.f32.mrb[0].mxu0
        %v2098 = vadd.f32 0.0, %v2097
        %v2099 = vpop.f32.mrb[0].mxu0
        %2100 = vmatprep.mubr.f32.mxu0 0.0
        %2101 = vmatmul.mubr.f32.gmra.mrb[0].mxu0 %v1902
        %v2102 = vpop.f32.mrb[0].mxu0
        %v2103 = vadd.f32 0.0, %v2102
        %v2104 = vpop.f32.mrb[0].mxu0
        %2105 = vmatprep.mubr.f32.mxu0 0.0
        %2106 = vmatmul.mubr.f32.gmra.mrb[0].mxu0 %v1905
        %v2107 = vpop.f32.mrb[0].mxu0
        %v2108 = vadd.f32 0.0, %v2107
        %v2109 = vpop.f32.mrb[0].mxu0
        %2110 = vmatprep.mubr.f32.mxu0 0.0
        %2111 = vmatmul.mubr.f32.gmra.mrb[0].mxu0 %v1908
        %v2112 = vpop.f32.mrb[0].mxu0
        %v2113 = vadd.f32 0.0, %v2112
        %v2114 = vpop.f32.mrb[0].mxu0
        %2115 = vmatprep.mubr.f32.mxu0 0.0
        %2116 = vmatmul.mubr.f32.gmra.mrb[0].mxu0 %v1911
        %v2117 = vpop.f32.mrb[0].mxu0
        %v2118 = vadd.f32 0.0, %v2117
        %v2119 = vpop.f32.mrb[0].mxu0
        %2120 = vmatprep.mubr.f32.mxu0 0.0
        %2121 = vmatmul.mubr.f32.gmra.mrb[0].mxu0 %v1914
        %v2122 = vpop.f32.mrb[0].mxu0
        %v2123 = vadd.f32 0.0, %v2122
        %v2124 = vpop.f32.mrb[0].mxu0
        %2125 = vmatprep.mubr.f32.mxu0 0.0
        %2126 = vmatmul.mubr.f32.gmra.mrb[0].mxu0 %v1917
        %v2127 = vpop.f32.mrb[0].mxu0
        %v2128 = vadd.f32 0.0, %v2127
        %v2129 = vpop.f32.mrb[0].mxu0
        %2130 = vmatprep.mubr.f32.mxu0 0.0
        %2131 = vmatmul.mubr.f32.gmra.mrb[0].mxu0 %v1920
        %v2132 = vpop.f32.mrb[0].mxu0
        %v2133 = vadd.f32 0.0, %v2132
        %v2134 = vpop.f32.mrb[0].mxu0
        %2135 = vmatprep.mubr.f32.mxu0 0.0
        %2136 = vmatmul.mubr.f32.gmra.mrb[0].mxu0 %v1923
        %v2137 = vpop.f32.mrb[0].mxu0
        %v2138 = vadd.f32 0.0, %v2137
        %v2139 = vpop.f32.mrb[0].mxu0
        %2140 = vmatprep.mubr.f32.mxu0 0.0
        %2141 = vmatmul.mubr.f32.gmra.mrb[0].mxu0 %v1926
        %v2142 = vpop.f32.mrb[0].mxu0
        %v2143 = vadd.f32 0.0, %v2142
        %v2144 = vpop.f32.mrb[0].mxu0
        %2145 = vmatprep.mubr.f32.mxu0 0.0
        %2146 = vmatmul.mubr.f32.gmra.mrb[0].mxu0 %v1929
        %v2147 = vpop.f32.mrb[0].mxu0
        %v2148 = vadd.f32 0.0, %v2147
        %v2149 = vpop.f32.mrb[0].mxu0
        %2150 = vmatprep.mubr.f32.mxu0 0.0
        %2151 = vmatmul.mubr.f32.gmra.mrb[0].mxu0 %v1932
        %v2152 = vpop.f32.mrb[0].mxu0
        %v2153 = vadd.f32 0.0, %v2152
        %v2154 = vpop.f32.mrb[0].mxu0
        %2155 = vmatprep.mubr.f32.mxu0 0.0
        %2156 = vmatmul.mubr.f32.gmra.mrb[0].mxu0 %v1935
        %v2157 = vpop.f32.mrb[0].mxu0
        %v2158 = vadd.f32 0.0, %v2157
        %v2159 = vpop.f32.mrb[0].mxu0
        %2160 = vmatprep.mubr.f32.mxu0 0.0
        %2161 = vmatmul.mubr.f32.gmra.mrb[0].mxu0 %v1938
        %v2162 = vpop.f32.mrb[0].mxu0
        %v2163 = vadd.f32 0.0, %v2162
        %v2164 = vpop.f32.mrb[0].mxu0
        %2165 = vmatprep.mubr.f32.mxu0 0.0
        %2166 = vmatmul.mubr.f32.gmra.mrb[0].mxu0 %v1941
        %v2167 = vpop.f32.mrb[0].mxu0
        %v2168 = vadd.f32 0.0, %v2167
        %v2169 = vpop.f32.mrb[0].mxu0
        %2170 = vdwg.mxu0
        %v2171 = vadd.f32 %v1781, %v2013
        %v2172 = vadd.f32 %v1782, %v2018
        %v2173 = vadd.f32 %v1783, %v2023
        %v2174 = vadd.f32 %v1784, %v2028
        %v2175 = vadd.f32 %v1785, %v2033
        %v2176 = vadd.f32 %v1786, %v2038
        %v2177 = vadd.f32 %v1787, %v2043
        %v2178 = vadd.f32 %v1788, %v2048
        %v2179 = vadd.f32 %v1789, %v2053
        %v2180 = vadd.f32 %v1790, %v2058
        %v2181 = vadd.f32 %v1791, %v2063
        %v2182 = vadd.f32 %v1792, %v2068
        %v2183 = vadd.f32 %v1793, %v2073
        %v2184 = vadd.f32 %v1794, %v2078
        %v2185 = vadd.f32 %v1795, %v2083
        %v2186 = vadd.f32 %v1796, %v2088
        %v2187 = vadd.f32 %v1797, %v2093
        %v2188 = vadd.f32 %v1798, %v2098
        %v2189 = vadd.f32 %v1799, %v2103
        %v2190 = vadd.f32 %v1800, %v2108
        %v2191 = vadd.f32 %v1801, %v2113
        %v2192 = vadd.f32 %v1802, %v2118
        %v2193 = vadd.f32 %v1803, %v2123
        %v2194 = vadd.f32 %v1804, %v2128
        %v2195 = vadd.f32 %v1805, %v2133
        %v2196 = vadd.f32 %v1806, %v2138
        %v2197 = vadd.f32 %v1807, %v2143
        %v2198 = vadd.f32 %v1808, %v2148
        %v2199 = vadd.f32 %v1809, %v2153
        %v2200 = vadd.f32 %v1810, %v2158
        %v2201 = vadd.f32 %v1811, %v2163
        %v2202 = vadd.f32 %v1812, %v2168
        %v2203 = vld [vmem:[%s284 + $0x2] sm:$0xff]
        %v2204 = vld [vmem:[%s284 + $0xa] sm:$0xff]
        %v2205 = vld [vmem:[%s284 + $0x1a] sm:$0xff]
        %v2206 = vld [vmem:[%s284 + $0x22] sm:$0xff]
        %v2207 = vld [vmem:[%s284 + $0x32] sm:$0xff]
        %v2208 = vld [vmem:[%s284 + $0x3a] sm:$0xff]
        %v2209 = vld [vmem:[%s284 + $0x4a] sm:$0xff]
        %v2210 = vld [vmem:[%s284 + $0x52] sm:$0xff]
        %v2211 = vld [vmem:[%s284 + $0x62] sm:$0xff]
        %v2212 = vld [vmem:[%s284 + $0x6a] sm:$0xff]
        %v2213 = vld [vmem:[%s284 + $0x7a] sm:$0xff]
        %v2214 = vld [vmem:[%s284 + $0x82] sm:$0xff]
        %v2215 = vld [vmem:[%s284 + $0x92] sm:$0xff]
        %v2216 = vld [vmem:[%s284 + $0x9a] sm:$0xff]
        %v2217 = vld [vmem:[%s284 + $0xaa] sm:$0xff]
        %v2218 = vld [vmem:[%s284 + $0xb2] sm:$0xff]
        %v2219 = vld [vmem:[%s284 + $0xc2] sm:$0xff]
        %v2220 = vld [vmem:[%s284 + $0xca] sm:$0xff]
        %v2221 = vld [vmem:[%s284 + $0xda] sm:$0xff]
        %v2222 = vld [vmem:[%s284 + $0xe2] sm:$0xff]
        %v2223 = vld [vmem:[%s284 + $0xf2] sm:$0xff]
        %v2224 = vld [vmem:[%s284 + $0xfa] sm:$0xff]
        %v2225 = vld [vmem:[%s284 + $0x10a] sm:$0xff]
        %v2226 = vld [vmem:[%s284 + $0x112] sm:$0xff]
        %v2227 = vld [vmem:[%s284 + $0x122] sm:$0xff]
        %v2228 = vld [vmem:[%s284 + $0x12a] sm:$0xff]
        %v2229 = vld [vmem:[%s284 + $0x13a] sm:$0xff]
        %v2230 = vld [vmem:[%s284 + $0x142] sm:$0xff]
        %v2231 = vld [vmem:[%s284 + $0x152] sm:$0xff]
        %v2232 = vld [vmem:[%s284 + $0x15a] sm:$0xff]
        %v2233 = vld [vmem:[%s284 + $0x16a] sm:$0xff]
        %v2234 = vld [vmem:[%s284 + $0x172] sm:$0xff]
        %s2235 = scalar_lea.vmem %s1, 20
        %v2236 = vld [vmem:[%s2235] sm:$0xf]
        %v2238 = vsel %vm196, %v2203, 0
        %v2241 = vsel %vm196, %v2204, 0
        %v2244 = vsel %vm196, %v2205, 0
        %v2247 = vsel %vm196, %v2206, 0
        %v2250 = vsel %vm196, %v2207, 0
        %v2253 = vsel %vm196, %v2208, 0
        %v2256 = vsel %vm196, %v2209, 0
        %v2259 = vsel %vm196, %v2210, 0
        %v2262 = vsel %vm196, %v2211, 0
        %v2265 = vsel %vm196, %v2212, 0
        %v2268 = vsel %vm196, %v2213, 0
        %v2271 = vsel %vm196, %v2214, 0
        %v2274 = vsel %vm196, %v2215, 0
        %v2277 = vsel %vm196, %v2216, 0
        %v2280 = vsel %vm196, %v2217, 0
        %v2283 = vsel %vm196, %v2218, 0
        %v2286 = vsel %vm196, %v2219, 0
        %v2289 = vsel %vm196, %v2220, 0
        %v2292 = vsel %vm196, %v2221, 0
        %v2295 = vsel %vm196, %v2222, 0
        %v2298 = vsel %vm196, %v2223, 0
        %v2301 = vsel %vm196, %v2224, 0
        %v2304 = vsel %vm196, %v2225, 0
        %v2307 = vsel %vm196, %v2226, 0
        %v2310 = vsel %vm196, %v2227, 0
        %v2313 = vsel %vm196, %v2228, 0
        %v2316 = vsel %vm196, %v2229, 0
        %v2319 = vsel %vm196, %v2230, 0
        %v2322 = vsel %vm196, %v2231, 0
        %v2325 = vsel %vm196, %v2232, 0
        %v2328 = vsel %vm196, %v2233, 0
        %v2331 = vsel %vm196, %v2234, 0
        %v2334 = vsel %vm480, %v2236, 0
        %2336 = vmatprep.subr.mxu0 0.0
        %2337 = vmatpush1.msra.mxu0 %v2334
        %2338 = vmatprep.subr.mxu0 0.0
        %2339 = vmatpush1.msra.mxu0 0.0
        %2340 = vmatprep.subr.mxu0 0.0
        %2341 = vmatpush1.msra.mxu0 0.0
        %2342 = vmatprep.subr.mxu0 0.0
        %2343 = vmatpush1.msra.mxu0 0.0
        %2344 = vmatprep.subr.mxu0 0.0
        %2345 = vmatpush1.msra.mxu0 0.0
        %2346 = vmatprep.subr.mxu0 0.0
        %2347 = vmatpush1.msra.mxu0 0.0
        %2348 = vmatprep.subr.mxu0 0.0
        %2349 = vmatpush1.msra.mxu0 0.0
        %2350 = vmatprep.subr.mxu0 0.0
        %2351 = vmatpush1.msra.mxu0 0.0
        %2352 = vmatprep.subr.mxu0 0.0
        %2353 = vmatpush1.msra.mxu0 0.0
        %2354 = vmatprep.subr.mxu0 0.0
        %2355 = vmatpush1.msra.mxu0 0.0
        %2356 = vmatprep.subr.mxu0 0.0
        %2357 = vmatpush1.msra.mxu0 0.0
        %2358 = vmatprep.subr.mxu0 0.0
        %2359 = vmatpush1.msra.mxu0 0.0
        %2360 = vmatprep.subr.mxu0 0.0
        %2361 = vmatpush1.msra.mxu0 0.0
        %2362 = vmatprep.subr.mxu0 0.0
        %2363 = vmatpush1.msra.mxu0 0.0
        %2364 = vmatprep.subr.mxu0 0.0
        %2365 = vmatpush1.msra.mxu0 0.0
        %2366 = vmatprep.subr.mxu0 0.0
        %2367 = vmatpush1.msra.mxu0 0.0
        %2368 = vmatprep.subr.mxu0 0.0
        %2369 = vmatpush1.msra.mxu0 0.0
        %2370 = vmatprep.subr.mxu0 0.0
        %2371 = vmatpush1.msra.mxu0 0.0
        %2372 = vmatprep.subr.mxu0 0.0
        %2373 = vmatpush1.msra.mxu0 0.0
        %2374 = vmatprep.subr.mxu0 0.0
        %2375 = vmatpush1.msra.mxu0 0.0
        %2376 = vmatprep.subr.mxu0 0.0
        %2377 = vmatpush1.msra.mxu0 0.0
        %2378 = vmatprep.subr.mxu0 0.0
        %2379 = vmatpush1.msra.mxu0 0.0
        %2380 = vmatprep.subr.mxu0 0.0
        %2381 = vmatpush1.msra.mxu0 0.0
        %2382 = vmatprep.subr.mxu0 0.0
        %2383 = vmatpush1.msra.mxu0 0.0
        %2384 = vmatprep.subr.mxu0 0.0
        %2385 = vmatpush1.msra.mxu0 0.0
        %2386 = vmatprep.subr.mxu0 0.0
        %2387 = vmatpush1.msra.mxu0 0.0
        %2388 = vmatprep.subr.mxu0 0.0
        %2389 = vmatpush1.msra.mxu0 0.0
        %2390 = vmatprep.subr.mxu0 0.0
        %2391 = vmatpush1.msra.mxu0 0.0
        %2392 = vmatprep.subr.mxu0 0.0
        %2393 = vmatpush1.msra.mxu0 0.0
        %2394 = vmatprep.subr.mxu0 0.0
        %2395 = vmatpush1.msra.mxu0 0.0
        %2396 = vmatprep.subr.mxu0 0.0
        %2397 = vmatpush1.msra.mxu0 0.0
        %2398 = vmatprep.subr.mxu0 0.0
        %2399 = vmatpush1.msra.mxu0 0.0
        %2400 = vmatprep.mubr.f32.mxu0 0.0
        %2401 = vmatmul.mubr.f32.gmra.mrb[0].mxu0 %v2238
        %v2402 = vpop.f32.mrb[0].mxu0
        %v2403 = vadd.f32 0.0, %v2402
        %v2404 = vpop.f32.mrb[0].mxu0
        %2405 = vmatprep.mubr.f32.mxu0 0.0
        %2406 = vmatmul.mubr.f32.gmra.mrb[0].mxu0 %v2241
        %v2407 = vpop.f32.mrb[0].mxu0
        %v2408 = vadd.f32 0.0, %v2407
        %v2409 = vpop.f32.mrb[0].mxu0
        %2410 = vmatprep.mubr.f32.mxu0 0.0
        %2411 = vmatmul.mubr.f32.gmra.mrb[0].mxu0 %v2244
        %v2412 = vpop.f32.mrb[0].mxu0
        %v2413 = vadd.f32 0.0, %v2412
        %v2414 = vpop.f32.mrb[0].mxu0
        %2415 = vmatprep.mubr.f32.mxu0 0.0
        %2416 = vmatmul.mubr.f32.gmra.mrb[0].mxu0 %v2247
        %v2417 = vpop.f32.mrb[0].mxu0
        %v2418 = vadd.f32 0.0, %v2417
        %v2419 = vpop.f32.mrb[0].mxu0
        %2420 = vmatprep.mubr.f32.mxu0 0.0
        %2421 = vmatmul.mubr.f32.gmra.mrb[0].mxu0 %v2250
        %v2422 = vpop.f32.mrb[0].mxu0
        %v2423 = vadd.f32 0.0, %v2422
        %v2424 = vpop.f32.mrb[0].mxu0
        %2425 = vmatprep.mubr.f32.mxu0 0.0
        %2426 = vmatmul.mubr.f32.gmra.mrb[0].mxu0 %v2253
        %v2427 = vpop.f32.mrb[0].mxu0
        %v2428 = vadd.f32 0.0, %v2427
        %v2429 = vpop.f32.mrb[0].mxu0
        %2430 = vmatprep.mubr.f32.mxu0 0.0
        %2431 = vmatmul.mubr.f32.gmra.mrb[0].mxu0 %v2256
        %v2432 = vpop.f32.mrb[0].mxu0
        %v2433 = vadd.f32 0.0, %v2432
        %v2434 = vpop.f32.mrb[0].mxu0
        %2435 = vmatprep.mubr.f32.mxu0 0.0
        %2436 = vmatmul.mubr.f32.gmra.mrb[0].mxu0 %v2259
        %v2437 = vpop.f32.mrb[0].mxu0
        %v2438 = vadd.f32 0.0, %v2437
        %v2439 = vpop.f32.mrb[0].mxu0
        %2440 = vmatprep.mubr.f32.mxu0 0.0
        %2441 = vmatmul.mubr.f32.gmra.mrb[0].mxu0 %v2262
        %v2442 = vpop.f32.mrb[0].mxu0
        %v2443 = vadd.f32 0.0, %v2442
        %v2444 = vpop.f32.mrb[0].mxu0
        %2445 = vmatprep.mubr.f32.mxu0 0.0
        %2446 = vmatmul.mubr.f32.gmra.mrb[0].mxu0 %v2265
        %v2447 = vpop.f32.mrb[0].mxu0
        %v2448 = vadd.f32 0.0, %v2447
        %v2449 = vpop.f32.mrb[0].mxu0
        %2450 = vmatprep.mubr.f32.mxu0 0.0
        %2451 = vmatmul.mubr.f32.gmra.mrb[0].mxu0 %v2268
        %v2452 = vpop.f32.mrb[0].mxu0
        %v2453 = vadd.f32 0.0, %v2452
        %v2454 = vpop.f32.mrb[0].mxu0
        %2455 = vmatprep.mubr.f32.mxu0 0.0
        %2456 = vmatmul.mubr.f32.gmra.mrb[0].mxu0 %v2271
        %v2457 = vpop.f32.mrb[0].mxu0
        %v2458 = vadd.f32 0.0, %v2457
        %v2459 = vpop.f32.mrb[0].mxu0
        %2460 = vmatprep.mubr.f32.mxu0 0.0
        %2461 = vmatmul.mubr.f32.gmra.mrb[0].mxu0 %v2274
        %v2462 = vpop.f32.mrb[0].mxu0
        %v2463 = vadd.f32 0.0, %v2462
        %v2464 = vpop.f32.mrb[0].mxu0
        %2465 = vmatprep.mubr.f32.mxu0 0.0
        %2466 = vmatmul.mubr.f32.gmra.mrb[0].mxu0 %v2277
        %v2467 = vpop.f32.mrb[0].mxu0
        %v2468 = vadd.f32 0.0, %v2467
        %v2469 = vpop.f32.mrb[0].mxu0
        %2470 = vmatprep.mubr.f32.mxu0 0.0
        %2471 = vmatmul.mubr.f32.gmra.mrb[0].mxu0 %v2280
        %v2472 = vpop.f32.mrb[0].mxu0
        %v2473 = vadd.f32 0.0, %v2472
        %v2474 = vpop.f32.mrb[0].mxu0
        %2475 = vmatprep.mubr.f32.mxu0 0.0
        %2476 = vmatmul.mubr.f32.gmra.mrb[0].mxu0 %v2283
        %v2477 = vpop.f32.mrb[0].mxu0
        %v2478 = vadd.f32 0.0, %v2477
        %v2479 = vpop.f32.mrb[0].mxu0
        %2480 = vmatprep.mubr.f32.mxu0 0.0
        %2481 = vmatmul.mubr.f32.gmra.mrb[0].mxu0 %v2286
        %v2482 = vpop.f32.mrb[0].mxu0
        %v2483 = vadd.f32 0.0, %v2482
        %v2484 = vpop.f32.mrb[0].mxu0
        %2485 = vmatprep.mubr.f32.mxu0 0.0
        %2486 = vmatmul.mubr.f32.gmra.mrb[0].mxu0 %v2289
        %v2487 = vpop.f32.mrb[0].mxu0
        %v2488 = vadd.f32 0.0, %v2487
        %v2489 = vpop.f32.mrb[0].mxu0
        %2490 = vmatprep.mubr.f32.mxu0 0.0
        %2491 = vmatmul.mubr.f32.gmra.mrb[0].mxu0 %v2292
        %v2492 = vpop.f32.mrb[0].mxu0
        %v2493 = vadd.f32 0.0, %v2492
        %v2494 = vpop.f32.mrb[0].mxu0
        %2495 = vmatprep.mubr.f32.mxu0 0.0
        %2496 = vmatmul.mubr.f32.gmra.mrb[0].mxu0 %v2295
        %v2497 = vpop.f32.mrb[0].mxu0
        %v2498 = vadd.f32 0.0, %v2497
        %v2499 = vpop.f32.mrb[0].mxu0
        %2500 = vmatprep.mubr.f32.mxu0 0.0
        %2501 = vmatmul.mubr.f32.gmra.mrb[0].mxu0 %v2298
        %v2502 = vpop.f32.mrb[0].mxu0
        %v2503 = vadd.f32 0.0, %v2502
        %v2504 = vpop.f32.mrb[0].mxu0
        %2505 = vmatprep.mubr.f32.mxu0 0.0
        %2506 = vmatmul.mubr.f32.gmra.mrb[0].mxu0 %v2301
        %v2507 = vpop.f32.mrb[0].mxu0
        %v2508 = vadd.f32 0.0, %v2507
        %v2509 = vpop.f32.mrb[0].mxu0
        %2510 = vmatprep.mubr.f32.mxu0 0.0
        %2511 = vmatmul.mubr.f32.gmra.mrb[0].mxu0 %v2304
        %v2512 = vpop.f32.mrb[0].mxu0
        %v2513 = vadd.f32 0.0, %v2512
        %v2514 = vpop.f32.mrb[0].mxu0
        %2515 = vmatprep.mubr.f32.mxu0 0.0
        %2516 = vmatmul.mubr.f32.gmra.mrb[0].mxu0 %v2307
        %v2517 = vpop.f32.mrb[0].mxu0
        %v2518 = vadd.f32 0.0, %v2517
        %v2519 = vpop.f32.mrb[0].mxu0
        %2520 = vmatprep.mubr.f32.mxu0 0.0
        %2521 = vmatmul.mubr.f32.gmra.mrb[0].mxu0 %v2310
        %v2522 = vpop.f32.mrb[0].mxu0
        %v2523 = vadd.f32 0.0, %v2522
        %v2524 = vpop.f32.mrb[0].mxu0
        %2525 = vmatprep.mubr.f32.mxu0 0.0
        %2526 = vmatmul.mubr.f32.gmra.mrb[0].mxu0 %v2313
        %v2527 = vpop.f32.mrb[0].mxu0
        %v2528 = vadd.f32 0.0, %v2527
        %v2529 = vpop.f32.mrb[0].mxu0
        %2530 = vmatprep.mubr.f32.mxu0 0.0
        %2531 = vmatmul.mubr.f32.gmra.mrb[0].mxu0 %v2316
        %v2532 = vpop.f32.mrb[0].mxu0
        %v2533 = vadd.f32 0.0, %v2532
        %v2534 = vpop.f32.mrb[0].mxu0
        %2535 = vmatprep.mubr.f32.mxu0 0.0
        %2536 = vmatmul.mubr.f32.gmra.mrb[0].mxu0 %v2319
        %v2537 = vpop.f32.mrb[0].mxu0
        %v2538 = vadd.f32 0.0, %v2537
        %v2539 = vpop.f32.mrb[0].mxu0
        %2540 = vmatprep.mubr.f32.mxu0 0.0
        %2541 = vmatmul.mubr.f32.gmra.mrb[0].mxu0 %v2322
        %v2542 = vpop.f32.mrb[0].mxu0
        %v2543 = vadd.f32 0.0, %v2542
        %v2544 = vpop.f32.mrb[0].mxu0
        %2545 = vmatprep.mubr.f32.mxu0 0.0
        %2546 = vmatmul.mubr.f32.gmra.mrb[0].mxu0 %v2325
        %v2547 = vpop.f32.mrb[0].mxu0
        %v2548 = vadd.f32 0.0, %v2547
        %v2549 = vpop.f32.mrb[0].mxu0
        %2550 = vmatprep.mubr.f32.mxu0 0.0
        %2551 = vmatmul.mubr.f32.gmra.mrb[0].mxu0 %v2328
        %v2552 = vpop.f32.mrb[0].mxu0
        %v2553 = vadd.f32 0.0, %v2552
        %v2554 = vpop.f32.mrb[0].mxu0
        %2555 = vmatprep.mubr.f32.mxu0 0.0
        %2556 = vmatmul.mubr.f32.gmra.mrb[0].mxu0 %v2331
        %v2557 = vpop.f32.mrb[0].mxu0
        %v2558 = vadd.f32 0.0, %v2557
        %v2559 = vpop.f32.mrb[0].mxu0
        %2560 = vdwg.mxu0
        %v2561 = vadd.f32 %v2171, %v2403
        %v2562 = vadd.f32 %v2172, %v2408
        %v2563 = vadd.f32 %v2173, %v2413
        %v2564 = vadd.f32 %v2174, %v2418
        %v2565 = vadd.f32 %v2175, %v2423
        %v2566 = vadd.f32 %v2176, %v2428
        %v2567 = vadd.f32 %v2177, %v2433
        %v2568 = vadd.f32 %v2178, %v2438
        %v2569 = vadd.f32 %v2179, %v2443
        %v2570 = vadd.f32 %v2180, %v2448
        %v2571 = vadd.f32 %v2181, %v2453
        %v2572 = vadd.f32 %v2182, %v2458
        %v2573 = vadd.f32 %v2183, %v2463
        %v2574 = vadd.f32 %v2184, %v2468
        %v2575 = vadd.f32 %v2185, %v2473
        %v2576 = vadd.f32 %v2186, %v2478
        %v2577 = vadd.f32 %v2187, %v2483
        %v2578 = vadd.f32 %v2188, %v2488
        %v2579 = vadd.f32 %v2189, %v2493
        %v2580 = vadd.f32 %v2190, %v2498
        %v2581 = vadd.f32 %v2191, %v2503
        %v2582 = vadd.f32 %v2192, %v2508
        %v2583 = vadd.f32 %v2193, %v2513
        %v2584 = vadd.f32 %v2194, %v2518
        %v2585 = vadd.f32 %v2195, %v2523
        %v2586 = vadd.f32 %v2196, %v2528
        %v2587 = vadd.f32 %v2197, %v2533
        %v2588 = vadd.f32 %v2198, %v2538
        %v2589 = vadd.f32 %v2199, %v2543
        %v2590 = vadd.f32 %v2200, %v2548
        %v2591 = vadd.f32 %v2201, %v2553
        %v2592 = vadd.f32 %v2202, %v2558
        %s2593 = scalar_lea.vmem [#allocation2], 48
        %v2594 = vld [vmem:[%s2593] sm:$0xff]
        %v2595 = vld [vmem:[%s2593 + $0x8] sm:$0xff]
        %v2596 = vld [vmem:[%s2593 + $0x18] sm:$0xff]
        %v2597 = vld [vmem:[%s2593 + $0x20] sm:$0xff]
        %v2598 = vld [vmem:[%s2593 + $0x30] sm:$0xff]
        %v2599 = vld [vmem:[%s2593 + $0x38] sm:$0xff]
        %v2600 = vld [vmem:[%s2593 + $0x48] sm:$0xff]
        %v2601 = vld [vmem:[%s2593 + $0x50] sm:$0xff]
        %v2602 = vld [vmem:[%s2593 + $0x60] sm:$0xff]
        %v2603 = vld [vmem:[%s2593 + $0x68] sm:$0xff]
        %v2604 = vld [vmem:[%s2593 + $0x78] sm:$0xff]
        %v2605 = vld [vmem:[%s2593 + $0x80] sm:$0xff]
        %v2606 = vld [vmem:[%s2593 + $0x90] sm:$0xff]
        %v2607 = vld [vmem:[%s2593 + $0x98] sm:$0xff]
        %v2608 = vld [vmem:[%s2593 + $0xa8] sm:$0xff]
        %v2609 = vld [vmem:[%s2593 + $0xb0] sm:$0xff]
        %v2610 = vld [vmem:[%s2593 + $0xc0] sm:$0xff]
        %v2611 = vld [vmem:[%s2593 + $0xc8] sm:$0xff]
        %v2612 = vld [vmem:[%s2593 + $0xd8] sm:$0xff]
        %v2613 = vld [vmem:[%s2593 + $0xe0] sm:$0xff]
        %v2614 = vld [vmem:[%s2593 + $0xf0] sm:$0xff]
        %v2615 = vld [vmem:[%s2593 + $0xf8] sm:$0xff]
        %v2616 = vld [vmem:[%s2593 + $0x108] sm:$0xff]
        %v2617 = vld [vmem:[%s2593 + $0x110] sm:$0xff]
        %v2618 = vld [vmem:[%s2593 + $0x120] sm:$0xff]
        %v2619 = vld [vmem:[%s2593 + $0x128] sm:$0xff]
        %v2620 = vld [vmem:[%s2593 + $0x138] sm:$0xff]
        %v2621 = vld [vmem:[%s2593 + $0x140] sm:$0xff]
        %v2622 = vld [vmem:[%s2593 + $0x150] sm:$0xff]
        %v2623 = vld [vmem:[%s2593 + $0x158] sm:$0xff]
        %v2624 = vld [vmem:[%s2593 + $0x168] sm:$0xff]
        %v2625 = vld [vmem:[%s2593 + $0x170] sm:$0xff]
        %s2626 = scalar_lea.vmem %s1, 24
        %v2627 = vld [vmem:[%s2626] sm:$0xf]
        %v2629 = vsel %vm196, %v2594, 0
        %v2632 = vsel %vm196, %v2595, 0
        %v2635 = vsel %vm196, %v2596, 0
        %v2638 = vsel %vm196, %v2597, 0
        %v2641 = vsel %vm196, %v2598, 0
        %v2644 = vsel %vm196, %v2599, 0
        %v2647 = vsel %vm196, %v2600, 0
        %v2650 = vsel %vm196, %v2601, 0
        %v2653 = vsel %vm196, %v2602, 0
        %v2656 = vsel %vm196, %v2603, 0
        %v2659 = vsel %vm196, %v2604, 0
        %v2662 = vsel %vm196, %v2605, 0
        %v2665 = vsel %vm196, %v2606, 0
        %v2668 = vsel %vm196, %v2607, 0
        %v2671 = vsel %vm196, %v2608, 0
        %v2674 = vsel %vm196, %v2609, 0
        %v2677 = vsel %vm196, %v2610, 0
        %v2680 = vsel %vm196, %v2611, 0
        %v2683 = vsel %vm196, %v2612, 0
        %v2686 = vsel %vm196, %v2613, 0
        %v2689 = vsel %vm196, %v2614, 0
        %v2692 = vsel %vm196, %v2615, 0
        %v2695 = vsel %vm196, %v2616, 0
        %v2698 = vsel %vm196, %v2617, 0
        %v2701 = vsel %vm196, %v2618, 0
        %v2704 = vsel %vm196, %v2619, 0
        %v2707 = vsel %vm196, %v2620, 0
        %v2710 = vsel %vm196, %v2621, 0
        %v2713 = vsel %vm196, %v2622, 0
        %v2716 = vsel %vm196, %v2623, 0
        %v2719 = vsel %vm196, %v2624, 0
        %v2722 = vsel %vm196, %v2625, 0
        %v2725 = vsel %vm480, %v2627, 0
        %2727 = vmatprep.subr.mxu0 0.0
        %2728 = vmatpush1.msra.mxu0 %v2725
        %2729 = vmatprep.subr.mxu0 0.0
        %2730 = vmatpush1.msra.mxu0 0.0
        %2731 = vmatprep.subr.mxu0 0.0
        %2732 = vmatpush1.msra.mxu0 0.0
        %2733 = vmatprep.subr.mxu0 0.0
        %2734 = vmatpush1.msra.mxu0 0.0
        %2735 = vmatprep.subr.mxu0 0.0
        %2736 = vmatpush1.msra.mxu0 0.0
        %2737 = vmatprep.subr.mxu0 0.0
        %2738 = vmatpush1.msra.mxu0 0.0
        %2739 = vmatprep.subr.mxu0 0.0
        %2740 = vmatpush1.msra.mxu0 0.0
        %2741 = vmatprep.subr.mxu0 0.0
        %2742 = vmatpush1.msra.mxu0 0.0
        %2743 = vmatprep.subr.mxu0 0.0
        %2744 = vmatpush1.msra.mxu0 0.0
        %2745 = vmatprep.subr.mxu0 0.0
        %2746 = vmatpush1.msra.mxu0 0.0
        %2747 = vmatprep.subr.mxu0 0.0
        %2748 = vmatpush1.msra.mxu0 0.0
        %2749 = vmatprep.subr.mxu0 0.0
        %2750 = vmatpush1.msra.mxu0 0.0
        %2751 = vmatprep.subr.mxu0 0.0
        %2752 = vmatpush1.msra.mxu0 0.0
        %2753 = vmatprep.subr.mxu0 0.0
        %2754 = vmatpush1.msra.mxu0 0.0
        %2755 = vmatprep.subr.mxu0 0.0
        %2756 = vmatpush1.msra.mxu0 0.0
        %2757 = vmatprep.subr.mxu0 0.0
        %2758 = vmatpush1.msra.mxu0 0.0
        %2759 = vmatprep.subr.mxu0 0.0
        %2760 = vmatpush1.msra.mxu0 0.0
        %2761 = vmatprep.subr.mxu0 0.0
        %2762 = vmatpush1.msra.mxu0 0.0
        %2763 = vmatprep.subr.mxu0 0.0
        %2764 = vmatpush1.msra.mxu0 0.0
        %2765 = vmatprep.subr.mxu0 0.0
        %2766 = vmatpush1.msra.mxu0 0.0
        %2767 = vmatprep.subr.mxu0 0.0
        %2768 = vmatpush1.msra.mxu0 0.0
        %2769 = vmatprep.subr.mxu0 0.0
        %2770 = vmatpush1.msra.mxu0 0.0
        %2771 = vmatprep.subr.mxu0 0.0
        %2772 = vmatpush1.msra.mxu0 0.0
        %2773 = vmatprep.subr.mxu0 0.0
        %2774 = vmatpush1.msra.mxu0 0.0
        %2775 = vmatprep.subr.mxu0 0.0
        %2776 = vmatpush1.msra.mxu0 0.0
        %2777 = vmatprep.subr.mxu0 0.0
        %2778 = vmatpush1.msra.mxu0 0.0
        %2779 = vmatprep.subr.mxu0 0.0
        %2780 = vmatpush1.msra.mxu0 0.0
        %2781 = vmatprep.subr.mxu0 0.0
        %2782 = vmatpush1.msra.mxu0 0.0
        %2783 = vmatprep.subr.mxu0 0.0
        %2784 = vmatpush1.msra.mxu0 0.0
        %2785 = vmatprep.subr.mxu0 0.0
        %2786 = vmatpush1.msra.mxu0 0.0
        %2787 = vmatprep.subr.mxu0 0.0
        %2788 = vmatpush1.msra.mxu0 0.0
        %2789 = vmatprep.subr.mxu0 0.0
        %2790 = vmatpush1.msra.mxu0 0.0
        %2791 = vmatprep.mubr.f32.mxu0 0.0
        %2792 = vmatmul.mubr.f32.gmra.mrb[0].mxu0 %v2629
        %v2793 = vpop.f32.mrb[0].mxu0
        %v2794 = vadd.f32 0.0, %v2793
        %v2795 = vpop.f32.mrb[0].mxu0
        %2796 = vmatprep.mubr.f32.mxu0 0.0
        %2797 = vmatmul.mubr.f32.gmra.mrb[0].mxu0 %v2632
        %v2798 = vpop.f32.mrb[0].mxu0
        %v2799 = vadd.f32 0.0, %v2798
        %v2800 = vpop.f32.mrb[0].mxu0
        %2801 = vmatprep.mubr.f32.mxu0 0.0
        %2802 = vmatmul.mubr.f32.gmra.mrb[0].mxu0 %v2635
        %v2803 = vpop.f32.mrb[0].mxu0
        %v2804 = vadd.f32 0.0, %v2803
        %v2805 = vpop.f32.mrb[0].mxu0
        %2806 = vmatprep.mubr.f32.mxu0 0.0
        %2807 = vmatmul.mubr.f32.gmra.mrb[0].mxu0 %v2638
        %v2808 = vpop.f32.mrb[0].mxu0
        %v2809 = vadd.f32 0.0, %v2808
        %v2810 = vpop.f32.mrb[0].mxu0
        %2811 = vmatprep.mubr.f32.mxu0 0.0
        %2812 = vmatmul.mubr.f32.gmra.mrb[0].mxu0 %v2641
        %v2813 = vpop.f32.mrb[0].mxu0
        %v2814 = vadd.f32 0.0, %v2813
        %v2815 = vpop.f32.mrb[0].mxu0
        %2816 = vmatprep.mubr.f32.mxu0 0.0
        %2817 = vmatmul.mubr.f32.gmra.mrb[0].mxu0 %v2644
        %v2818 = vpop.f32.mrb[0].mxu0
        %v2819 = vadd.f32 0.0, %v2818
        %v2820 = vpop.f32.mrb[0].mxu0
        %2821 = vmatprep.mubr.f32.mxu0 0.0
        %2822 = vmatmul.mubr.f32.gmra.mrb[0].mxu0 %v2647
        %v2823 = vpop.f32.mrb[0].mxu0
        %v2824 = vadd.f32 0.0, %v2823
        %v2825 = vpop.f32.mrb[0].mxu0
        %2826 = vmatprep.mubr.f32.mxu0 0.0
        %2827 = vmatmul.mubr.f32.gmra.mrb[0].mxu0 %v2650
        %v2828 = vpop.f32.mrb[0].mxu0
        %v2829 = vadd.f32 0.0, %v2828
        %v2830 = vpop.f32.mrb[0].mxu0
        %2831 = vmatprep.mubr.f32.mxu0 0.0
        %2832 = vmatmul.mubr.f32.gmra.mrb[0].mxu0 %v2653
        %v2833 = vpop.f32.mrb[0].mxu0
        %v2834 = vadd.f32 0.0, %v2833
        %v2835 = vpop.f32.mrb[0].mxu0
        %2836 = vmatprep.mubr.f32.mxu0 0.0
        %2837 = vmatmul.mubr.f32.gmra.mrb[0].mxu0 %v2656
        %v2838 = vpop.f32.mrb[0].mxu0
        %v2839 = vadd.f32 0.0, %v2838
        %v2840 = vpop.f32.mrb[0].mxu0
        %2841 = vmatprep.mubr.f32.mxu0 0.0
        %2842 = vmatmul.mubr.f32.gmra.mrb[0].mxu0 %v2659
        %v2843 = vpop.f32.mrb[0].mxu0
        %v2844 = vadd.f32 0.0, %v2843
        %v2845 = vpop.f32.mrb[0].mxu0
        %2846 = vmatprep.mubr.f32.mxu0 0.0
        %2847 = vmatmul.mubr.f32.gmra.mrb[0].mxu0 %v2662
        %v2848 = vpop.f32.mrb[0].mxu0
        %v2849 = vadd.f32 0.0, %v2848
        %v2850 = vpop.f32.mrb[0].mxu0
        %2851 = vmatprep.mubr.f32.mxu0 0.0
        %2852 = vmatmul.mubr.f32.gmra.mrb[0].mxu0 %v2665
        %v2853 = vpop.f32.mrb[0].mxu0
        %v2854 = vadd.f32 0.0, %v2853
        %v2855 = vpop.f32.mrb[0].mxu0
        %2856 = vmatprep.mubr.f32.mxu0 0.0
        %2857 = vmatmul.mubr.f32.gmra.mrb[0].mxu0 %v2668
        %v2858 = vpop.f32.mrb[0].mxu0
        %v2859 = vadd.f32 0.0, %v2858
        %v2860 = vpop.f32.mrb[0].mxu0
        %2861 = vmatprep.mubr.f32.mxu0 0.0
        %2862 = vmatmul.mubr.f32.gmra.mrb[0].mxu0 %v2671
        %v2863 = vpop.f32.mrb[0].mxu0
        %v2864 = vadd.f32 0.0, %v2863
        %v2865 = vpop.f32.mrb[0].mxu0
        %2866 = vmatprep.mubr.f32.mxu0 0.0
        %2867 = vmatmul.mubr.f32.gmra.mrb[0].mxu0 %v2674
        %v2868 = vpop.f32.mrb[0].mxu0
        %v2869 = vadd.f32 0.0, %v2868
        %v2870 = vpop.f32.mrb[0].mxu0
        %2871 = vmatprep.mubr.f32.mxu0 0.0
        %2872 = vmatmul.mubr.f32.gmra.mrb[0].mxu0 %v2677
        %v2873 = vpop.f32.mrb[0].mxu0
        %v2874 = vadd.f32 0.0, %v2873
        %v2875 = vpop.f32.mrb[0].mxu0
        %2876 = vmatprep.mubr.f32.mxu0 0.0
        %2877 = vmatmul.mubr.f32.gmra.mrb[0].mxu0 %v2680
        %v2878 = vpop.f32.mrb[0].mxu0
        %v2879 = vadd.f32 0.0, %v2878
        %v2880 = vpop.f32.mrb[0].mxu0
        %2881 = vmatprep.mubr.f32.mxu0 0.0
        %2882 = vmatmul.mubr.f32.gmra.mrb[0].mxu0 %v2683
        %v2883 = vpop.f32.mrb[0].mxu0
        %v2884 = vadd.f32 0.0, %v2883
        %v2885 = vpop.f32.mrb[0].mxu0
        %2886 = vmatprep.mubr.f32.mxu0 0.0
        %2887 = vmatmul.mubr.f32.gmra.mrb[0].mxu0 %v2686
        %v2888 = vpop.f32.mrb[0].mxu0
        %v2889 = vadd.f32 0.0, %v2888
        %v2890 = vpop.f32.mrb[0].mxu0
        %2891 = vmatprep.mubr.f32.mxu0 0.0
        %2892 = vmatmul.mubr.f32.gmra.mrb[0].mxu0 %v2689
        %v2893 = vpop.f32.mrb[0].mxu0
        %v2894 = vadd.f32 0.0, %v2893
        %v2895 = vpop.f32.mrb[0].mxu0
        %2896 = vmatprep.mubr.f32.mxu0 0.0
        %2897 = vmatmul.mubr.f32.gmra.mrb[0].mxu0 %v2692
        %v2898 = vpop.f32.mrb[0].mxu0
        %v2899 = vadd.f32 0.0, %v2898
        %v2900 = vpop.f32.mrb[0].mxu0
        %2901 = vmatprep.mubr.f32.mxu0 0.0
        %2902 = vmatmul.mubr.f32.gmra.mrb[0].mxu0 %v2695
        %v2903 = vpop.f32.mrb[0].mxu0
        %v2904 = vadd.f32 0.0, %v2903
        %v2905 = vpop.f32.mrb[0].mxu0
        %2906 = vmatprep.mubr.f32.mxu0 0.0
        %2907 = vmatmul.mubr.f32.gmra.mrb[0].mxu0 %v2698
        %v2908 = vpop.f32.mrb[0].mxu0
        %v2909 = vadd.f32 0.0, %v2908
        %v2910 = vpop.f32.mrb[0].mxu0
        %2911 = vmatprep.mubr.f32.mxu0 0.0
        %2912 = vmatmul.mubr.f32.gmra.mrb[0].mxu0 %v2701
        %v2913 = vpop.f32.mrb[0].mxu0
        %v2914 = vadd.f32 0.0, %v2913
        %v2915 = vpop.f32.mrb[0].mxu0
        %2916 = vmatprep.mubr.f32.mxu0 0.0
        %2917 = vmatmul.mubr.f32.gmra.mrb[0].mxu0 %v2704
        %v2918 = vpop.f32.mrb[0].mxu0
        %v2919 = vadd.f32 0.0, %v2918
        %v2920 = vpop.f32.mrb[0].mxu0
        %2921 = vmatprep.mubr.f32.mxu0 0.0
        %2922 = vmatmul.mubr.f32.gmra.mrb[0].mxu0 %v2707
        %v2923 = vpop.f32.mrb[0].mxu0
        %v2924 = vadd.f32 0.0, %v2923
        %v2925 = vpop.f32.mrb[0].mxu0
        %2926 = vmatprep.mubr.f32.mxu0 0.0
        %2927 = vmatmul.mubr.f32.gmra.mrb[0].mxu0 %v2710
        %v2928 = vpop.f32.mrb[0].mxu0
        %v2929 = vadd.f32 0.0, %v2928
        %v2930 = vpop.f32.mrb[0].mxu0
        %2931 = vmatprep.mubr.f32.mxu0 0.0
        %2932 = vmatmul.mubr.f32.gmra.mrb[0].mxu0 %v2713
        %v2933 = vpop.f32.mrb[0].mxu0
        %v2934 = vadd.f32 0.0, %v2933
        %v2935 = vpop.f32.mrb[0].mxu0
        %2936 = vmatprep.mubr.f32.mxu0 0.0
        %2937 = vmatmul.mubr.f32.gmra.mrb[0].mxu0 %v2716
        %v2938 = vpop.f32.mrb[0].mxu0
        %v2939 = vadd.f32 0.0, %v2938
        %v2940 = vpop.f32.mrb[0].mxu0
        %2941 = vmatprep.mubr.f32.mxu0 0.0
        %2942 = vmatmul.mubr.f32.gmra.mrb[0].mxu0 %v2719
        %v2943 = vpop.f32.mrb[0].mxu0
        %v2944 = vadd.f32 0.0, %v2943
        %v2945 = vpop.f32.mrb[0].mxu0
        %2946 = vmatprep.mubr.f32.mxu0 0.0
        %2947 = vmatmul.mubr.f32.gmra.mrb[0].mxu0 %v2722
        %v2948 = vpop.f32.mrb[0].mxu0
        %v2949 = vadd.f32 0.0, %v2948
        %v2950 = vpop.f32.mrb[0].mxu0
        %2951 = vdwg.mxu0
        %v2952 = vadd.f32 %v2561, %v2794
        %v2953 = vadd.f32 %v2562, %v2799
        %v2954 = vadd.f32 %v2563, %v2804
        %v2955 = vadd.f32 %v2564, %v2809
        %v2956 = vadd.f32 %v2565, %v2814
        %v2957 = vadd.f32 %v2566, %v2819
        %v2958 = vadd.f32 %v2567, %v2824
        %v2959 = vadd.f32 %v2568, %v2829
        %v2960 = vadd.f32 %v2569, %v2834
        %v2961 = vadd.f32 %v2570, %v2839
        %v2962 = vadd.f32 %v2571, %v2844
        %v2963 = vadd.f32 %v2572, %v2849
        %v2964 = vadd.f32 %v2573, %v2854
        %v2965 = vadd.f32 %v2574, %v2859
        %v2966 = vadd.f32 %v2575, %v2864
        %v2967 = vadd.f32 %v2576, %v2869
        %v2968 = vadd.f32 %v2577, %v2874
        %v2969 = vadd.f32 %v2578, %v2879
        %v2970 = vadd.f32 %v2579, %v2884
        %v2971 = vadd.f32 %v2580, %v2889
        %v2972 = vadd.f32 %v2581, %v2894
        %v2973 = vadd.f32 %v2582, %v2899
        %v2974 = vadd.f32 %v2583, %v2904
        %v2975 = vadd.f32 %v2584, %v2909
        %v2976 = vadd.f32 %v2585, %v2914
        %v2977 = vadd.f32 %v2586, %v2919
        %v2978 = vadd.f32 %v2587, %v2924
        %v2979 = vadd.f32 %v2588, %v2929
        %v2980 = vadd.f32 %v2589, %v2934
        %v2981 = vadd.f32 %v2590, %v2939
        %v2982 = vadd.f32 %v2591, %v2944
        %v2983 = vadd.f32 %v2592, %v2949
        %v2984 = vld [vmem:[%s2593 + $0x1] sm:$0xff]
        %v2985 = vld [vmem:[%s2593 + $0x9] sm:$0xff]
        %v2986 = vld [vmem:[%s2593 + $0x19] sm:$0xff]
        %v2987 = vld [vmem:[%s2593 + $0x21] sm:$0xff]
        %v2988 = vld [vmem:[%s2593 + $0x31] sm:$0xff]
        %v2989 = vld [vmem:[%s2593 + $0x39] sm:$0xff]
        %v2990 = vld [vmem:[%s2593 + $0x49] sm:$0xff]
        %v2991 = vld [vmem:[%s2593 + $0x51] sm:$0xff]
        %v2992 = vld [vmem:[%s2593 + $0x61] sm:$0xff]
        %v2993 = vld [vmem:[%s2593 + $0x69] sm:$0xff]
        %v2994 = vld [vmem:[%s2593 + $0x79] sm:$0xff]
        %v2995 = vld [vmem:[%s2593 + $0x81] sm:$0xff]
        %v2996 = vld [vmem:[%s2593 + $0x91] sm:$0xff]
        %v2997 = vld [vmem:[%s2593 + $0x99] sm:$0xff]
        %v2998 = vld [vmem:[%s2593 + $0xa9] sm:$0xff]
        %v2999 = vld [vmem:[%s2593 + $0xb1] sm:$0xff]
        %v3000 = vld [vmem:[%s2593 + $0xc1] sm:$0xff]
        %v3001 = vld [vmem:[%s2593 + $0xc9] sm:$0xff]
        %v3002 = vld [vmem:[%s2593 + $0xd9] sm:$0xff]
        %v3003 = vld [vmem:[%s2593 + $0xe1] sm:$0xff]
        %v3004 = vld [vmem:[%s2593 + $0xf1] sm:$0xff]
        %v3005 = vld [vmem:[%s2593 + $0xf9] sm:$0xff]
        %v3006 = vld [vmem:[%s2593 + $0x109] sm:$0xff]
        %v3007 = vld [vmem:[%s2593 + $0x111] sm:$0xff]
        %v3008 = vld [vmem:[%s2593 + $0x121] sm:$0xff]
        %v3009 = vld [vmem:[%s2593 + $0x129] sm:$0xff]
        %v3010 = vld [vmem:[%s2593 + $0x139] sm:$0xff]
        %v3011 = vld [vmem:[%s2593 + $0x141] sm:$0xff]
        %v3012 = vld [vmem:[%s2593 + $0x151] sm:$0xff]
        %v3013 = vld [vmem:[%s2593 + $0x159] sm:$0xff]
        %v3014 = vld [vmem:[%s2593 + $0x169] sm:$0xff]
        %v3015 = vld [vmem:[%s2593 + $0x171] sm:$0xff]
        %s3016 = scalar_lea.vmem %s1, 28
        %v3017 = vld [vmem:[%s3016] sm:$0xf]
        %v3019 = vsel %vm196, %v2984, 0
        %v3022 = vsel %vm196, %v2985, 0
        %v3025 = vsel %vm196, %v2986, 0
        %v3028 = vsel %vm196, %v2987, 0
        %v3031 = vsel %vm196, %v2988, 0
        %v3034 = vsel %vm196, %v2989, 0
        %v3037 = vsel %vm196, %v2990, 0
        %v3040 = vsel %vm196, %v2991, 0
        %v3043 = vsel %vm196, %v2992, 0
        %v3046 = vsel %vm196, %v2993, 0
        %v3049 = vsel %vm196, %v2994, 0
        %v3052 = vsel %vm196, %v2995, 0
        %v3055 = vsel %vm196, %v2996, 0
        %v3058 = vsel %vm196, %v2997, 0
        %v3061 = vsel %vm196, %v2998, 0
        %v3064 = vsel %vm196, %v2999, 0
        %v3067 = vsel %vm196, %v3000, 0
        %v3070 = vsel %vm196, %v3001, 0
        %v3073 = vsel %vm196, %v3002, 0
        %v3076 = vsel %vm196, %v3003, 0
        %v3079 = vsel %vm196, %v3004, 0
        %v3082 = vsel %vm196, %v3005, 0
        %v3085 = vsel %vm196, %v3006, 0
        %v3088 = vsel %vm196, %v3007, 0
        %v3091 = vsel %vm196, %v3008, 0
        %v3094 = vsel %vm196, %v3009, 0
        %v3097 = vsel %vm196, %v3010, 0
        %v3100 = vsel %vm196, %v3011, 0
        %v3103 = vsel %vm196, %v3012, 0
        %v3106 = vsel %vm196, %v3013, 0
        %v3109 = vsel %vm196, %v3014, 0
        %v3112 = vsel %vm196, %v3015, 0
        %v3115 = vsel %vm480, %v3017, 0
        %3117 = vmatprep.subr.mxu0 0.0
        %3118 = vmatpush1.msra.mxu0 %v3115
        %3119 = vmatprep.subr.mxu0 0.0
        %3120 = vmatpush1.msra.mxu0 0.0
        %3121 = vmatprep.subr.mxu0 0.0
        %3122 = vmatpush1.msra.mxu0 0.0
        %3123 = vmatprep.subr.mxu0 0.0
        %3124 = vmatpush1.msra.mxu0 0.0
        %3125 = vmatprep.subr.mxu0 0.0
        %3126 = vmatpush1.msra.mxu0 0.0
        %3127 = vmatprep.subr.mxu0 0.0
        %3128 = vmatpush1.msra.mxu0 0.0
        %3129 = vmatprep.subr.mxu0 0.0
        %3130 = vmatpush1.msra.mxu0 0.0
        %3131 = vmatprep.subr.mxu0 0.0
        %3132 = vmatpush1.msra.mxu0 0.0
        %3133 = vmatprep.subr.mxu0 0.0
        %3134 = vmatpush1.msra.mxu0 0.0
        %3135 = vmatprep.subr.mxu0 0.0
        %3136 = vmatpush1.msra.mxu0 0.0
        %3137 = vmatprep.subr.mxu0 0.0
        %3138 = vmatpush1.msra.mxu0 0.0
        %3139 = vmatprep.subr.mxu0 0.0
        %3140 = vmatpush1.msra.mxu0 0.0
        %3141 = vmatprep.subr.mxu0 0.0
        %3142 = vmatpush1.msra.mxu0 0.0
        %3143 = vmatprep.subr.mxu0 0.0
        %3144 = vmatpush1.msra.mxu0 0.0
        %3145 = vmatprep.subr.mxu0 0.0
        %3146 = vmatpush1.msra.mxu0 0.0
        %3147 = vmatprep.subr.mxu0 0.0
        %3148 = vmatpush1.msra.mxu0 0.0
        %3149 = vmatprep.subr.mxu0 0.0
        %3150 = vmatpush1.msra.mxu0 0.0
        %3151 = vmatprep.subr.mxu0 0.0
        %3152 = vmatpush1.msra.mxu0 0.0
        %3153 = vmatprep.subr.mxu0 0.0
        %3154 = vmatpush1.msra.mxu0 0.0
        %3155 = vmatprep.subr.mxu0 0.0
        %3156 = vmatpush1.msra.mxu0 0.0
        %3157 = vmatprep.subr.mxu0 0.0
        %3158 = vmatpush1.msra.mxu0 0.0
        %3159 = vmatprep.subr.mxu0 0.0
        %3160 = vmatpush1.msra.mxu0 0.0
        %3161 = vmatprep.subr.mxu0 0.0
        %3162 = vmatpush1.msra.mxu0 0.0
        %3163 = vmatprep.subr.mxu0 0.0
        %3164 = vmatpush1.msra.mxu0 0.0
        %3165 = vmatprep.subr.mxu0 0.0
        %3166 = vmatpush1.msra.mxu0 0.0
        %3167 = vmatprep.subr.mxu0 0.0
        %3168 = vmatpush1.msra.mxu0 0.0
        %3169 = vmatprep.subr.mxu0 0.0
        %3170 = vmatpush1.msra.mxu0 0.0
        %3171 = vmatprep.subr.mxu0 0.0
        %3172 = vmatpush1.msra.mxu0 0.0
        %3173 = vmatprep.subr.mxu0 0.0
        %3174 = vmatpush1.msra.mxu0 0.0
        %3175 = vmatprep.subr.mxu0 0.0
        %3176 = vmatpush1.msra.mxu0 0.0
        %3177 = vmatprep.subr.mxu0 0.0
        %3178 = vmatpush1.msra.mxu0 0.0
        %3179 = vmatprep.subr.mxu0 0.0
        %3180 = vmatpush1.msra.mxu0 0.0
        %3181 = vmatprep.mubr.f32.mxu0 0.0
        %3182 = vmatmul.mubr.f32.gmra.mrb[0].mxu0 %v3019
        %v3183 = vpop.f32.mrb[0].mxu0
        %v3184 = vadd.f32 0.0, %v3183
        %v3185 = vpop.f32.mrb[0].mxu0
        %3186 = vmatprep.mubr.f32.mxu0 0.0
        %3187 = vmatmul.mubr.f32.gmra.mrb[0].mxu0 %v3022
        %v3188 = vpop.f32.mrb[0].mxu0
        %v3189 = vadd.f32 0.0, %v3188
        %v3190 = vpop.f32.mrb[0].mxu0
        %3191 = vmatprep.mubr.f32.mxu0 0.0
        %3192 = vmatmul.mubr.f32.gmra.mrb[0].mxu0 %v3025
        %v3193 = vpop.f32.mrb[0].mxu0
        %v3194 = vadd.f32 0.0, %v3193
        %v3195 = vpop.f32.mrb[0].mxu0
        %3196 = vmatprep.mubr.f32.mxu0 0.0
        %3197 = vmatmul.mubr.f32.gmra.mrb[0].mxu0 %v3028
        %v3198 = vpop.f32.mrb[0].mxu0
        %v3199 = vadd.f32 0.0, %v3198
        %v3200 = vpop.f32.mrb[0].mxu0
        %3201 = vmatprep.mubr.f32.mxu0 0.0
        %3202 = vmatmul.mubr.f32.gmra.mrb[0].mxu0 %v3031
        %v3203 = vpop.f32.mrb[0].mxu0
        %v3204 = vadd.f32 0.0, %v3203
        %v3205 = vpop.f32.mrb[0].mxu0
        %3206 = vmatprep.mubr.f32.mxu0 0.0
        %3207 = vmatmul.mubr.f32.gmra.mrb[0].mxu0 %v3034
        %v3208 = vpop.f32.mrb[0].mxu0
        %v3209 = vadd.f32 0.0, %v3208
        %v3210 = vpop.f32.mrb[0].mxu0
        %3211 = vmatprep.mubr.f32.mxu0 0.0
        %3212 = vmatmul.mubr.f32.gmra.mrb[0].mxu0 %v3037
        %v3213 = vpop.f32.mrb[0].mxu0
        %v3214 = vadd.f32 0.0, %v3213
        %v3215 = vpop.f32.mrb[0].mxu0
        %3216 = vmatprep.mubr.f32.mxu0 0.0
        %3217 = vmatmul.mubr.f32.gmra.mrb[0].mxu0 %v3040
        %v3218 = vpop.f32.mrb[0].mxu0
        %v3219 = vadd.f32 0.0, %v3218
        %v3220 = vpop.f32.mrb[0].mxu0
        %3221 = vmatprep.mubr.f32.mxu0 0.0
        %3222 = vmatmul.mubr.f32.gmra.mrb[0].mxu0 %v3043
        %v3223 = vpop.f32.mrb[0].mxu0
        %v3224 = vadd.f32 0.0, %v3223
        %v3225 = vpop.f32.mrb[0].mxu0
        %3226 = vmatprep.mubr.f32.mxu0 0.0
        %3227 = vmatmul.mubr.f32.gmra.mrb[0].mxu0 %v3046
        %v3228 = vpop.f32.mrb[0].mxu0
        %v3229 = vadd.f32 0.0, %v3228
        %v3230 = vpop.f32.mrb[0].mxu0
        %3231 = vmatprep.mubr.f32.mxu0 0.0
        %3232 = vmatmul.mubr.f32.gmra.mrb[0].mxu0 %v3049
        %v3233 = vpop.f32.mrb[0].mxu0
        %v3234 = vadd.f32 0.0, %v3233
        %v3235 = vpop.f32.mrb[0].mxu0
        %3236 = vmatprep.mubr.f32.mxu0 0.0
        %3237 = vmatmul.mubr.f32.gmra.mrb[0].mxu0 %v3052
        %v3238 = vpop.f32.mrb[0].mxu0
        %v3239 = vadd.f32 0.0, %v3238
        %v3240 = vpop.f32.mrb[0].mxu0
        %3241 = vmatprep.mubr.f32.mxu0 0.0
        %3242 = vmatmul.mubr.f32.gmra.mrb[0].mxu0 %v3055
        %v3243 = vpop.f32.mrb[0].mxu0
        %v3244 = vadd.f32 0.0, %v3243
        %v3245 = vpop.f32.mrb[0].mxu0
        %3246 = vmatprep.mubr.f32.mxu0 0.0
        %3247 = vmatmul.mubr.f32.gmra.mrb[0].mxu0 %v3058
        %v3248 = vpop.f32.mrb[0].mxu0
        %v3249 = vadd.f32 0.0, %v3248
        %v3250 = vpop.f32.mrb[0].mxu0
        %3251 = vmatprep.mubr.f32.mxu0 0.0
        %3252 = vmatmul.mubr.f32.gmra.mrb[0].mxu0 %v3061
        %v3253 = vpop.f32.mrb[0].mxu0
        %v3254 = vadd.f32 0.0, %v3253
        %v3255 = vpop.f32.mrb[0].mxu0
        %3256 = vmatprep.mubr.f32.mxu0 0.0
        %3257 = vmatmul.mubr.f32.gmra.mrb[0].mxu0 %v3064
        %v3258 = vpop.f32.mrb[0].mxu0
        %v3259 = vadd.f32 0.0, %v3258
        %v3260 = vpop.f32.mrb[0].mxu0
        %3261 = vmatprep.mubr.f32.mxu0 0.0
        %3262 = vmatmul.mubr.f32.gmra.mrb[0].mxu0 %v3067
        %v3263 = vpop.f32.mrb[0].mxu0
        %v3264 = vadd.f32 0.0, %v3263
        %v3265 = vpop.f32.mrb[0].mxu0
        %3266 = vmatprep.mubr.f32.mxu0 0.0
        %3267 = vmatmul.mubr.f32.gmra.mrb[0].mxu0 %v3070
        %v3268 = vpop.f32.mrb[0].mxu0
        %v3269 = vadd.f32 0.0, %v3268
        %v3270 = vpop.f32.mrb[0].mxu0
        %3271 = vmatprep.mubr.f32.mxu0 0.0
        %3272 = vmatmul.mubr.f32.gmra.mrb[0].mxu0 %v3073
        %v3273 = vpop.f32.mrb[0].mxu0
        %v3274 = vadd.f32 0.0, %v3273
        %v3275 = vpop.f32.mrb[0].mxu0
        %3276 = vmatprep.mubr.f32.mxu0 0.0
        %3277 = vmatmul.mubr.f32.gmra.mrb[0].mxu0 %v3076
        %v3278 = vpop.f32.mrb[0].mxu0
        %v3279 = vadd.f32 0.0, %v3278
        %v3280 = vpop.f32.mrb[0].mxu0
        %3281 = vmatprep.mubr.f32.mxu0 0.0
        %3282 = vmatmul.mubr.f32.gmra.mrb[0].mxu0 %v3079
        %v3283 = vpop.f32.mrb[0].mxu0
        %v3284 = vadd.f32 0.0, %v3283
        %v3285 = vpop.f32.mrb[0].mxu0
        %3286 = vmatprep.mubr.f32.mxu0 0.0
        %3287 = vmatmul.mubr.f32.gmra.mrb[0].mxu0 %v3082
        %v3288 = vpop.f32.mrb[0].mxu0
        %v3289 = vadd.f32 0.0, %v3288
        %v3290 = vpop.f32.mrb[0].mxu0
        %3291 = vmatprep.mubr.f32.mxu0 0.0
        %3292 = vmatmul.mubr.f32.gmra.mrb[0].mxu0 %v3085
        %v3293 = vpop.f32.mrb[0].mxu0
        %v3294 = vadd.f32 0.0, %v3293
        %v3295 = vpop.f32.mrb[0].mxu0
        %3296 = vmatprep.mubr.f32.mxu0 0.0
        %3297 = vmatmul.mubr.f32.gmra.mrb[0].mxu0 %v3088
        %v3298 = vpop.f32.mrb[0].mxu0
        %v3299 = vadd.f32 0.0, %v3298
        %v3300 = vpop.f32.mrb[0].mxu0
        %3301 = vmatprep.mubr.f32.mxu0 0.0
        %3302 = vmatmul.mubr.f32.gmra.mrb[0].mxu0 %v3091
        %v3303 = vpop.f32.mrb[0].mxu0
        %v3304 = vadd.f32 0.0, %v3303
        %v3305 = vpop.f32.mrb[0].mxu0
        %3306 = vmatprep.mubr.f32.mxu0 0.0
        %3307 = vmatmul.mubr.f32.gmra.mrb[0].mxu0 %v3094
        %v3308 = vpop.f32.mrb[0].mxu0
        %v3309 = vadd.f32 0.0, %v3308
        %v3310 = vpop.f32.mrb[0].mxu0
        %3311 = vmatprep.mubr.f32.mxu0 0.0
        %3312 = vmatmul.mubr.f32.gmra.mrb[0].mxu0 %v3097
        %v3313 = vpop.f32.mrb[0].mxu0
        %v3314 = vadd.f32 0.0, %v3313
        %v3315 = vpop.f32.mrb[0].mxu0
        %3316 = vmatprep.mubr.f32.mxu0 0.0
        %3317 = vmatmul.mubr.f32.gmra.mrb[0].mxu0 %v3100
        %v3318 = vpop.f32.mrb[0].mxu0
        %v3319 = vadd.f32 0.0, %v3318
        %v3320 = vpop.f32.mrb[0].mxu0
        %3321 = vmatprep.mubr.f32.mxu0 0.0
        %3322 = vmatmul.mubr.f32.gmra.mrb[0].mxu0 %v3103
        %v3323 = vpop.f32.mrb[0].mxu0
        %v3324 = vadd.f32 0.0, %v3323
        %v3325 = vpop.f32.mrb[0].mxu0
        %3326 = vmatprep.mubr.f32.mxu0 0.0
        %3327 = vmatmul.mubr.f32.gmra.mrb[0].mxu0 %v3106
        %v3328 = vpop.f32.mrb[0].mxu0
        %v3329 = vadd.f32 0.0, %v3328
        %v3330 = vpop.f32.mrb[0].mxu0
        %3331 = vmatprep.mubr.f32.mxu0 0.0
        %3332 = vmatmul.mubr.f32.gmra.mrb[0].mxu0 %v3109
        %v3333 = vpop.f32.mrb[0].mxu0
        %v3334 = vadd.f32 0.0, %v3333
        %v3335 = vpop.f32.mrb[0].mxu0
        %3336 = vmatprep.mubr.f32.mxu0 0.0
        %3337 = vmatmul.mubr.f32.gmra.mrb[0].mxu0 %v3112
        %v3338 = vpop.f32.mrb[0].mxu0
        %v3339 = vadd.f32 0.0, %v3338
        %v3340 = vpop.f32.mrb[0].mxu0
        %3341 = vdwg.mxu0
        %v3342 = vadd.f32 %v2952, %v3184
        %v3343 = vadd.f32 %v2953, %v3189
        %v3344 = vadd.f32 %v2954, %v3194
        %v3345 = vadd.f32 %v2955, %v3199
        %v3346 = vadd.f32 %v2956, %v3204
        %v3347 = vadd.f32 %v2957, %v3209
        %v3348 = vadd.f32 %v2958, %v3214
        %v3349 = vadd.f32 %v2959, %v3219
        %v3350 = vadd.f32 %v2960, %v3224
        %v3351 = vadd.f32 %v2961, %v3229
        %v3352 = vadd.f32 %v2962, %v3234
        %v3353 = vadd.f32 %v2963, %v3239
        %v3354 = vadd.f32 %v2964, %v3244
        %v3355 = vadd.f32 %v2965, %v3249
        %v3356 = vadd.f32 %v2966, %v3254
        %v3357 = vadd.f32 %v2967, %v3259
        %v3358 = vadd.f32 %v2968, %v3264
        %v3359 = vadd.f32 %v2969, %v3269
        %v3360 = vadd.f32 %v2970, %v3274
        %v3361 = vadd.f32 %v2971, %v3279
        %v3362 = vadd.f32 %v2972, %v3284
        %v3363 = vadd.f32 %v2973, %v3289
        %v3364 = vadd.f32 %v2974, %v3294
        %v3365 = vadd.f32 %v2975, %v3299
        %v3366 = vadd.f32 %v2976, %v3304
        %v3367 = vadd.f32 %v2977, %v3309
        %v3368 = vadd.f32 %v2978, %v3314
        %v3369 = vadd.f32 %v2979, %v3319
        %v3370 = vadd.f32 %v2980, %v3324
        %v3371 = vadd.f32 %v2981, %v3329
        %v3372 = vadd.f32 %v2982, %v3334
        %v3373 = vadd.f32 %v2983, %v3339
        %v3374 = vld [vmem:[%s2593 + $0x2] sm:$0xff]
        %v3375 = vld [vmem:[%s2593 + $0xa] sm:$0xff]
        %v3376 = vld [vmem:[%s2593 + $0x1a] sm:$0xff]
        %v3377 = vld [vmem:[%s2593 + $0x22] sm:$0xff]
        %v3378 = vld [vmem:[%s2593 + $0x32] sm:$0xff]
        %v3379 = vld [vmem:[%s2593 + $0x3a] sm:$0xff]
        %v3380 = vld [vmem:[%s2593 + $0x4a] sm:$0xff]
        %v3381 = vld [vmem:[%s2593 + $0x52] sm:$0xff]
        %v3382 = vld [vmem:[%s2593 + $0x62] sm:$0xff]
        %v3383 = vld [vmem:[%s2593 + $0x6a] sm:$0xff]
        %v3384 = vld [vmem:[%s2593 + $0x7a] sm:$0xff]
        %v3385 = vld [vmem:[%s2593 + $0x82] sm:$0xff]
        %v3386 = vld [vmem:[%s2593 + $0x92] sm:$0xff]
        %v3387 = vld [vmem:[%s2593 + $0x9a] sm:$0xff]
        %v3388 = vld [vmem:[%s2593 + $0xaa] sm:$0xff]
        %v3389 = vld [vmem:[%s2593 + $0xb2] sm:$0xff]
        %v3390 = vld [vmem:[%s2593 + $0xc2] sm:$0xff]
        %v3391 = vld [vmem:[%s2593 + $0xca] sm:$0xff]
        %v3392 = vld [vmem:[%s2593 + $0xda] sm:$0xff]
        %v3393 = vld [vmem:[%s2593 + $0xe2] sm:$0xff]
        %v3394 = vld [vmem:[%s2593 + $0xf2] sm:$0xff]
        %v3395 = vld [vmem:[%s2593 + $0xfa] sm:$0xff]
        %v3396 = vld [vmem:[%s2593 + $0x10a] sm:$0xff]
        %v3397 = vld [vmem:[%s2593 + $0x112] sm:$0xff]
        %v3398 = vld [vmem:[%s2593 + $0x122] sm:$0xff]
        %v3399 = vld [vmem:[%s2593 + $0x12a] sm:$0xff]
        %v3400 = vld [vmem:[%s2593 + $0x13a] sm:$0xff]
        %v3401 = vld [vmem:[%s2593 + $0x142] sm:$0xff]
        %v3402 = vld [vmem:[%s2593 + $0x152] sm:$0xff]
        %v3403 = vld [vmem:[%s2593 + $0x15a] sm:$0xff]
        %v3404 = vld [vmem:[%s2593 + $0x16a] sm:$0xff]
        %v3405 = vld [vmem:[%s2593 + $0x172] sm:$0xff]
        %s3406 = scalar_lea.vmem %s1, 32
        %v3407 = vld [vmem:[%s3406] sm:$0xf]
        %v3409 = vsel %vm196, %v3374, 0
        %v3412 = vsel %vm196, %v3375, 0
        %v3415 = vsel %vm196, %v3376, 0
        %v3418 = vsel %vm196, %v3377, 0
        %v3421 = vsel %vm196, %v3378, 0
        %v3424 = vsel %vm196, %v3379, 0
        %v3427 = vsel %vm196, %v3380, 0
        %v3430 = vsel %vm196, %v3381, 0
        %v3433 = vsel %vm196, %v3382, 0
        %v3436 = vsel %vm196, %v3383, 0
        %v3439 = vsel %vm196, %v3384, 0
        %v3442 = vsel %vm196, %v3385, 0
        %v3445 = vsel %vm196, %v3386, 0
        %v3448 = vsel %vm196, %v3387, 0
        %v3451 = vsel %vm196, %v3388, 0
        %v3454 = vsel %vm196, %v3389, 0
        %v3457 = vsel %vm196, %v3390, 0
        %v3460 = vsel %vm196, %v3391, 0
        %v3463 = vsel %vm196, %v3392, 0
        %v3466 = vsel %vm196, %v3393, 0
        %v3469 = vsel %vm196, %v3394, 0
        %v3472 = vsel %vm196, %v3395, 0
        %v3475 = vsel %vm196, %v3396, 0
        %v3478 = vsel %vm196, %v3397, 0
        %v3481 = vsel %vm196, %v3398, 0
        %v3484 = vsel %vm196, %v3399, 0
        %v3487 = vsel %vm196, %v3400, 0
        %v3490 = vsel %vm196, %v3401, 0
        %v3493 = vsel %vm196, %v3402, 0
        %v3496 = vsel %vm196, %v3403, 0
        %v3499 = vsel %vm196, %v3404, 0
        %v3502 = vsel %vm196, %v3405, 0
        %v3505 = vsel %vm480, %v3407, 0
        %3507 = vmatprep.subr.mxu0 0.0
        %3508 = vmatpush1.msra.mxu0 %v3505
        %3509 = vmatprep.subr.mxu0 0.0
        %3510 = vmatpush1.msra.mxu0 0.0
        %3511 = vmatprep.subr.mxu0 0.0
        %3512 = vmatpush1.msra.mxu0 0.0
        %3513 = vmatprep.subr.mxu0 0.0
        %3514 = vmatpush1.msra.mxu0 0.0
        %3515 = vmatprep.subr.mxu0 0.0
        %3516 = vmatpush1.msra.mxu0 0.0
        %3517 = vmatprep.subr.mxu0 0.0
        %3518 = vmatpush1.msra.mxu0 0.0
        %3519 = vmatprep.subr.mxu0 0.0
        %3520 = vmatpush1.msra.mxu0 0.0
        %3521 = vmatprep.subr.mxu0 0.0
        %3522 = vmatpush1.msra.mxu0 0.0
        %3523 = vmatprep.subr.mxu0 0.0
        %3524 = vmatpush1.msra.mxu0 0.0
        %3525 = vmatprep.subr.mxu0 0.0
        %3526 = vmatpush1.msra.mxu0 0.0
        %3527 = vmatprep.subr.mxu0 0.0
        %3528 = vmatpush1.msra.mxu0 0.0
        %3529 = vmatprep.subr.mxu0 0.0
        %3530 = vmatpush1.msra.mxu0 0.0
        %3531 = vmatprep.subr.mxu0 0.0
        %3532 = vmatpush1.msra.mxu0 0.0
        %3533 = vmatprep.subr.mxu0 0.0
        %3534 = vmatpush1.msra.mxu0 0.0
        %3535 = vmatprep.subr.mxu0 0.0
        %3536 = vmatpush1.msra.mxu0 0.0
        %3537 = vmatprep.subr.mxu0 0.0
        %3538 = vmatpush1.msra.mxu0 0.0
        %3539 = vmatprep.subr.mxu0 0.0
        %3540 = vmatpush1.msra.mxu0 0.0
        %3541 = vmatprep.subr.mxu0 0.0
        %3542 = vmatpush1.msra.mxu0 0.0
        %3543 = vmatprep.subr.mxu0 0.0
        %3544 = vmatpush1.msra.mxu0 0.0
        %3545 = vmatprep.subr.mxu0 0.0
        %3546 = vmatpush1.msra.mxu0 0.0
        %3547 = vmatprep.subr.mxu0 0.0
        %3548 = vmatpush1.msra.mxu0 0.0
        %3549 = vmatprep.subr.mxu0 0.0
        %3550 = vmatpush1.msra.mxu0 0.0
        %3551 = vmatprep.subr.mxu0 0.0
        %3552 = vmatpush1.msra.mxu0 0.0
        %3553 = vmatprep.subr.mxu0 0.0
        %3554 = vmatpush1.msra.mxu0 0.0
        %3555 = vmatprep.subr.mxu0 0.0
        %3556 = vmatpush1.msra.mxu0 0.0
        %3557 = vmatprep.subr.mxu0 0.0
        %3558 = vmatpush1.msra.mxu0 0.0
        %3559 = vmatprep.subr.mxu0 0.0
        %3560 = vmatpush1.msra.mxu0 0.0
        %3561 = vmatprep.subr.mxu0 0.0
        %3562 = vmatpush1.msra.mxu0 0.0
        %3563 = vmatprep.subr.mxu0 0.0
        %3564 = vmatpush1.msra.mxu0 0.0
        %3565 = vmatprep.subr.mxu0 0.0
        %3566 = vmatpush1.msra.mxu0 0.0
        %3567 = vmatprep.subr.mxu0 0.0
        %3568 = vmatpush1.msra.mxu0 0.0
        %3569 = vmatprep.subr.mxu0 0.0
        %3570 = vmatpush1.msra.mxu0 0.0
        %3571 = vmatprep.mubr.f32.mxu0 0.0
        %3572 = vmatmul.mubr.f32.gmra.mrb[0].mxu0 %v3409
        %v3573 = vpop.f32.mrb[0].mxu0
        %v3574 = vadd.f32 0.0, %v3573
        %v3575 = vpop.f32.mrb[0].mxu0
        %3576 = vmatprep.mubr.f32.mxu0 0.0
        %3577 = vmatmul.mubr.f32.gmra.mrb[0].mxu0 %v3412
        %v3578 = vpop.f32.mrb[0].mxu0
        %v3579 = vadd.f32 0.0, %v3578
        %v3580 = vpop.f32.mrb[0].mxu0
        %3581 = vmatprep.mubr.f32.mxu0 0.0
        %3582 = vmatmul.mubr.f32.gmra.mrb[0].mxu0 %v3415
        %v3583 = vpop.f32.mrb[0].mxu0
        %v3584 = vadd.f32 0.0, %v3583
        %v3585 = vpop.f32.mrb[0].mxu0
        %3586 = vmatprep.mubr.f32.mxu0 0.0
        %3587 = vmatmul.mubr.f32.gmra.mrb[0].mxu0 %v3418
        %v3588 = vpop.f32.mrb[0].mxu0
        %v3589 = vadd.f32 0.0, %v3588
        %v3590 = vpop.f32.mrb[0].mxu0
        %3591 = vmatprep.mubr.f32.mxu0 0.0
        %3592 = vmatmul.mubr.f32.gmra.mrb[0].mxu0 %v3421
        %v3593 = vpop.f32.mrb[0].mxu0
        %v3594 = vadd.f32 0.0, %v3593
        %v3595 = vpop.f32.mrb[0].mxu0
        %3596 = vmatprep.mubr.f32.mxu0 0.0
        %3597 = vmatmul.mubr.f32.gmra.mrb[0].mxu0 %v3424
        %v3598 = vpop.f32.mrb[0].mxu0
        %v3599 = vadd.f32 0.0, %v3598
        %v3600 = vpop.f32.mrb[0].mxu0
        %3601 = vmatprep.mubr.f32.mxu0 0.0
        %3602 = vmatmul.mubr.f32.gmra.mrb[0].mxu0 %v3427
        %v3603 = vpop.f32.mrb[0].mxu0
        %v3604 = vadd.f32 0.0, %v3603
        %v3605 = vpop.f32.mrb[0].mxu0
        %3606 = vmatprep.mubr.f32.mxu0 0.0
        %3607 = vmatmul.mubr.f32.gmra.mrb[0].mxu0 %v3430
        %v3608 = vpop.f32.mrb[0].mxu0
        %v3609 = vadd.f32 0.0, %v3608
        %v3610 = vpop.f32.mrb[0].mxu0
        %3611 = vmatprep.mubr.f32.mxu0 0.0
        %3612 = vmatmul.mubr.f32.gmra.mrb[0].mxu0 %v3433
        %v3613 = vpop.f32.mrb[0].mxu0
        %v3614 = vadd.f32 0.0, %v3613
        %v3615 = vpop.f32.mrb[0].mxu0
        %3616 = vmatprep.mubr.f32.mxu0 0.0
        %3617 = vmatmul.mubr.f32.gmra.mrb[0].mxu0 %v3436
        %v3618 = vpop.f32.mrb[0].mxu0
        %v3619 = vadd.f32 0.0, %v3618
        %v3620 = vpop.f32.mrb[0].mxu0
        %3621 = vmatprep.mubr.f32.mxu0 0.0
        %3622 = vmatmul.mubr.f32.gmra.mrb[0].mxu0 %v3439
        %v3623 = vpop.f32.mrb[0].mxu0
        %v3624 = vadd.f32 0.0, %v3623
        %v3625 = vpop.f32.mrb[0].mxu0
        %3626 = vmatprep.mubr.f32.mxu0 0.0
        %3627 = vmatmul.mubr.f32.gmra.mrb[0].mxu0 %v3442
        %v3628 = vpop.f32.mrb[0].mxu0
        %v3629 = vadd.f32 0.0, %v3628
        %v3630 = vpop.f32.mrb[0].mxu0
        %3631 = vmatprep.mubr.f32.mxu0 0.0
        %3632 = vmatmul.mubr.f32.gmra.mrb[0].mxu0 %v3445
        %v3633 = vpop.f32.mrb[0].mxu0
        %v3634 = vadd.f32 0.0, %v3633
        %v3635 = vpop.f32.mrb[0].mxu0
        %3636 = vmatprep.mubr.f32.mxu0 0.0
        %3637 = vmatmul.mubr.f32.gmra.mrb[0].mxu0 %v3448
        %v3638 = vpop.f32.mrb[0].mxu0
        %v3639 = vadd.f32 0.0, %v3638
        %v3640 = vpop.f32.mrb[0].mxu0
        %3641 = vmatprep.mubr.f32.mxu0 0.0
        %3642 = vmatmul.mubr.f32.gmra.mrb[0].mxu0 %v3451
        %v3643 = vpop.f32.mrb[0].mxu0
        %v3644 = vadd.f32 0.0, %v3643
        %v3645 = vpop.f32.mrb[0].mxu0
        %3646 = vmatprep.mubr.f32.mxu0 0.0
        %3647 = vmatmul.mubr.f32.gmra.mrb[0].mxu0 %v3454
        %v3648 = vpop.f32.mrb[0].mxu0
        %v3649 = vadd.f32 0.0, %v3648
        %v3650 = vpop.f32.mrb[0].mxu0
        %3651 = vmatprep.mubr.f32.mxu0 0.0
        %3652 = vmatmul.mubr.f32.gmra.mrb[0].mxu0 %v3457
        %v3653 = vpop.f32.mrb[0].mxu0
        %v3654 = vadd.f32 0.0, %v3653
        %v3655 = vpop.f32.mrb[0].mxu0
        %3656 = vmatprep.mubr.f32.mxu0 0.0
        %3657 = vmatmul.mubr.f32.gmra.mrb[0].mxu0 %v3460
        %v3658 = vpop.f32.mrb[0].mxu0
        %v3659 = vadd.f32 0.0, %v3658
        %v3660 = vpop.f32.mrb[0].mxu0
        %3661 = vmatprep.mubr.f32.mxu0 0.0
        %3662 = vmatmul.mubr.f32.gmra.mrb[0].mxu0 %v3463
        %v3663 = vpop.f32.mrb[0].mxu0
        %v3664 = vadd.f32 0.0, %v3663
        %v3665 = vpop.f32.mrb[0].mxu0
        %3666 = vmatprep.mubr.f32.mxu0 0.0
        %3667 = vmatmul.mubr.f32.gmra.mrb[0].mxu0 %v3466
        %v3668 = vpop.f32.mrb[0].mxu0
        %v3669 = vadd.f32 0.0, %v3668
        %v3670 = vpop.f32.mrb[0].mxu0
        %3671 = vmatprep.mubr.f32.mxu0 0.0
        %3672 = vmatmul.mubr.f32.gmra.mrb[0].mxu0 %v3469
        %v3673 = vpop.f32.mrb[0].mxu0
        %v3674 = vadd.f32 0.0, %v3673
        %v3675 = vpop.f32.mrb[0].mxu0
        %3676 = vmatprep.mubr.f32.mxu0 0.0
        %3677 = vmatmul.mubr.f32.gmra.mrb[0].mxu0 %v3472
        %v3678 = vpop.f32.mrb[0].mxu0
        %v3679 = vadd.f32 0.0, %v3678
        %v3680 = vpop.f32.mrb[0].mxu0
        %3681 = vmatprep.mubr.f32.mxu0 0.0
        %3682 = vmatmul.mubr.f32.gmra.mrb[0].mxu0 %v3475
        %v3683 = vpop.f32.mrb[0].mxu0
        %v3684 = vadd.f32 0.0, %v3683
        %v3685 = vpop.f32.mrb[0].mxu0
        %3686 = vmatprep.mubr.f32.mxu0 0.0
        %3687 = vmatmul.mubr.f32.gmra.mrb[0].mxu0 %v3478
        %v3688 = vpop.f32.mrb[0].mxu0
        %v3689 = vadd.f32 0.0, %v3688
        %v3690 = vpop.f32.mrb[0].mxu0
        %3691 = vmatprep.mubr.f32.mxu0 0.0
        %3692 = vmatmul.mubr.f32.gmra.mrb[0].mxu0 %v3481
        %v3693 = vpop.f32.mrb[0].mxu0
        %v3694 = vadd.f32 0.0, %v3693
        %v3695 = vpop.f32.mrb[0].mxu0
        %3696 = vmatprep.mubr.f32.mxu0 0.0
        %3697 = vmatmul.mubr.f32.gmra.mrb[0].mxu0 %v3484
        %v3698 = vpop.f32.mrb[0].mxu0
        %v3699 = vadd.f32 0.0, %v3698
        %v3700 = vpop.f32.mrb[0].mxu0
        %3701 = vmatprep.mubr.f32.mxu0 0.0
        %3702 = vmatmul.mubr.f32.gmra.mrb[0].mxu0 %v3487
        %v3703 = vpop.f32.mrb[0].mxu0
        %v3704 = vadd.f32 0.0, %v3703
        %v3705 = vpop.f32.mrb[0].mxu0
        %3706 = vmatprep.mubr.f32.mxu0 0.0
        %3707 = vmatmul.mubr.f32.gmra.mrb[0].mxu0 %v3490
        %v3708 = vpop.f32.mrb[0].mxu0
        %v3709 = vadd.f32 0.0, %v3708
        %v3710 = vpop.f32.mrb[0].mxu0
        %3711 = vmatprep.mubr.f32.mxu0 0.0
        %3712 = vmatmul.mubr.f32.gmra.mrb[0].mxu0 %v3493
        %v3713 = vpop.f32.mrb[0].mxu0
        %v3714 = vadd.f32 0.0, %v3713
        %v3715 = vpop.f32.mrb[0].mxu0
        %3716 = vmatprep.mubr.f32.mxu0 0.0
        %3717 = vmatmul.mubr.f32.gmra.mrb[0].mxu0 %v3496
        %v3718 = vpop.f32.mrb[0].mxu0
        %v3719 = vadd.f32 0.0, %v3718
        %v3720 = vpop.f32.mrb[0].mxu0
        %3721 = vmatprep.mubr.f32.mxu0 0.0
        %3722 = vmatmul.mubr.f32.gmra.mrb[0].mxu0 %v3499
        %v3723 = vpop.f32.mrb[0].mxu0
        %v3724 = vadd.f32 0.0, %v3723
        %v3725 = vpop.f32.mrb[0].mxu0
        %3726 = vmatprep.mubr.f32.mxu0 0.0
        %3727 = vmatmul.mubr.f32.gmra.mrb[0].mxu0 %v3502
        %v3728 = vpop.f32.mrb[0].mxu0
        %v3729 = vadd.f32 0.0, %v3728
        %v3730 = vpop.f32.mrb[0].mxu0
        %3731 = vdwg.mxu0
        %v3732 = vadd.f32 %v3342, %v3574
        %v3733 = vadd.f32 %v3343, %v3579
        %v3734 = vadd.f32 %v3344, %v3584
        %v3735 = vadd.f32 %v3345, %v3589
        %v3736 = vadd.f32 %v3346, %v3594
        %v3737 = vadd.f32 %v3347, %v3599
        %v3738 = vadd.f32 %v3348, %v3604
        %v3739 = vadd.f32 %v3349, %v3609
        %v3740 = vadd.f32 %v3350, %v3614
        %v3741 = vadd.f32 %v3351, %v3619
        %v3742 = vadd.f32 %v3352, %v3624
        %v3743 = vadd.f32 %v3353, %v3629
        %v3744 = vadd.f32 %v3354, %v3634
        %v3745 = vadd.f32 %v3355, %v3639
        %v3746 = vadd.f32 %v3356, %v3644
        %v3747 = vadd.f32 %v3357, %v3649
        %v3748 = vadd.f32 %v3358, %v3654
        %v3749 = vadd.f32 %v3359, %v3659
        %v3750 = vadd.f32 %v3360, %v3664
        %v3751 = vadd.f32 %v3361, %v3669
        %v3752 = vadd.f32 %v3362, %v3674
        %v3753 = vadd.f32 %v3363, %v3679
        %v3754 = vadd.f32 %v3364, %v3684
        %v3755 = vadd.f32 %v3365, %v3689
        %v3756 = vadd.f32 %v3366, %v3694
        %v3757 = vadd.f32 %v3367, %v3699
        %v3758 = vadd.f32 %v3368, %v3704
        %v3759 = vadd.f32 %v3369, %v3709
        %v3760 = vadd.f32 %v3370, %v3714
        %v3761 = vadd.f32 %v3371, %v3719
        %v3762 = vadd.f32 %v3372, %v3724
        %v3763 = vadd.f32 %v3373, %v3729
        %v3764 = vld [vmem:[%s2] sm:$0x1]
        %v3766 = vlaneseq
        %v3767 = vshrl.u32 %v3766, 7
        %v3768 = vsub.s32 0, %v3767
        %v3769 = vrot.slane %v3764, %v3768
        %v3771 = vmul.f32 %v3732, %v3769
        %v3772 = vmul.f32 %v3733, %v3769
        %v3773 = vmul.f32 %v3734, %v3769
        %v3774 = vmul.f32 %v3735, %v3769
        %v3775 = vmul.f32 %v3736, %v3769
        %v3776 = vmul.f32 %v3737, %v3769
        %v3777 = vmul.f32 %v3738, %v3769
        %v3778 = vmul.f32 %v3739, %v3769
        %v3779 = vmul.f32 %v3740, %v3769
        %v3780 = vmul.f32 %v3741, %v3769
        %v3781 = vmul.f32 %v3742, %v3769
        %v3782 = vmul.f32 %v3743, %v3769
        %v3783 = vmul.f32 %v3744, %v3769
        %v3784 = vmul.f32 %v3745, %v3769
        %v3785 = vmul.f32 %v3746, %v3769
        %v3786 = vmul.f32 %v3747, %v3769
        %v3787 = vmul.f32 %v3748, %v3769
        %v3788 = vmul.f32 %v3749, %v3769
        %v3789 = vmul.f32 %v3750, %v3769
        %v3790 = vmul.f32 %v3751, %v3769
        %v3791 = vmul.f32 %v3752, %v3769
        %v3792 = vmul.f32 %v3753, %v3769
        %v3793 = vmul.f32 %v3754, %v3769
        %v3794 = vmul.f32 %v3755, %v3769
        %v3795 = vmul.f32 %v3756, %v3769
        %v3796 = vmul.f32 %v3757, %v3769
        %v3797 = vmul.f32 %v3758, %v3769
        %v3798 = vmul.f32 %v3759, %v3769
        %v3799 = vmul.f32 %v3760, %v3769
        %v3800 = vmul.f32 %v3761, %v3769
        %v3801 = vmul.f32 %v3762, %v3769
        %v3802 = vmul.f32 %v3763, %v3769
        %v3803 = vld [vmem:[%s3] sm:$0x1]
        %v3805 = vlaneseq
        %v3806 = vshrl.u32 %v3805, 7
        %v3807 = vsub.s32 0, %v3806
        %v3808 = vrot.slane %v3803, %v3807
        %v3810 = vadd.f32 %v3771, %v3808
        %v3811 = vadd.f32 %v3772, %v3808
        %v3812 = vadd.f32 %v3773, %v3808
        %v3813 = vadd.f32 %v3774, %v3808
        %v3814 = vadd.f32 %v3775, %v3808
        %v3815 = vadd.f32 %v3776, %v3808
        %v3816 = vadd.f32 %v3777, %v3808
        %v3817 = vadd.f32 %v3778, %v3808
        %v3818 = vadd.f32 %v3779, %v3808
        %v3819 = vadd.f32 %v3780, %v3808
        %v3820 = vadd.f32 %v3781, %v3808
        %v3821 = vadd.f32 %v3782, %v3808
        %v3822 = vadd.f32 %v3783, %v3808
        %v3823 = vadd.f32 %v3784, %v3808
        %v3824 = vadd.f32 %v3785, %v3808
        %v3825 = vadd.f32 %v3786, %v3808
        %v3826 = vadd.f32 %v3787, %v3808
        %v3827 = vadd.f32 %v3788, %v3808
        %v3828 = vadd.f32 %v3789, %v3808
        %v3829 = vadd.f32 %v3790, %v3808
        %v3830 = vadd.f32 %v3791, %v3808
        %v3831 = vadd.f32 %v3792, %v3808
        %v3832 = vadd.f32 %v3793, %v3808
        %v3833 = vadd.f32 %v3794, %v3808
        %v3834 = vadd.f32 %v3795, %v3808
        %v3835 = vadd.f32 %v3796, %v3808
        %v3836 = vadd.f32 %v3797, %v3808
        %v3837 = vadd.f32 %v3798, %v3808
        %v3838 = vadd.f32 %v3799, %v3808
        %v3839 = vadd.f32 %v3800, %v3808
        %v3840 = vadd.f32 %v3801, %v3808
        %v3841 = vadd.f32 %v3802, %v3808
        %v3842 = vmax.f32 %v3810, 0.0
        %v3843 = vmax.f32 %v3811, 0.0
        %v3844 = vmax.f32 %v3812, 0.0
        %v3845 = vmax.f32 %v3813, 0.0
        %v3846 = vmax.f32 %v3814, 0.0
        %v3847 = vmax.f32 %v3815, 0.0
        %v3848 = vmax.f32 %v3816, 0.0
        %v3849 = vmax.f32 %v3817, 0.0
        %v3850 = vmax.f32 %v3818, 0.0
        %v3851 = vmax.f32 %v3819, 0.0
        %v3852 = vmax.f32 %v3820, 0.0
        %v3853 = vmax.f32 %v3821, 0.0
        %v3854 = vmax.f32 %v3822, 0.0
        %v3855 = vmax.f32 %v3823, 0.0
        %v3856 = vmax.f32 %v3824, 0.0
        %v3857 = vmax.f32 %v3825, 0.0
        %v3858 = vmax.f32 %v3826, 0.0
        %v3859 = vmax.f32 %v3827, 0.0
        %v3860 = vmax.f32 %v3828, 0.0
        %v3861 = vmax.f32 %v3829, 0.0
        %v3862 = vmax.f32 %v3830, 0.0
        %v3863 = vmax.f32 %v3831, 0.0
        %v3864 = vmax.f32 %v3832, 0.0
        %v3865 = vmax.f32 %v3833, 0.0
        %v3866 = vmax.f32 %v3834, 0.0
        %v3867 = vmax.f32 %v3835, 0.0
        %v3868 = vmax.f32 %v3836, 0.0
        %v3869 = vmax.f32 %v3837, 0.0
        %v3870 = vmax.f32 %v3838, 0.0
        %v3871 = vmax.f32 %v3839, 0.0
        %v3872 = vmax.f32 %v3840, 0.0
        %v3873 = vmax.f32 %v3841, 0.0
        %vm3874 = vcmask 261120
        %3875 = vst.msk [vmem:[%s190] sm:$0xff] %vm3874, %v3842
        %3876 = vst.msk [vmem:[%s190 + $0x8] sm:$0xff] %vm3874, %v3843
        %3877 = vst.msk [vmem:[%s190 + $0x10] sm:$0xff] %vm3874, %v3844
        %3878 = vst.msk [vmem:[%s190 + $0x18] sm:$0xff] %vm3874, %v3845
        %3879 = vst.msk [vmem:[%s190 + $0x20] sm:$0xff] %vm3874, %v3846
        %3880 = vst.msk [vmem:[%s190 + $0x28] sm:$0xff] %vm3874, %v3847
        %3881 = vst.msk [vmem:[%s190 + $0x30] sm:$0xff] %vm3874, %v3848
        %3882 = vst.msk [vmem:[%s190 + $0x38] sm:$0xff] %vm3874, %v3849
        %3883 = vst.msk [vmem:[%s190 + $0x40] sm:$0xff] %vm3874, %v3850
        %3884 = vst.msk [vmem:[%s190 + $0x48] sm:$0xff] %vm3874, %v3851
        %3885 = vst.msk [vmem:[%s190 + $0x50] sm:$0xff] %vm3874, %v3852
        %3886 = vst.msk [vmem:[%s190 + $0x58] sm:$0xff] %vm3874, %v3853
        %3887 = vst.msk [vmem:[%s190 + $0x60] sm:$0xff] %vm3874, %v3854
        %3888 = vst.msk [vmem:[%s190 + $0x68] sm:$0xff] %vm3874, %v3855
        %3889 = vst.msk [vmem:[%s190 + $0x70] sm:$0xff] %vm3874, %v3856
        %3890 = vst.msk [vmem:[%s190 + $0x78] sm:$0xff] %vm3874, %v3857
        %3891 = vst.msk [vmem:[%s190 + $0x80] sm:$0xff] %vm3874, %v3858
        %3892 = vst.msk [vmem:[%s190 + $0x88] sm:$0xff] %vm3874, %v3859
        %3893 = vst.msk [vmem:[%s190 + $0x90] sm:$0xff] %vm3874, %v3860
        %3894 = vst.msk [vmem:[%s190 + $0x98] sm:$0xff] %vm3874, %v3861
        %3895 = vst.msk [vmem:[%s190 + $0xa0] sm:$0xff] %vm3874, %v3862
        %3896 = vst.msk [vmem:[%s190 + $0xa8] sm:$0xff] %vm3874, %v3863
        %3897 = vst.msk [vmem:[%s190 + $0xb0] sm:$0xff] %vm3874, %v3864
        %3898 = vst.msk [vmem:[%s190 + $0xb8] sm:$0xff] %vm3874, %v3865
        %3899 = vst.msk [vmem:[%s190 + $0xc0] sm:$0xff] %vm3874, %v3866
        %3900 = vst.msk [vmem:[%s190 + $0xc8] sm:$0xff] %vm3874, %v3867
        %3901 = vst.msk [vmem:[%s190 + $0xd0] sm:$0xff] %vm3874, %v3868
        %3902 = vst.msk [vmem:[%s190 + $0xd8] sm:$0xff] %vm3874, %v3869
        %3903 = vst.msk [vmem:[%s190 + $0xe0] sm:$0xff] %vm3874, %v3870
        %3904 = vst.msk [vmem:[%s190 + $0xe8] sm:$0xff] %vm3874, %v3871
        %3905 = vst.msk [vmem:[%s190 + $0xf0] sm:$0xff] %vm3874, %v3872
        %3906 = vst.msk [vmem:[%s190 + $0xf8] sm:$0xff] %vm3874, %v3873
        %s3907 = sand.u32 %s115, 1
        %s3908 = scalar_lea.sflag [#allocation4], %s3907
        %s3909 = sand.u32 %s115, 1
        %s3910 = smul.addr %s3909, 256
        %s3911 = scalar_lea.vmem [#allocation3], %s3910
        // Predicated region
        $region37: #{conv_bn_relu_forward.1} parent=35 // pred_check
          %p3912 = pneg %p125
        $region38: #{conv_bn_relu_forward.1} parent=35 // pred_check_branch
          %3914 = sbr.rel (%p3912) target = $region40
        $region39: #{conv_bn_relu_forward.1} parent=35 // pred_region
          %s3916 = ssub.s32 4096, 4096
          %3917 = vsyncadd %s3908, %s3916
          %s3918 = smul.addr %s18, 32
          %s3919 = smul.addr %s3918, 128
          %s3920 = scalar_lea.hbm %s4, %s3919
          %s3921 = sshll.u32 %s3911, 4
          %s3922 = int_to_ptr.vmem [resolvable:$true] %s3921
          %3927 = dma.vmem_to_hbm [thread:$0]  %s3922, 4096, %s3920, %s3908, 128, 128, 8
        $region40: #{conv_bn_relu_forward.1} parent=35 // pred_fallthru
          _
      $region36: #{conv_bn_relu_forward.1} parent=5 // pred_fallthru
        _
      %p3928 = scmp.le.s32.totalorder 2, %s13
      // Predicated region
      $region41: #{conv_bn_relu_forward.1} parent=5 // pred_check
        %p3929 = pneg %p3928
      $region42: #{conv_bn_relu_forward.1} parent=5 // pred_check_branch
        %3931 = sbr.rel (%p3929) target = $region44
      $region43: #{conv_bn_relu_forward.1} parent=5 // pred_region
        %s3932 = ssub.s32 %s13, 2
        // Predicated region
        $region45: #{conv_bn_relu_forward.1} parent=43 // pred_check
          %p3933 = pneg %p131
        $region46: #{conv_bn_relu_forward.1} parent=43 // pred_check_branch
          %3935 = sbr.rel (%p3933) target = $region48
        $region47: #{conv_bn_relu_forward.1} parent=43 // pred_region
          %s3936 = sand.u32 %s116, 1
          %s3937 = scalar_lea.sflag [#allocation4], %s3936
          %s3938 = sand.u32 %s116, 1
          %s3939 = smul.addr %s3938, 256
          %s3940 = scalar_lea.vmem [#allocation3], %s3939
          %3941 = dma.done %s3937, 4096
        $region48: #{conv_bn_relu_forward.1} parent=43 // pred_fallthru
          _
      $region44: #{conv_bn_relu_forward.1} parent=5 // pred_fallthru
        _
    $region6: #{conv_bn_relu_forward.1} parent=1 // loop_footer
      %s17 = sadd.s32 1, %s13
    $region7: #{conv_bn_relu_forward.1} parent=1 // loop_footer_branch
      %12 = sbr.rel target = $region3
    $region8: #{conv_bn_relu_forward.1} parent=1 // loop_exit
      _
    %3942 = vsyncpa [#allocation4], 1
    %s3943 = scalar_lea.sflag [#allocation4], 1
    %3944 = vsyncpa %s3943, 1

</llo_original>
